<compile_context>
chip_gen: v7x
topology: tpu7x:2x2x1
jax: 0.10.0
libtpu: 0.0.40
codegen_flags: <defaults>
</compile_context>

<pallas_src>
import functools

import jax
import jax.numpy as jnp
from jax import lax
from jax.experimental import pallas as pl
from jax.experimental.pallas import tpu as pltpu


# ---------------------------------------------------------------------------
# Geometry helpers
# ---------------------------------------------------------------------------

def _tile_geometry(n, max_tile=256):
    """Square tile size (multiple of 128) and zero-padded problem size."""
    tile = min(max_tile, ((n + 127) // 128) * 128)
    tile = max(tile, 128)
    n_pad = ((n + tile - 1) // tile) * tile
    return tile, n_pad


def _fold_to_vreg(x):
    """Reduce a (T0, T1) f32 tile to an (8, 128) partial.

    Uses only statically-aligned slices + VPU adds (no cross-lane XLU reduce
    trees, no reshapes), so it lowers cleanly and keeps the store full-vreg.
    """
    t0, t1 = x.shape
    acc = x[:, 0:128]
    for c in range(1, t1 // 128):
        acc = acc + x[:, c * 128:(c + 1) * 128]
    out = acc[0:8, :]
    for r in range(1, t0 // 8):
        out = out + acc[r * 8:(r + 1) * 8, :]
    return out


def _tile_valid(i_blk, j_blk, n, tile):
    """Validity mask for zero-padded rows/cols of the (i_blk, j_blk) tile."""
    row = lax.broadcasted_iota(jnp.int32, (tile, 1), 0) + i_blk * tile
    col = lax.broadcasted_iota(jnp.int32, (1, tile), 1) + j_blk * tile
    return (row < n) & (col < n)


# ---------------------------------------------------------------------------
# Shared tile math
# ---------------------------------------------------------------------------

def _tile_pairwise(fi, fjT, f2i, f2j, li, lj, neg_half_inv_sig2, w_leak,
                   gram_dtype):
    """w and w_diff for one (T, T) tile of the pairwise matrices."""
    a, b = fi, fjT
    if gram_dtype is not None:
        a = a.astype(gram_dtype)
        b = b.astype(gram_dtype)
        prec = None
    else:
        prec = lax.Precision.HIGHEST
    # Plain (T, D) @ (D, T) matmul on the MXU (column operand pre-transposed
    # in the wrapper -> no per-tile RHS relayout).
    gram = lax.dot_general(a, b, dimension_numbers=(((1,), (0,)), ((), ())),
                           precision=prec,
                           preferred_element_type=jnp.float32)        # (T, T)
    f_dist = jnp.sqrt(jnp.maximum(f2i + f2j - 2.0 * gram, 0.0))       # ||fi-fj||
    l_dist = jnp.abs(li - lj)                                         # |li-lj|
    w = jnp.exp(l_dist * l_dist * neg_half_inv_sig2) + w_leak         # gauss+leak
    w_diff = w * jnp.abs(f_dist - l_dist)
    return w, w_diff


def _tile_scale(i_blk, j_blk):
    """Off-diagonal tiles stand in for their transpose twin -> weight 2."""
    return jnp.where(i_blk == j_blk, 1.0, 2.0).astype(jnp.float32)


# ---------------------------------------------------------------------------
# Kernels
# ---------------------------------------------------------------------------

def _pair_sum_kernel(i_tab_ref, j_tab_ref,
                     fi_ref, fjT_ref, f2i_ref, f2j_ref, li_ref, lj_ref,
                     part_ref, *, n, tile, neg_half_inv_sig2, w_leak,
                     needs_mask, gram_dtype):
    t = pl.program_id(0)
    i_blk = i_tab_ref[t]
    j_blk = j_tab_ref[t]
    _, w_diff = _tile_pairwise(fi_ref[...], fjT_ref[...], f2i_ref[...],
                               f2j_ref[...], li_ref[...], lj_ref[...],
                               neg_half_inv_sig2, w_leak, gram_dtype)
    if needs_mask:  # compiled out entirely when N is a multiple of tile
        w_diff = jnp.where(_tile_valid(i_blk, j_blk, n, tile), w_diff, 0.0)
    part_ref[...] = _tile_scale(i_blk, j_blk) * _fold_to_vreg(w_diff)


def _masked_sum_kernel(i_tab_ref, j_tab_ref, alpha_ref,
                       fi_ref, fjT_ref, f2i_ref, f2j_ref, li_ref, lj_ref,
                       part_ref, *, n, tile, neg_half_inv_sig2, w_leak,
                       needs_mask, gram_dtype):
    t = pl.program_id(0)
    i_blk = i_tab_ref[t]
    j_blk = j_tab_ref[t]
    alpha = alpha_ref[0]
    w, w_diff = _tile_pairwise(fi_ref[...], fjT_ref[...], f2i_ref[...],
                               f2j_ref[...], li_ref[...], lj_ref[...],
                               neg_half_inv_sig2, w_leak, gram_dtype)
    mask = w_diff > alpha
    if needs_mask:
        mask = mask & _tile_valid(i_blk, j_blk, n, tile)
    scale = _tile_scale(i_blk, j_blk)
    zero = jnp.zeros_like(w_diff)
    # Three vreg-shaped partials stacked into one lane-dense (24, 128) block.
    part_ref[0:8, :] = scale * _fold_to_vreg(jnp.where(mask, w_diff, zero))
    part_ref[8:16, :] = scale * _fold_to_vreg(jnp.where(mask, w, zero))
    part_ref[16:24, :] = scale * _fold_to_vreg(mask.astype(jnp.float32))


# ---------------------------------------------------------------------------
# pallas_call plumbing
# ---------------------------------------------------------------------------

def _input_specs(tile, d, with_alpha):
    # TODO(synk): pipeline_mode=pl.Buffered(3) on the three column specs would
    # deepen pipelining of the per-step fjT DMA for large D; left at default.
    if with_alpha:
        def rmap(t, it, jt, al): return (it[t], 0)
        def cmap(t, it, jt, al): return (0, jt[t])
    else:
        def rmap(t, it, jt): return (it[t], 0)
        def cmap(t, it, jt): return (0, jt[t])
    return [
        pl.BlockSpec((tile, d), rmap),   # feature row block (T, D)
        pl.BlockSpec((d, tile), cmap),   # pre-transposed feature col block (D, T)
        pl.BlockSpec((tile, 1), rmap),   # row squared norms
        pl.BlockSpec((1, tile), cmap),   # col squared norms
        pl.BlockSpec((tile, 1), rmap),   # row labels
        pl.BlockSpec((1, tile), cmap),   # col labels
    ]


def _out_spec(rows, with_alpha):
    if with_alpha:
        def omap(t, it, jt, al): return (t, 0)
    else:
        def omap(t, it, jt): return (t, 0)
    return pl.BlockSpec((rows, 128), omap)


def _compiler_params(tile, d):
    # Double-buffered (T,D)+(D,T) feature blocks + live (T,T) f32 temporaries.
    est = 2 * 2 * tile * d * 4 + 8 * tile * tile * 4 + (1 << 20)
    # Clamp to 48 MiB so the same config is safe on v7x (64 MiB physical VMEM)
    # as well as v5e/v6e (128 MiB).
    limit = int(min(max(2 * est, 32 * 1024 * 1024), 48 * 1024 * 1024))
    return pltpu.CompilerParams(dimension_semantics=("parallel",),
                                vmem_limit_bytes=limit)


def _cost(num_tri, tile, d, out_rows):
    return pl.CostEstimate(
        flops=2 * num_tri * tile * tile * d,
        transcendentals=num_tri * tile * tile,
        bytes_accessed=num_tri * (2 * tile * d + 4 * tile) * 4
        + num_tri * out_rows * 128 * 4)


def _pairwise_call(kern, n_prefetch, prefetch_args, tensor_args, *,
                   tile, d, num_tri, out_rows):
    with_alpha = (n_prefetch == 3)
    return pl.pallas_call(
        kern,
        grid_spec=pltpu.PrefetchScalarGridSpec(
            num_scalar_prefetch=n_prefetch,
            grid=(num_tri,),
            in_specs=_input_specs(tile, d, with_alpha),
            out_specs=_out_spec(out_rows, with_alpha)),
        out_shape=jax.ShapeDtypeStruct((num_tri * out_rows, 128), jnp.float32),
        compiler_params=_compiler_params(tile, d),
        cost_estimate=_cost(num_tri, tile, d, out_rows),
    )(*prefetch_args, *tensor_args)


# ---------------------------------------------------------------------------
# Forward pass
# ---------------------------------------------------------------------------

@functools.partial(jax.jit, static_argnames=("sigma", "w_leak", "p",
                                              "max_tile", "gram_dtype"))
def _reg_metric_forward(feature, label, alpha_prev, is_first, *,
                        sigma, w_leak, p, max_tile=256, gram_dtype=None):
    feature = feature.astype(jnp.float32)
    label = jnp.reshape(label, (-1,)).astype(jnp.float32)
    n, d = feature.shape
    tile, n_pad = _tile_geometry(n, max_tile)
    gi = n_pad // tile
    needs_mask = (n_pad != n)

    pad = n_pad - n
    feat_p = jnp.pad(feature, ((0, pad), (0, 0)))
    lab_p = jnp.pad(label, (0, pad))
    feat_t = feat_p.T  # one-time wrapper transpose -> plain (T,D)@(D,T) tiles

    # Row squared-norms / label views computed once (outside the grid loop).
    f2 = jnp.sum(feat_p * feat_p, axis=1)
    f2_row = f2.reshape(n_pad, 1)
    f2_col = f2.reshape(1, n_pad)
    lab_row = lab_p.reshape(n_pad, 1)
    lab_col = lab_p.reshape(1, n_pad)

    # Upper-triangular tile enumeration (i slow / j fast, so the row block is
    # only re-fetched when i changes); off-diagonal tiles are doubled in-kernel.
    pairs = [(i, j) for i in range(gi) for j in range(i, gi)]
    num_tri = len(pairs)
    i_tab = jnp.asarray([pq[0] for pq in pairs], jnp.int32)
    j_tab = jnp.asarray([pq[1] for pq in pairs], jnp.int32)

    common = dict(n=n, tile=tile, neg_half_inv_sig2=-0.5 / (sigma * sigma),
                  w_leak=w_leak, needs_mask=needs_mask, gram_dtype=gram_dtype)
    tensors = (feat_p, feat_t, f2_row, f2_col, lab_row, lab_col)

    # Pass 1: per-tile partial sums of w_diff (no (N,N) materialization).
    kern1 = functools.partial(_pair_sum_kernel, **common)
    part1 = _pairwise_call(kern1, 2, (i_tab, j_tab), tensors,
                           tile=tile, d=d, num_tri=num_tri, out_rows=8)
    mean_diff = jnp.sum(part1) / jnp.float32(n * n)

    # Alpha EMA entirely on device -> no host sync between the two passes.
    alpha = jnp.where(is_first, mean_diff, p * alpha_prev + (1.0 - p) * mean_diff)
    alpha_arr = jnp.reshape(alpha, (1,)).astype(jnp.float32)

    # Pass 2: masked partial sums, recomputing each tile instead of re-reading
    # (N,N) arrays from HBM.
    kern2 = functools.partial(_masked_sum_kernel, **common)
    part2 = _pairwise_call(kern2, 3, (i_tab, j_tab, alpha_arr), tensors,
                           tile=tile, d=d, num_tri=num_tri, out_rows=24)
    part2 = part2.reshape(num_tri, 3, 8, 128)
    loss_sum = jnp.sum(part2[:, 0])
    corrw_sum = jnp.sum(part2[:, 1])
    # Per-tile count partials are small exact integers in f32; sum in int32 so
    # the total stays exact even when N^2 exceeds 2^24.
    nonz_num = jnp.sum(part2[:, 2].astype(jnp.int32)).astype(jnp.float32)

    loss = loss_sum / (corrw_sum + 1e-9)
    return loss, nonz_num, alpha, mean_diff


class RegMetricLossPallas:
    """Mirrors the PyTorch RegMetricLoss module (stateful alpha EMA)."""

    def __init__(self, sigma=1.0, w_leak=0.2, p=0.9, max_tile=256,
                 gram_dtype=None):
        # gram_dtype=jnp.bfloat16 enables the bf16 MXU path on v6e/v7x (halves
        # feature DMA / VMEM); default f32 matches the torch module's accuracy.
        self.sigma = float(sigma)
        self.w_leak = float(w_leak)
        self.p = float(p)
        self.max_tile = int(max_tile)
        self.gram_dtype = gram_dtype
        self.alpha = None  # device scalar after the first call (EMA state)

    def __call__(self, feature, label):
        feature = jnp.asarray(feature, jnp.float32)
        label = jnp.asarray(label, jnp.float32)
        if self.alpha is None:
            alpha_prev = jnp.float32(0.0)
            is_first = jnp.bool_(True)
        else:
            alpha_prev = self.alpha
            is_first = jnp.bool_(False)
        loss, nonz_num, alpha, mean_diff = _reg_metric_forward(
            feature, label, alpha_prev, is_first,
            sigma=self.sigma, w_leak=self.w_leak, p=self.p,
            max_tile=self.max_tile, gram_dtype=self.gram_dtype)
        self.alpha = alpha  # keep the EMA on device; no per-step host sync
        return loss, nonz_num, alpha, mean_diff


# ---------------------------------------------------------------------------
# Pure-JAX reference + self test
# ---------------------------------------------------------------------------

def _reference(feature, label, sigma, w_leak, alpha):
    """Pure-JAX reference of the torch forward (given an alpha threshold)."""
    f2 = jnp.sum(feature ** 2, axis=1)
    gram = jnp.matmul(feature, feature.T, precision=lax.Precision.HIGHEST)
    f_dist = jnp.sqrt(jnp.maximum(f2[None, :] + f2[:, None] - 2.0 * gram, 0.0))
    l_dist = jnp.abs(label[None, :] - label[:, None])
    w = jnp.exp(-((l_dist / sigma) ** 2) / 2.0) + w_leak
    w_diff = w * jnp.abs(f_dist - l_dist)
    mean_diff = jnp.mean(w_diff)
    mask = w_diff > alpha
    loss = jnp.sum(jnp.where(mask, w_diff, 0.0)) / (jnp.sum(jnp.where(mask, w, 0.0)) + 1e-9)
    return loss, w_diff, mean_diff


def _close(a, b, rtol, atol):
    return abs(float(a) - float(b)) <= atol + rtol * abs(float(b))


def _count_band(w_diff_ref, alpha, band):
    hi = int(jnp.sum(w_diff_ref > (alpha - band)))
    lo = int(jnp.sum(w_diff_ref > (alpha + band)))
    return lo, hi


if __name__ == "__main__":
    key = jax.random.PRNGKey(0)
    k_f, k_l = jax.random.split(key)
    N, D = 8, 32
    feature = jax.random.normal(k_f, (N, D), dtype=jnp.float32)
    label = jax.random.normal(k_l, (N,), dtype=jnp.float32)

    module = RegMetricLossPallas(sigma=1.0, w_leak=0.2, p=0.9)

    # --- first call: alpha == mean_diff ---
    loss1, nonz1, alpha1, mean1 = module(feature, label)
    jax.block_until_ready((loss1, nonz1, alpha1, mean1))

    ref_loss1, ref_wd1, ref_mean1 = _reference(feature, label, 1.0, 0.2, float(alpha1))
    assert _close(mean1, ref_mean1, 5e-3, 1e-3), (float(mean1), float(ref_mean1))
    assert _close(loss1, ref_loss1, 2e-2, 2e-3), (float(loss1), float(ref_loss1))
    band1 = 5e-3 * (1.0 + abs(float(alpha1)))
    lo1, hi1 = _count_band(ref_wd1, float(alpha1), band1)
    assert lo1 <= int(nonz1) <= hi1, (lo1, float(nonz1), hi1)
    assert _close(alpha1, mean1, 0.0, 1e-5), (float(alpha1), float(mean1))

    # --- second call: alpha follows the EMA (no host sync inside forward) ---
    loss2, nonz2, alpha2, mean2 = module(feature, label)
    jax.block_until_ready((loss2, nonz2, alpha2, mean2))
    expect_alpha2 = 0.9 * float(alpha1) + 0.1 * float(mean2)
    assert _close(alpha2, expect_alpha2, 1e-5, 1e-5), (float(alpha2), expect_alpha2)
    ref_loss2, ref_wd2, _ = _reference(feature, label, 1.0, 0.2, float(alpha2))
    assert _close(loss2, ref_loss2, 2e-2, 2e-3), (float(loss2), float(ref_loss2))
    band2 = 5e-3 * (1.0 + abs(float(alpha2)))
    lo2, hi2 = _count_band(ref_wd2, float(alpha2), band2)
    assert lo2 <= int(nonz2) <= hi2, (lo2, float(nonz2), hi2)

    print("KERNEL_OK")
</pallas_src>

<mosaic_0001>
module attributes {stable_mosaic.version = 11 : i64} {
  func.func @_pair_sum_kernel(%arg0: i32, %arg1: memref<1xi32, #tpu.memory_space<smem>>, %arg2: memref<1xi32, #tpu.memory_space<smem>>, %arg3: memref<128x32xf32, #tpu.memory_space<vmem>>, %arg4: memref<32x128xf32, #tpu.memory_space<vmem>>, %arg5: memref<128x1xf32, #tpu.memory_space<vmem>>, %arg6: memref<1x128xf32, #tpu.memory_space<vmem>>, %arg7: memref<128x1xf32, #tpu.memory_space<vmem>>, %arg8: memref<1x128xf32, #tpu.memory_space<vmem>>, %arg9: memref<8x128xf32, #tpu.memory_space<vmem>>) attributes {dimension_semantics = [#tpu.dimension_semantics<parallel>], iteration_bounds = array<i64: 1>, scalar_prefetch = 2 : i64, scratch_operands = 0 : i64, tpu.core_type = #tpu.core_type<tc>, window_params = [{transform_indices = @transform_0, window_bounds = array<i64: 128, 32>}, {transform_indices = @transform_1, window_bounds = array<i64: 32, 128>}, {transform_indices = @transform_2, window_bounds = array<i64: 128, 1>}, {transform_indices = @transform_3, window_bounds = array<i64: 1, 128>}, {transform_indices = @transform_4, window_bounds = array<i64: 128, 1>}, {transform_indices = @transform_5, window_bounds = array<i64: 1, 128>}, {transform_indices = @transform_6, window_bounds = array<i64: 8, 128>}]} {
    %0 = arith.index_cast %arg0 : i32 to index
    %1 = memref.load %arg1[%0] : memref<1xi32, #tpu.memory_space<smem>>
    %2 = arith.index_cast %arg0 : i32 to index
    %3 = memref.load %arg2[%2] : memref<1xi32, #tpu.memory_space<smem>>
    %c0 = arith.constant 0 : index
    %c0_0 = arith.constant 0 : index
    %4 = vector.load %arg3[%c0, %c0_0] : memref<128x32xf32, #tpu.memory_space<vmem>>, vector<128x32xf32>
    %c0_1 = arith.constant 0 : index
    %c0_2 = arith.constant 0 : index
    %5 = vector.load %arg4[%c0_1, %c0_2] : memref<32x128xf32, #tpu.memory_space<vmem>>, vector<32x128xf32>
    %c0_3 = arith.constant 0 : index
    %c0_4 = arith.constant 0 : index
    %6 = vector.load %arg5[%c0_3, %c0_4] : memref<128x1xf32, #tpu.memory_space<vmem>>, vector<128x1xf32>
    %c0_5 = arith.constant 0 : index
    %c0_6 = arith.constant 0 : index
    %7 = vector.load %arg6[%c0_5, %c0_6] : memref<1x128xf32, #tpu.memory_space<vmem>>, vector<1x128xf32>
    %c0_7 = arith.constant 0 : index
    %c0_8 = arith.constant 0 : index
    %8 = vector.load %arg7[%c0_7, %c0_8] : memref<128x1xf32, #tpu.memory_space<vmem>>, vector<128x1xf32>
    %c0_9 = arith.constant 0 : index
    %c0_10 = arith.constant 0 : index
    %9 = vector.load %arg8[%c0_9, %c0_10] : memref<1x128xf32, #tpu.memory_space<vmem>>, vector<1x128xf32>
    %cst = arith.constant dense<0.000000e+00> : vector<128x128xf32>
    %10 = tpu.matmul %4, %5, %cst {dimension_numbers = #tpu.dot_dimension_numbers<[1], [0], [0], [1], [0, 0, 1, 1], [], []>, precision = #tpu.contract_precision<fp32>} : vector<128x32xf32>, vector<32x128xf32>, vector<128x128xf32> -> vector<128x128xf32>
    %11 = vector.broadcast %6 : vector<128x1xf32> to vector<128x128xf32>
    %12 = vector.broadcast %7 : vector<1x128xf32> to vector<128x128xf32>
    %13 = arith.addf %11, %12 : vector<128x128xf32>
    %cst_11 = arith.constant 2.000000e+00 : f32
    %14 = vector.broadcast %cst_11 : f32 to vector<128x128xf32>
    %15 = arith.mulf %14, %10 : vector<128x128xf32>
    %16 = arith.subf %13, %15 : vector<128x128xf32>
    %cst_12 = arith.constant 0.000000e+00 : f32
    %17 = vector.broadcast %cst_12 : f32 to vector<128x128xf32>
    %18 = arith.maximumf %16, %17 : vector<128x128xf32>
    %19 = math.sqrt %18 : vector<128x128xf32>
    %20 = vector.broadcast %8 : vector<128x1xf32> to vector<128x128xf32>
    %21 = vector.broadcast %9 : vector<1x128xf32> to vector<128x128xf32>
    %22 = arith.subf %20, %21 : vector<128x128xf32>
    %23 = math.absf %22 : vector<128x128xf32>
    %24 = arith.mulf %23, %23 : vector<128x128xf32>
    %cst_13 = arith.constant -5.000000e-01 : f32
    %25 = vector.broadcast %cst_13 : f32 to vector<128x128xf32>
    %26 = arith.mulf %24, %25 : vector<128x128xf32>
    %27 = math.exp %26 : vector<128x128xf32>
    %cst_14 = arith.constant 2.000000e-01 : f32
    %28 = vector.broadcast %cst_14 : f32 to vector<128x128xf32>
    %29 = arith.addf %27, %28 : vector<128x128xf32>
    %30 = arith.subf %19, %23 : vector<128x128xf32>
    %31 = math.absf %30 : vector<128x128xf32>
    %32 = arith.mulf %29, %31 : vector<128x128xf32>
    %33 = tpu.iota {dimensions = array<i32: 0>} : vector<128x1xi32>
    %c128_i32 = arith.constant 128 : i32
    %34 = arith.muli %1, %c128_i32 : i32
    %35 = vector.broadcast %34 : i32 to vector<128x1xi32>
    %36 = arith.addi %33, %35 : vector<128x1xi32>
    %37 = tpu.iota {dimensions = array<i32: 1>} : vector<1x128xi32>
    %c128_i32_15 = arith.constant 128 : i32
    %38 = arith.muli %3, %c128_i32_15 : i32
    %39 = vector.broadcast %38 : i32 to vector<1x128xi32>
    %40 = arith.addi %37, %39 : vector<1x128xi32>
    %c8_i32 = arith.constant 8 : i32
    %41 = vector.broadcast %c8_i32 : i32 to vector<128x1xi32>
    %42 = arith.cmpi slt, %36, %41 : vector<128x1xi32>
    %c8_i32_16 = arith.constant 8 : i32
    %43 = vector.broadcast %c8_i32_16 : i32 to vector<1x128xi32>
    %44 = arith.cmpi slt, %40, %43 : vector<1x128xi32>
    %45 = vector.broadcast %42 : vector<128x1xi1> to vector<128x128xi1>
    %46 = vector.broadcast %44 : vector<1x128xi1> to vector<128x128xi1>
    %47 = arith.andi %45, %46 : vector<128x128xi1>
    %cst_17 = arith.constant 0.000000e+00 : f32
    %48 = vector.broadcast %cst_17 : f32 to vector<128x128xf32>
    %49 = arith.select %47, %32, %48 : vector<128x128xi1>, vector<128x128xf32>
    %50 = arith.cmpi eq, %1, %3 : i32
    %cst_18 = arith.constant 1.000000e+00 : f32
    %cst_19 = arith.constant 2.000000e+00 : f32
    %51 = arith.select %50, %cst_18, %cst_19 : f32
    %52 = vector.extract_strided_slice %49 {offsets = [0, 0], sizes = [8, 128], strides = [1, 1]} : vector<128x128xf32> to vector<8x128xf32>
    %53 = vector.extract_strided_slice %49 {offsets = [8, 0], sizes = [8, 128], strides = [1, 1]} : vector<128x128xf32> to vector<8x128xf32>
    %54 = arith.addf %52, %53 : vector<8x128xf32>
    %55 = vector.extract_strided_slice %49 {offsets = [16, 0], sizes = [8, 128], strides = [1, 1]} : vector<128x128xf32> to vector<8x128xf32>
    %56 = arith.addf %54, %55 : vector<8x128xf32>
    %57 = vector.extract_strided_slice %49 {offsets = [24, 0], sizes = [8, 128], strides = [1, 1]} : vector<128x128xf32> to vector<8x128xf32>
    %58 = arith.addf %56, %57 : vector<8x128xf32>
    %59 = vector.extract_strided_slice %49 {offsets = [32, 0], sizes = [8, 128], strides = [1, 1]} : vector<128x128xf32> to vector<8x128xf32>
    %60 = arith.addf %58, %59 : vector<8x128xf32>
    %61 = vector.extract_strided_slice %49 {offsets = [40, 0], sizes = [8, 128], strides = [1, 1]} : vector<128x128xf32> to vector<8x128xf32>
    %62 = arith.addf %60, %61 : vector<8x128xf32>
    %63 = vector.extract_strided_slice %49 {offsets = [48, 0], sizes = [8, 128], strides = [1, 1]} : vector<128x128xf32> to vector<8x128xf32>
    %64 = arith.addf %62, %63 : vector<8x128xf32>
    %65 = vector.extract_strided_slice %49 {offsets = [56, 0], sizes = [8, 128], strides = [1, 1]} : vector<128x128xf32> to vector<8x128xf32>
    %66 = arith.addf %64, %65 : vector<8x128xf32>
    %67 = vector.extract_strided_slice %49 {offsets = [64, 0], sizes = [8, 128], strides = [1, 1]} : vector<128x128xf32> to vector<8x128xf32>
    %68 = arith.addf %66, %67 : vector<8x128xf32>
    %69 = vector.extract_strided_slice %49 {offsets = [72, 0], sizes = [8, 128], strides = [1, 1]} : vector<128x128xf32> to vector<8x128xf32>
    %70 = arith.addf %68, %69 : vector<8x128xf32>
    %71 = vector.extract_strided_slice %49 {offsets = [80, 0], sizes = [8, 128], strides = [1, 1]} : vector<128x128xf32> to vector<8x128xf32>
    %72 = arith.addf %70, %71 : vector<8x128xf32>
    %73 = vector.extract_strided_slice %49 {offsets = [88, 0], sizes = [8, 128], strides = [1, 1]} : vector<128x128xf32> to vector<8x128xf32>
    %74 = arith.addf %72, %73 : vector<8x128xf32>
    %75 = vector.extract_strided_slice %49 {offsets = [96, 0], sizes = [8, 128], strides = [1, 1]} : vector<128x128xf32> to vector<8x128xf32>
    %76 = arith.addf %74, %75 : vector<8x128xf32>
    %77 = vector.extract_strided_slice %49 {offsets = [104, 0], sizes = [8, 128], strides = [1, 1]} : vector<128x128xf32> to vector<8x128xf32>
    %78 = arith.addf %76, %77 : vector<8x128xf32>
    %79 = vector.extract_strided_slice %49 {offsets = [112, 0], sizes = [8, 128], strides = [1, 1]} : vector<128x128xf32> to vector<8x128xf32>
    %80 = arith.addf %78, %79 : vector<8x128xf32>
    %81 = vector.extract_strided_slice %49 {offsets = [120, 0], sizes = [8, 128], strides = [1, 1]} : vector<128x128xf32> to vector<8x128xf32>
    %82 = arith.addf %80, %81 : vector<8x128xf32>
    %83 = vector.broadcast %51 : f32 to vector<8x128xf32>
    %84 = arith.mulf %83, %82 : vector<8x128xf32>
    %c0_20 = arith.constant 0 : index
    %c0_21 = arith.constant 0 : index
    %85 = vector.load %arg9[%c0_20, %c0_21] : memref<8x128xf32, #tpu.memory_space<vmem>>, vector<8x128xf32>
    tpu.vector_store %arg9[%c0_20, %c0_21], %84 {strides = array<i32>} : memref<8x128xf32, #tpu.memory_space<vmem>>, vector<8x128xf32>,
    return
  }
  func.func @transform_0(%arg0: i32, %arg1: memref<1xi32, #tpu.memory_space<smem>>, %arg2: memref<1xi32, #tpu.memory_space<smem>>) -> (i32, i32) {
    %0 = arith.index_cast %arg0 : i32 to index
    %1 = memref.load %arg1[%0] : memref<1xi32, #tpu.memory_space<smem>>
    %c0_i32 = arith.constant 0 : i32
    %c0_i32_0 = arith.constant 0 : i32
    return %1, %c0_i32 : i32, i32
  }
  func.func @transform_1(%arg0: i32, %arg1: memref<1xi32, #tpu.memory_space<smem>>, %arg2: memref<1xi32, #tpu.memory_space<smem>>) -> (i32, i32) {
    %0 = arith.index_cast %arg0 : i32 to index
    %1 = memref.load %arg2[%0] : memref<1xi32, #tpu.memory_space<smem>>
    %c0_i32 = arith.constant 0 : i32
    %c0_i32_0 = arith.constant 0 : i32
    return %c0_i32, %1 : i32, i32
  }
  func.func @transform_2(%arg0: i32, %arg1: memref<1xi32, #tpu.memory_space<smem>>, %arg2: memref<1xi32, #tpu.memory_space<smem>>) -> (i32, i32) {
    %0 = arith.index_cast %arg0 : i32 to index
    %1 = memref.load %arg1[%0] : memref<1xi32, #tpu.memory_space<smem>>
    %c0_i32 = arith.constant 0 : i32
    %c0_i32_0 = arith.constant 0 : i32
    return %1, %c0_i32 : i32, i32
  }
  func.func @transform_3(%arg0: i32, %arg1: memref<1xi32, #tpu.memory_space<smem>>, %arg2: memref<1xi32, #tpu.memory_space<smem>>) -> (i32, i32) {
    %0 = arith.index_cast %arg0 : i32 to index
    %1 = memref.load %arg2[%0] : memref<1xi32, #tpu.memory_space<smem>>
    %c0_i32 = arith.constant 0 : i32
    %c0_i32_0 = arith.constant 0 : i32
    return %c0_i32, %1 : i32, i32
  }
  func.func @transform_4(%arg0: i32, %arg1: memref<1xi32, #tpu.memory_space<smem>>, %arg2: memref<1xi32, #tpu.memory_space<smem>>) -> (i32, i32) {
    %0 = arith.index_cast %arg0 : i32 to index
    %1 = memref.load %arg1[%0] : memref<1xi32, #tpu.memory_space<smem>>
    %c0_i32 = arith.constant 0 : i32
    %c0_i32_0 = arith.constant 0 : i32
    return %1, %c0_i32 : i32, i32
  }
  func.func @transform_5(%arg0: i32, %arg1: memref<1xi32, #tpu.memory_space<smem>>, %arg2: memref<1xi32, #tpu.memory_space<smem>>) -> (i32, i32) {
    %0 = arith.index_cast %arg0 : i32 to index
    %1 = memref.load %arg2[%0] : memref<1xi32, #tpu.memory_space<smem>>
    %c0_i32 = arith.constant 0 : i32
    %c0_i32_0 = arith.constant 0 : i32
    return %c0_i32, %1 : i32, i32
  }
  func.func @transform_6(%arg0: i32, %arg1: memref<1xi32, #tpu.memory_space<smem>>, %arg2: memref<1xi32, #tpu.memory_space<smem>>) -> (i32, i32) {
    %c0_i32 = arith.constant 0 : i32
    %c0_i32_0 = arith.constant 0 : i32
    return %arg0, %c0_i32 : i32, i32
  }
}

module attributes {stable_mosaic.version = 11 : i64} {
  func.func @_masked_sum_kernel(%arg0: i32, %arg1: memref<1xi32, #tpu.memory_space<smem>>, %arg2: memref<1xi32, #tpu.memory_space<smem>>, %arg3: memref<1xf32, #tpu.memory_space<smem>>, %arg4: memref<128x32xf32, #tpu.memory_space<vmem>>, %arg5: memref<32x128xf32, #tpu.memory_space<vmem>>, %arg6: memref<128x1xf32, #tpu.memory_space<vmem>>, %arg7: memref<1x128xf32, #tpu.memory_space<vmem>>, %arg8: memref<128x1xf32, #tpu.memory_space<vmem>>, %arg9: memref<1x128xf32, #tpu.memory_space<vmem>>, %arg10: memref<24x128xf32, #tpu.memory_space<vmem>>) attributes {dimension_semantics = [#tpu.dimension_semantics<parallel>], iteration_bounds = array<i64: 1>, scalar_prefetch = 3 : i64, scratch_operands = 0 : i64, tpu.core_type = #tpu.core_type<tc>, window_params = [{transform_indices = @transform_0, window_bounds = array<i64: 128, 32>}, {transform_indices = @transform_1, window_bounds = array<i64: 32, 128>}, {transform_indices = @transform_2, window_bounds = array<i64: 128, 1>}, {transform_indices = @transform_3, window_bounds = array<i64: 1, 128>}, {transform_indices = @transform_4, window_bounds = array<i64: 128, 1>}, {transform_indices = @transform_5, window_bounds = array<i64: 1, 128>}, {transform_indices = @transform_6, window_bounds = array<i64: 24, 128>}]} {
    %0 = arith.index_cast %arg0 : i32 to index
    %1 = memref.load %arg1[%0] : memref<1xi32, #tpu.memory_space<smem>>
    %2 = arith.index_cast %arg0 : i32 to index
    %3 = memref.load %arg2[%2] : memref<1xi32, #tpu.memory_space<smem>>
    %c0 = arith.constant 0 : index
    %4 = memref.load %arg3[%c0] : memref<1xf32, #tpu.memory_space<smem>>
    %c0_0 = arith.constant 0 : index
    %c0_1 = arith.constant 0 : index
    %5 = vector.load %arg4[%c0_0, %c0_1] : memref<128x32xf32, #tpu.memory_space<vmem>>, vector<128x32xf32>
    %c0_2 = arith.constant 0 : index
    %c0_3 = arith.constant 0 : index
    %6 = vector.load %arg5[%c0_2, %c0_3] : memref<32x128xf32, #tpu.memory_space<vmem>>, vector<32x128xf32>
    %c0_4 = arith.constant 0 : index
    %c0_5 = arith.constant 0 : index
    %7 = vector.load %arg6[%c0_4, %c0_5] : memref<128x1xf32, #tpu.memory_space<vmem>>, vector<128x1xf32>
    %c0_6 = arith.constant 0 : index
    %c0_7 = arith.constant 0 : index
    %8 = vector.load %arg7[%c0_6, %c0_7] : memref<1x128xf32, #tpu.memory_space<vmem>>, vector<1x128xf32>
    %c0_8 = arith.constant 0 : index
    %c0_9 = arith.constant 0 : index
    %9 = vector.load %arg8[%c0_8, %c0_9] : memref<128x1xf32, #tpu.memory_space<vmem>>, vector<128x1xf32>
    %c0_10 = arith.constant 0 : index
    %c0_11 = arith.constant 0 : index
    %10 = vector.load %arg9[%c0_10, %c0_11] : memref<1x128xf32, #tpu.memory_space<vmem>>, vector<1x128xf32>
    %cst = arith.constant dense<0.000000e+00> : vector<128x128xf32>
    %11 = tpu.matmul %5, %6, %cst {dimension_numbers = #tpu.dot_dimension_numbers<[1], [0], [0], [1], [0, 0, 1, 1], [], []>, precision = #tpu.contract_precision<fp32>} : vector<128x32xf32>, vector<32x128xf32>, vector<128x128xf32> -> vector<128x128xf32>
    %12 = vector.broadcast %7 : vector<128x1xf32> to vector<128x128xf32>
    %13 = vector.broadcast %8 : vector<1x128xf32> to vector<128x128xf32>
    %14 = arith.addf %12, %13 : vector<128x128xf32>
    %cst_12 = arith.constant 2.000000e+00 : f32
    %15 = vector.broadcast %cst_12 : f32 to vector<128x128xf32>
    %16 = arith.mulf %15, %11 : vector<128x128xf32>
    %17 = arith.subf %14, %16 : vector<128x128xf32>
    %cst_13 = arith.constant 0.000000e+00 : f32
    %18 = vector.broadcast %cst_13 : f32 to vector<128x128xf32>
    %19 = arith.maximumf %17, %18 : vector<128x128xf32>
    %20 = math.sqrt %19 : vector<128x128xf32>
    %21 = vector.broadcast %9 : vector<128x1xf32> to vector<128x128xf32>
    %22 = vector.broadcast %10 : vector<1x128xf32> to vector<128x128xf32>
    %23 = arith.subf %21, %22 : vector<128x128xf32>
    %24 = math.absf %23 : vector<128x128xf32>
    %25 = arith.mulf %24, %24 : vector<128x128xf32>
    %cst_14 = arith.constant -5.000000e-01 : f32
    %26 = vector.broadcast %cst_14 : f32 to vector<128x128xf32>
    %27 = arith.mulf %25, %26 : vector<128x128xf32>
    %28 = math.exp %27 : vector<128x128xf32>
    %cst_15 = arith.constant 2.000000e-01 : f32
    %29 = vector.broadcast %cst_15 : f32 to vector<128x128xf32>
    %30 = arith.addf %28, %29 : vector<128x128xf32>
    %31 = arith.subf %20, %24 : vector<128x128xf32>
    %32 = math.absf %31 : vector<128x128xf32>
    %33 = arith.mulf %30, %32 : vector<128x128xf32>
    %34 = vector.broadcast %4 : f32 to vector<128x128xf32>
    %35 = arith.cmpf ogt, %33, %34 : vector<128x128xf32>
    %36 = tpu.iota {dimensions = array<i32: 0>} : vector<128x1xi32>
    %c128_i32 = arith.constant 128 : i32
    %37 = arith.muli %1, %c128_i32 : i32
    %38 = vector.broadcast %37 : i32 to vector<128x1xi32>
    %39 = arith.addi %36, %38 : vector<128x1xi32>
    %40 = tpu.iota {dimensions = array<i32: 1>} : vector<1x128xi32>
    %c128_i32_16 = arith.constant 128 : i32
    %41 = arith.muli %3, %c128_i32_16 : i32
    %42 = vector.broadcast %41 : i32 to vector<1x128xi32>
    %43 = arith.addi %40, %42 : vector<1x128xi32>
    %c8_i32 = arith.constant 8 : i32
    %44 = vector.broadcast %c8_i32 : i32 to vector<128x1xi32>
    %45 = arith.cmpi slt, %39, %44 : vector<128x1xi32>
    %c8_i32_17 = arith.constant 8 : i32
    %46 = vector.broadcast %c8_i32_17 : i32 to vector<1x128xi32>
    %47 = arith.cmpi slt, %43, %46 : vector<1x128xi32>
    %48 = vector.broadcast %45 : vector<128x1xi1> to vector<128x128xi1>
    %49 = vector.broadcast %47 : vector<1x128xi1> to vector<128x128xi1>
    %50 = arith.andi %48, %49 : vector<128x128xi1>
    %51 = arith.andi %35, %50 : vector<128x128xi1>
    %52 = arith.cmpi eq, %1, %3 : i32
    %cst_18 = arith.constant 1.000000e+00 : f32
    %cst_19 = arith.constant 2.000000e+00 : f32
    %53 = arith.select %52, %cst_18, %cst_19 : f32
    %cst_20 = arith.constant 0.000000e+00 : f32
    %54 = vector.broadcast %cst_20 : f32 to vector<128x128xf32>
    %55 = arith.select %51, %33, %54 : vector<128x128xi1>, vector<128x128xf32>
    %56 = vector.extract_strided_slice %55 {offsets = [0, 0], sizes = [8, 128], strides = [1, 1]} : vector<128x128xf32> to vector<8x128xf32>
    %57 = vector.extract_strided_slice %55 {offsets = [8, 0], sizes = [8, 128], strides = [1, 1]} : vector<128x128xf32> to vector<8x128xf32>
    %58 = arith.addf %56, %57 : vector<8x128xf32>
    %59 = vector.extract_strided_slice %55 {offsets = [16, 0], sizes = [8, 128], strides = [1, 1]} : vector<128x128xf32> to vector<8x128xf32>
    %60 = arith.addf %58, %59 : vector<8x128xf32>
    %61 = vector.extract_strided_slice %55 {offsets = [24, 0], sizes = [8, 128], strides = [1, 1]} : vector<128x128xf32> to vector<8x128xf32>
    %62 = arith.addf %60, %61 : vector<8x128xf32>
    %63 = vector.extract_strided_slice %55 {offsets = [32, 0], sizes = [8, 128], strides = [1, 1]} : vector<128x128xf32> to vector<8x128xf32>
    %64 = arith.addf %62, %63 : vector<8x128xf32>
    %65 = vector.extract_strided_slice %55 {offsets = [40, 0], sizes = [8, 128], strides = [1, 1]} : vector<128x128xf32> to vector<8x128xf32>
    %66 = arith.addf %64, %65 : vector<8x128xf32>
    %67 = vector.extract_strided_slice %55 {offsets = [48, 0], sizes = [8, 128], strides = [1, 1]} : vector<128x128xf32> to vector<8x128xf32>
    %68 = arith.addf %66, %67 : vector<8x128xf32>
    %69 = vector.extract_strided_slice %55 {offsets = [56, 0], sizes = [8, 128], strides = [1, 1]} : vector<128x128xf32> to vector<8x128xf32>
    %70 = arith.addf %68, %69 : vector<8x128xf32>
    %71 = vector.extract_strided_slice %55 {offsets = [64, 0], sizes = [8, 128], strides = [1, 1]} : vector<128x128xf32> to vector<8x128xf32>
    %72 = arith.addf %70, %71 : vector<8x128xf32>
    %73 = vector.extract_strided_slice %55 {offsets = [72, 0], sizes = [8, 128], strides = [1, 1]} : vector<128x128xf32> to vector<8x128xf32>
    %74 = arith.addf %72, %73 : vector<8x128xf32>
    %75 = vector.extract_strided_slice %55 {offsets = [80, 0], sizes = [8, 128], strides = [1, 1]} : vector<128x128xf32> to vector<8x128xf32>
    %76 = arith.addf %74, %75 : vector<8x128xf32>
    %77 = vector.extract_strided_slice %55 {offsets = [88, 0], sizes = [8, 128], strides = [1, 1]} : vector<128x128xf32> to vector<8x128xf32>
    %78 = arith.addf %76, %77 : vector<8x128xf32>
    %79 = vector.extract_strided_slice %55 {offsets = [96, 0], sizes = [8, 128], strides = [1, 1]} : vector<128x128xf32> to vector<8x128xf32>
    %80 = arith.addf %78, %79 : vector<8x128xf32>
    %81 = vector.extract_strided_slice %55 {offsets = [104, 0], sizes = [8, 128], strides = [1, 1]} : vector<128x128xf32> to vector<8x128xf32>
    %82 = arith.addf %80, %81 : vector<8x128xf32>
    %83 = vector.extract_strided_slice %55 {offsets = [112, 0], sizes = [8, 128], strides = [1, 1]} : vector<128x128xf32> to vector<8x128xf32>
    %84 = arith.addf %82, %83 : vector<8x128xf32>
    %85 = vector.extract_strided_slice %55 {offsets = [120, 0], sizes = [8, 128], strides = [1, 1]} : vector<128x128xf32> to vector<8x128xf32>
    %86 = arith.addf %84, %85 : vector<8x128xf32>
    %87 = vector.broadcast %53 : f32 to vector<8x128xf32>
    %88 = arith.mulf %87, %86 : vector<8x128xf32>
    %c0_21 = arith.constant 0 : index
    %c0_22 = arith.constant 0 : index
    %89 = vector.load %arg10[%c0_21, %c0_22] : memref<24x128xf32, #tpu.memory_space<vmem>>, vector<8x128xf32>
    tpu.vector_store %arg10[%c0_21, %c0_22], %88 {strides = array<i32>} : memref<24x128xf32, #tpu.memory_space<vmem>>, vector<8x128xf32>,
    %90 = arith.select %51, %30, %54 : vector<128x128xi1>, vector<128x128xf32>
    %91 = vector.extract_strided_slice %90 {offsets = [0, 0], sizes = [8, 128], strides = [1, 1]} : vector<128x128xf32> to vector<8x128xf32>
    %92 = vector.extract_strided_slice %90 {offsets = [8, 0], sizes = [8, 128], strides = [1, 1]} : vector<128x128xf32> to vector<8x128xf32>
    %93 = arith.addf %91, %92 : vector<8x128xf32>
    %94 = vector.extract_strided_slice %90 {offsets = [16, 0], sizes = [8, 128], strides = [1, 1]} : vector<128x128xf32> to vector<8x128xf32>
    %95 = arith.addf %93, %94 : vector<8x128xf32>
    %96 = vector.extract_strided_slice %90 {offsets = [24, 0], sizes = [8, 128], strides = [1, 1]} : vector<128x128xf32> to vector<8x128xf32>
    %97 = arith.addf %95, %96 : vector<8x128xf32>
    %98 = vector.extract_strided_slice %90 {offsets = [32, 0], sizes = [8, 128], strides = [1, 1]} : vector<128x128xf32> to vector<8x128xf32>
    %99 = arith.addf %97, %98 : vector<8x128xf32>
    %100 = vector.extract_strided_slice %90 {offsets = [40, 0], sizes = [8, 128], strides = [1, 1]} : vector<128x128xf32> to vector<8x128xf32>
    %101 = arith.addf %99, %100 : vector<8x128xf32>
    %102 = vector.extract_strided_slice %90 {offsets = [48, 0], sizes = [8, 128], strides = [1, 1]} : vector<128x128xf32> to vector<8x128xf32>
    %103 = arith.addf %101, %102 : vector<8x128xf32>
    %104 = vector.extract_strided_slice %90 {offsets = [56, 0], sizes = [8, 128], strides = [1, 1]} : vector<128x128xf32> to vector<8x128xf32>
    %105 = arith.addf %103, %104 : vector<8x128xf32>
    %106 = vector.extract_strided_slice %90 {offsets = [64, 0], sizes = [8, 128], strides = [1, 1]} : vector<128x128xf32> to vector<8x128xf32>
    %107 = arith.addf %105, %106 : vector<8x128xf32>
    %108 = vector.extract_strided_slice %90 {offsets = [72, 0], sizes = [8, 128], strides = [1, 1]} : vector<128x128xf32> to vector<8x128xf32>
    %109 = arith.addf %107, %108 : vector<8x128xf32>
    %110 = vector.extract_strided_slice %90 {offsets = [80, 0], sizes = [8, 128], strides = [1, 1]} : vector<128x128xf32> to vector<8x128xf32>
    %111 = arith.addf %109, %110 : vector<8x128xf32>
    %112 = vector.extract_strided_slice %90 {offsets = [88, 0], sizes = [8, 128], strides = [1, 1]} : vector<128x128xf32> to vector<8x128xf32>
    %113 = arith.addf %111, %112 : vector<8x128xf32>
    %114 = vector.extract_strided_slice %90 {offsets = [96, 0], sizes = [8, 128], strides = [1, 1]} : vector<128x128xf32> to vector<8x128xf32>
    %115 = arith.addf %113, %114 : vector<8x128xf32>
    %116 = vector.extract_strided_slice %90 {offsets = [104, 0], sizes = [8, 128], strides = [1, 1]} : vector<128x128xf32> to vector<8x128xf32>
    %117 = arith.addf %115, %116 : vector<8x128xf32>
    %118 = vector.extract_strided_slice %90 {offsets = [112, 0], sizes = [8, 128], strides = [1, 1]} : vector<128x128xf32> to vector<8x128xf32>
    %119 = arith.addf %117, %118 : vector<8x128xf32>
    %120 = vector.extract_strided_slice %90 {offsets = [120, 0], sizes = [8, 128], strides = [1, 1]} : vector<128x128xf32> to vector<8x128xf32>
    %121 = arith.addf %119, %120 : vector<8x128xf32>
    %122 = vector.broadcast %53 : f32 to vector<8x128xf32>
    %123 = arith.mulf %122, %121 : vector<8x128xf32>
    %c8 = arith.constant 8 : index
    %c0_23 = arith.constant 0 : index
    %124 = vector.load %arg10[%c8, %c0_23] : memref<24x128xf32, #tpu.memory_space<vmem>>, vector<8x128xf32>
    tpu.vector_store %arg10[%c8, %c0_23], %123 {strides = array<i32>} : memref<24x128xf32, #tpu.memory_space<vmem>>, vector<8x128xf32>,
    %125 = arith.extui %51 : vector<128x128xi1> to vector<128x128xi32>
    %126 = arith.sitofp %125 : vector<128x128xi32> to vector<128x128xf32>
    %127 = vector.extract_strided_slice %126 {offsets = [0, 0], sizes = [8, 128], strides = [1, 1]} : vector<128x128xf32> to vector<8x128xf32>
    %128 = vector.extract_strided_slice %126 {offsets = [8, 0], sizes = [8, 128], strides = [1, 1]} : vector<128x128xf32> to vector<8x128xf32>
    %129 = arith.addf %127, %128 : vector<8x128xf32>
    %130 = vector.extract_strided_slice %126 {offsets = [16, 0], sizes = [8, 128], strides = [1, 1]} : vector<128x128xf32> to vector<8x128xf32>
    %131 = arith.addf %129, %130 : vector<8x128xf32>
    %132 = vector.extract_strided_slice %126 {offsets = [24, 0], sizes = [8, 128], strides = [1, 1]} : vector<128x128xf32> to vector<8x128xf32>
    %133 = arith.addf %131, %132 : vector<8x128xf32>
    %134 = vector.extract_strided_slice %126 {offsets = [32, 0], sizes = [8, 128], strides = [1, 1]} : vector<128x128xf32> to vector<8x128xf32>
    %135 = arith.addf %133, %134 : vector<8x128xf32>
    %136 = vector.extract_strided_slice %126 {offsets = [40, 0], sizes = [8, 128], strides = [1, 1]} : vector<128x128xf32> to vector<8x128xf32>
    %137 = arith.addf %135, %136 : vector<8x128xf32>
    %138 = vector.extract_strided_slice %126 {offsets = [48, 0], sizes = [8, 128], strides = [1, 1]} : vector<128x128xf32> to vector<8x128xf32>
    %139 = arith.addf %137, %138 : vector<8x128xf32>
    %140 = vector.extract_strided_slice %126 {offsets = [56, 0], sizes = [8, 128], strides = [1, 1]} : vector<128x128xf32> to vector<8x128xf32>
    %141 = arith.addf %139, %140 : vector<8x128xf32>
    %142 = vector.extract_strided_slice %126 {offsets = [64, 0], sizes = [8, 128], strides = [1, 1]} : vector<128x128xf32> to vector<8x128xf32>
    %143 = arith.addf %141, %142 : vector<8x128xf32>
    %144 = vector.extract_strided_slice %126 {offsets = [72, 0], sizes = [8, 128], strides = [1, 1]} : vector<128x128xf32> to vector<8x128xf32>
    %145 = arith.addf %143, %144 : vector<8x128xf32>
    %146 = vector.extract_strided_slice %126 {offsets = [80, 0], sizes = [8, 128], strides = [1, 1]} : vector<128x128xf32> to vector<8x128xf32>
    %147 = arith.addf %145, %146 : vector<8x128xf32>
    %148 = vector.extract_strided_slice %126 {offsets = [88, 0], sizes = [8, 128], strides = [1, 1]} : vector<128x128xf32> to vector<8x128xf32>
    %149 = arith.addf %147, %148 : vector<8x128xf32>
    %150 = vector.extract_strided_slice %126 {offsets = [96, 0], sizes = [8, 128], strides = [1, 1]} : vector<128x128xf32> to vector<8x128xf32>
    %151 = arith.addf %149, %150 : vector<8x128xf32>
    %152 = vector.extract_strided_slice %126 {offsets = [104, 0], sizes = [8, 128], strides = [1, 1]} : vector<128x128xf32> to vector<8x128xf32>
    %153 = arith.addf %151, %152 : vector<8x128xf32>
    %154 = vector.extract_strided_slice %126 {offsets = [112, 0], sizes = [8, 128], strides = [1, 1]} : vector<128x128xf32> to vector<8x128xf32>
    %155 = arith.addf %153, %154 : vector<8x128xf32>
    %156 = vector.extract_strided_slice %126 {offsets = [120, 0], sizes = [8, 128], strides = [1, 1]} : vector<128x128xf32> to vector<8x128xf32>
    %157 = arith.addf %155, %156 : vector<8x128xf32>
    %158 = vector.broadcast %53 : f32 to vector<8x128xf32>
    %159 = arith.mulf %158, %157 : vector<8x128xf32>
    %c16 = arith.constant 16 : index
    %c0_24 = arith.constant 0 : index
    %160 = vector.load %arg10[%c16, %c0_24] : memref<24x128xf32, #tpu.memory_space<vmem>>, vector<8x128xf32>
    tpu.vector_store %arg10[%c16, %c0_24], %159 {strides = array<i32>} : memref<24x128xf32, #tpu.memory_space<vmem>>, vector<8x128xf32>,
    return
  }
  func.func @transform_0(%arg0: i32, %arg1: memref<1xi32, #tpu.memory_space<smem>>, %arg2: memref<1xi32, #tpu.memory_space<smem>>, %arg3: memref<1xf32, #tpu.memory_space<smem>>) -> (i32, i32) {
    %0 = arith.index_cast %arg0 : i32 to index
    %1 = memref.load %arg1[%0] : memref<1xi32, #tpu.memory_space<smem>>
    %c0_i32 = arith.constant 0 : i32
    %c0_i32_0 = arith.constant 0 : i32
    return %1, %c0_i32 : i32, i32
  }
  func.func @transform_1(%arg0: i32, %arg1: memref<1xi32, #tpu.memory_space<smem>>, %arg2: memref<1xi32, #tpu.memory_space<smem>>, %arg3: memref<1xf32, #tpu.memory_space<smem>>) -> (i32, i32) {
    %0 = arith.index_cast %arg0 : i32 to index
    %1 = memref.load %arg2[%0] : memref<1xi32, #tpu.memory_space<smem>>
    %c0_i32 = arith.constant 0 : i32
    %c0_i32_0 = arith.constant 0 : i32
    return %c0_i32, %1 : i32, i32
  }
  func.func @transform_2(%arg0: i32, %arg1: memref<1xi32, #tpu.memory_space<smem>>, %arg2: memref<1xi32, #tpu.memory_space<smem>>, %arg3: memref<1xf32, #tpu.memory_space<smem>>) -> (i32, i32) {
    %0 = arith.index_cast %arg0 : i32 to index
    %1 = memref.load %arg1[%0] : memref<1xi32, #tpu.memory_space<smem>>
    %c0_i32 = arith.constant 0 : i32
    %c0_i32_0 = arith.constant 0 : i32
    return %1, %c0_i32 : i32, i32
  }
  func.func @transform_3(%arg0: i32, %arg1: memref<1xi32, #tpu.memory_space<smem>>, %arg2: memref<1xi32, #tpu.memory_space<smem>>, %arg3: memref<1xf32, #tpu.memory_space<smem>>) -> (i32, i32) {
    %0 = arith.index_cast %arg0 : i32 to index
    %1 = memref.load %arg2[%0] : memref<1xi32, #tpu.memory_space<smem>>
    %c0_i32 = arith.constant 0 : i32
    %c0_i32_0 = arith.constant 0 : i32
    return %c0_i32, %1 : i32, i32
  }
  func.func @transform_4(%arg0: i32, %arg1: memref<1xi32, #tpu.memory_space<smem>>, %arg2: memref<1xi32, #tpu.memory_space<smem>>, %arg3: memref<1xf32, #tpu.memory_space<smem>>) -> (i32, i32) {
    %0 = arith.index_cast %arg0 : i32 to index
    %1 = memref.load %arg1[%0] : memref<1xi32, #tpu.memory_space<smem>>
    %c0_i32 = arith.constant 0 : i32
    %c0_i32_0 = arith.constant 0 : i32
    return %1, %c0_i32 : i32, i32
  }
  func.func @transform_5(%arg0: i32, %arg1: memref<1xi32, #tpu.memory_space<smem>>, %arg2: memref<1xi32, #tpu.memory_space<smem>>, %arg3: memref<1xf32, #tpu.memory_space<smem>>) -> (i32, i32) {
    %0 = arith.index_cast %arg0 : i32 to index
    %1 = memref.load %arg2[%0] : memref<1xi32, #tpu.memory_space<smem>>
    %c0_i32 = arith.constant 0 : i32
    %c0_i32_0 = arith.constant 0 : i32
    return %c0_i32, %1 : i32, i32
  }
  func.func @transform_6(%arg0: i32, %arg1: memref<1xi32, #tpu.memory_space<smem>>, %arg2: memref<1xi32, #tpu.memory_space<smem>>, %arg3: memref<1xf32, #tpu.memory_space<smem>>) -> (i32, i32) {
    %c0_i32 = arith.constant 0 : i32
    %c0_i32_0 = arith.constant 0 : i32
    return %arg0, %c0_i32 : i32, i32
  }
}

</mosaic_0001>

<llo_original>
// kernel: _reg_metric_forward.2
$region0: #{_reg_metric_forward.2}
  #allocation0 [shape = 'u32[]', space=smem, size = 0x4, offset = 0x4, fixed_abs, tag = 'smem constant byte address 0x4 - core index']
  #allocation1 [shape = 'u32[144,128]{1,0:T(1,128)}', space=vmem, size = 0x12000, scoped, tag = 'internal scratch']
  #allocation2 [shape = 's32[1]{0}', space=sflag, size = 0x4, scoped, tag = 'scoped memory for _reg_metric_forward.2']
  #allocation3 [shape = 's32[1]{0:T(128)S(6)}', space=smem, size = 0x200, scoped, tag = 'prefetched SMEM operand 0']
  #allocation4 [shape = 's32[1]{0:T(128)S(6)}', space=smem, size = 0x200, scoped, tag = 'prefetched SMEM operand 1']
  %s0 = inlined_call_operand.<no memory space> [shape: s32[1], index: 0, kind: input, shape index: {}, may-alias: {0,1}]
  %s1 = inlined_call_operand.<no memory space> [shape: s32[1], index: 1, kind: input, shape index: {}, may-alias: {0,1}]
  %s2 = inlined_call_operand.vmem [shape: f32[128,32], index: 2, kind: input, shape index: {}]
  %s3 = inlined_call_operand.vmem [shape: f32[32,128], index: 3, kind: input, shape index: {}]
  %s4 = inlined_call_operand.vmem [shape: f32[128,1], index: 4, kind: input, shape index: {}]
  %s5 = inlined_call_operand.vmem [shape: f32[1,128], index: 5, kind: input, shape index: {}]
  %s6 = inlined_call_operand.vmem [shape: f32[128,1], index: 6, kind: input, shape index: {}]
  %s7 = inlined_call_operand.vmem [shape: f32[1,128], index: 7, kind: input, shape index: {}]
  %s8 = inlined_call_operand.vmem [shape: f32[8,128], index: 8, kind: output, shape index: {}]
  %s9 = sld [smem:[#allocation0]]
  $region34: #{_reg_metric_forward.2} parent=0
    _
  %s11 = ssub.s32 1, %s9
  %s12 = scalar_select 0, %s11, %s9
  %13 = sst [smem:[#allocation3]] %s0
  %14 = sst [smem:[#allocation4]] %s1
  // Predicated region
  $region2: #{_reg_metric_forward.2} parent=0 // pred_check
    _
  $region3: #{_reg_metric_forward.2} parent=0 // pred_check_branch
    %16 = sbr.rel (0) target = $region5
  $region4: #{_reg_metric_forward.2} parent=0 // pred_region
    %s17 = sld [smem:[#allocation3]]
    %s18 = smul.u32 16, %s17
    %p19 = scmp.lt.s32.totalorder %s18, 15
    %s20 = scalar_select %p19, %s18, 15
    %s21 = smul.addr %s20, 8
    %s22 = scalar_lea.vmem %s2, %s21
    %s23 = sld [smem:[#allocation3]]
    %s24 = smul.u32 16, %s23
  $region5: #{_reg_metric_forward.2} parent=0 // pred_fallthru
    _
  // Predicated region
  $region6: #{_reg_metric_forward.2} parent=0 // pred_check
    _
  $region7: #{_reg_metric_forward.2} parent=0 // pred_check_branch
    %26 = sbr.rel (0) target = $region9
  $region8: #{_reg_metric_forward.2} parent=0 // pred_region
    %s27 = sld [smem:[#allocation4]]
    %p28 = scmp.lt.s32.totalorder %s27, 0
    %s29 = scalar_select %p28, %s27, 0
    %s30 = smul.addr %s29, 8
    %s31 = scalar_lea.vmem %s3, %s30
    %s32 = sld [smem:[#allocation4]]
  $region9: #{_reg_metric_forward.2} parent=0 // pred_fallthru
    _
  // Predicated region
  $region10: #{_reg_metric_forward.2} parent=0 // pred_check
    _
  $region11: #{_reg_metric_forward.2} parent=0 // pred_check_branch
    %34 = sbr.rel (0) target = $region13
  $region12: #{_reg_metric_forward.2} parent=0 // pred_region
    %s35 = sld [smem:[#allocation3]]
    %s36 = smul.u32 16, %s35
    %p37 = scmp.lt.s32.totalorder %s36, 15
    %s38 = scalar_select %p37, %s36, 15
    %s39 = smul.addr %s38, 8
    %s40 = scalar_lea.vmem %s4, %s39
    %s41 = sld [smem:[#allocation3]]
    %s42 = smul.u32 16, %s41
  $region13: #{_reg_metric_forward.2} parent=0 // pred_fallthru
    _
  // Predicated region
  $region14: #{_reg_metric_forward.2} parent=0 // pred_check
    _
  $region15: #{_reg_metric_forward.2} parent=0 // pred_check_branch
    %44 = sbr.rel (0) target = $region17
  $region16: #{_reg_metric_forward.2} parent=0 // pred_region
    %s45 = sld [smem:[#allocation4]]
    %p46 = scmp.lt.s32.totalorder %s45, 0
    %s47 = scalar_select %p46, %s45, 0
    %s48 = scalar_lea.vmem %s5, %s47
    %s49 = sld [smem:[#allocation4]]
  $region17: #{_reg_metric_forward.2} parent=0 // pred_fallthru
    _
  // Predicated region
  $region18: #{_reg_metric_forward.2} parent=0 // pred_check
    _
  $region19: #{_reg_metric_forward.2} parent=0 // pred_check_branch
    %51 = sbr.rel (0) target = $region21
  $region20: #{_reg_metric_forward.2} parent=0 // pred_region
    %s52 = sld [smem:[#allocation3]]
    %s53 = smul.u32 16, %s52
    %p54 = scmp.lt.s32.totalorder %s53, 15
    %s55 = scalar_select %p54, %s53, 15
    %s56 = smul.addr %s55, 8
    %s57 = scalar_lea.vmem %s6, %s56
    %s58 = sld [smem:[#allocation3]]
    %s59 = smul.u32 16, %s58
  $region21: #{_reg_metric_forward.2} parent=0 // pred_fallthru
    _
  // Predicated region
  $region22: #{_reg_metric_forward.2} parent=0 // pred_check
    _
  $region23: #{_reg_metric_forward.2} parent=0 // pred_check_branch
    %61 = sbr.rel (0) target = $region25
  $region24: #{_reg_metric_forward.2} parent=0 // pred_region
    %s62 = sld [smem:[#allocation4]]
    %p63 = scmp.lt.s32.totalorder %s62, 0
    %s64 = scalar_select %p63, %s62, 0
    %s65 = scalar_lea.vmem %s7, %s64
    %s66 = sld [smem:[#allocation4]]
  $region25: #{_reg_metric_forward.2} parent=0 // pred_fallthru
    _
  %s67 = sld [smem:[#allocation3]]
  %s68 = smul.u32 16, %s67
  %p69 = scmp.lt.s32.totalorder %s68, 15
  %s70 = scalar_select %p69, %s68, 15
  %s71 = smul.addr %s70, 8
  %s72 = scalar_lea.vmem %s2, %s71
  %s73 = sld [smem:[#allocation4]]
  %p74 = scmp.lt.s32.totalorder %s73, 0
  %s75 = scalar_select %p74, %s73, 0
  %s76 = smul.addr %s75, 8
  %s77 = scalar_lea.vmem %s3, %s76
  %s78 = sld [smem:[#allocation3]]
  %s79 = smul.u32 16, %s78
  %p80 = scmp.lt.s32.totalorder %s79, 15
  %s81 = scalar_select %p80, %s79, 15
  %s82 = smul.addr %s81, 8
  %s83 = scalar_lea.vmem %s4, %s82
  %s84 = sld [smem:[#allocation4]]
  %p85 = scmp.lt.s32.totalorder %s84, 0
  %s86 = scalar_select %p85, %s84, 0
  %s87 = scalar_lea.vmem %s5, %s86
  %s88 = sld [smem:[#allocation3]]
  %s89 = smul.u32 16, %s88
  %p90 = scmp.lt.s32.totalorder %s89, 15
  %s91 = scalar_select %p90, %s89, 15
  %s92 = smul.addr %s91, 8
  %s93 = scalar_lea.vmem %s6, %s92
  %s94 = sld [smem:[#allocation4]]
  %p95 = scmp.lt.s32.totalorder %s94, 0
  %s96 = scalar_select %p95, %s94, 0
  %s97 = scalar_lea.vmem %s7, %s96
  %s98 = sld [smem:[#allocation3]]
  %s99 = smul.u32 16, %s98
  %p100 = scmp.lt.s32.totalorder %s99, 15
  %s101 = scalar_select %p100, %s99, 15
  %s102 = smul.addr %s101, 8
  %s103 = scalar_lea.vmem %s2, %s102
  %s104 = sld [smem:[#allocation3]]
  %s105 = smul.u32 16, %s104
  %s106 = sld [smem:[#allocation4]]
  %p107 = scmp.lt.s32.totalorder %s106, 0
  %s108 = scalar_select %p107, %s106, 0
  %s109 = smul.addr %s108, 8
  %s110 = scalar_lea.vmem %s3, %s109
  %s111 = sld [smem:[#allocation4]]
  %s112 = sld [smem:[#allocation3]]
  %s113 = smul.u32 16, %s112
  %p114 = scmp.lt.s32.totalorder %s113, 15
  %s115 = scalar_select %p114, %s113, 15
  %s116 = smul.addr %s115, 8
  %s117 = scalar_lea.vmem %s4, %s116
  %s118 = sld [smem:[#allocation3]]
  %s119 = smul.u32 16, %s118
  %s120 = sld [smem:[#allocation4]]
  %p121 = scmp.lt.s32.totalorder %s120, 0
  %s122 = scalar_select %p121, %s120, 0
  %s123 = scalar_lea.vmem %s5, %s122
  %s124 = sld [smem:[#allocation4]]
  %s125 = sld [smem:[#allocation3]]
  %s126 = smul.u32 16, %s125
  %p127 = scmp.lt.s32.totalorder %s126, 15
  %s128 = scalar_select %p127, %s126, 15
  %s129 = smul.addr %s128, 8
  %s130 = scalar_lea.vmem %s6, %s129
  %s131 = sld [smem:[#allocation3]]
  %s132 = smul.u32 16, %s131
  %s133 = sld [smem:[#allocation4]]
  %p134 = scmp.lt.s32.totalorder %s133, 0
  %s135 = scalar_select %p134, %s133, 0
  %s136 = scalar_lea.vmem %s7, %s135
  %s137 = sld [smem:[#allocation4]]
  %s138 = sld [smem:[#allocation3]]
  %s139 = sld [smem:[#allocation4]]
  %v140 = vld [vmem:[%s103] sm:$0xff]
  %v141 = vld [vmem:[%s103 + $0x8] sm:$0xff]
  %v142 = vld [vmem:[%s103 + $0x10] sm:$0xff]
  %v143 = vld [vmem:[%s103 + $0x18] sm:$0xff]
  %v144 = vld [vmem:[%s103 + $0x20] sm:$0xff]
  %v145 = vld [vmem:[%s103 + $0x28] sm:$0xff]
  %v146 = vld [vmem:[%s103 + $0x30] sm:$0xff]
  %v147 = vld [vmem:[%s103 + $0x38] sm:$0xff]
  %v148 = vld [vmem:[%s103 + $0x40] sm:$0xff]
  %v149 = vld [vmem:[%s103 + $0x48] sm:$0xff]
  %v150 = vld [vmem:[%s103 + $0x50] sm:$0xff]
  %v151 = vld [vmem:[%s103 + $0x58] sm:$0xff]
  %v152 = vld [vmem:[%s103 + $0x60] sm:$0xff]
  %v153 = vld [vmem:[%s103 + $0x68] sm:$0xff]
  %v154 = vld [vmem:[%s103 + $0x70] sm:$0xff]
  %v155 = vld [vmem:[%s103 + $0x78] sm:$0xff]
  %v156 = vld [vmem:[%s110] sm:$0xff]
  %v157 = vld [vmem:[%s110 + $0x8] sm:$0xff]
  %v158 = vld [vmem:[%s110 + $0x10] sm:$0xff]
  %v159 = vld [vmem:[%s110 + $0x18] sm:$0xff]
  %v160 = vld [vmem:[%s117] sm:$0xff]
  %v161 = vld [vmem:[%s117 + $0x8] sm:$0xff]
  %v162 = vld [vmem:[%s117 + $0x10] sm:$0xff]
  %v163 = vld [vmem:[%s117 + $0x18] sm:$0xff]
  %v164 = vld [vmem:[%s117 + $0x20] sm:$0xff]
  %v165 = vld [vmem:[%s117 + $0x28] sm:$0xff]
  %v166 = vld [vmem:[%s117 + $0x30] sm:$0xff]
  %v167 = vld [vmem:[%s117 + $0x38] sm:$0xff]
  %v168 = vld [vmem:[%s117 + $0x40] sm:$0xff]
  %v169 = vld [vmem:[%s117 + $0x48] sm:$0xff]
  %v170 = vld [vmem:[%s117 + $0x50] sm:$0xff]
  %v171 = vld [vmem:[%s117 + $0x58] sm:$0xff]
  %v172 = vld [vmem:[%s117 + $0x60] sm:$0xff]
  %v173 = vld [vmem:[%s117 + $0x68] sm:$0xff]
  %v174 = vld [vmem:[%s117 + $0x70] sm:$0xff]
  %v175 = vld [vmem:[%s117 + $0x78] sm:$0xff]
  %v176 = vld [vmem:[%s123] sm:$0x1]
  %v177 = vld [vmem:[%s130] sm:$0xff]
  %v178 = vld [vmem:[%s130 + $0x8] sm:$0xff]
  %v179 = vld [vmem:[%s130 + $0x10] sm:$0xff]
  %v180 = vld [vmem:[%s130 + $0x18] sm:$0xff]
  %v181 = vld [vmem:[%s130 + $0x20] sm:$0xff]
  %v182 = vld [vmem:[%s130 + $0x28] sm:$0xff]
  %v183 = vld [vmem:[%s130 + $0x30] sm:$0xff]
  %v184 = vld [vmem:[%s130 + $0x38] sm:$0xff]
  %v185 = vld [vmem:[%s130 + $0x40] sm:$0xff]
  %v186 = vld [vmem:[%s130 + $0x48] sm:$0xff]
  %v187 = vld [vmem:[%s130 + $0x50] sm:$0xff]
  %v188 = vld [vmem:[%s130 + $0x58] sm:$0xff]
  %v189 = vld [vmem:[%s130 + $0x60] sm:$0xff]
  %v190 = vld [vmem:[%s130 + $0x68] sm:$0xff]
  %v191 = vld [vmem:[%s130 + $0x70] sm:$0xff]
  %v192 = vld [vmem:[%s130 + $0x78] sm:$0xff]
  %v193 = vld [vmem:[%s136] sm:$0x1]
  %vm194 = vcmask 261120
  %v196 = vsel %vm194, %v140, 0
  %v199 = vsel %vm194, %v141, 0
  %v202 = vsel %vm194, %v142, 0
  %v205 = vsel %vm194, %v143, 0
  %v208 = vsel %vm194, %v144, 0
  %v211 = vsel %vm194, %v145, 0
  %v214 = vsel %vm194, %v146, 0
  %v217 = vsel %vm194, %v147, 0
  %v220 = vsel %vm194, %v148, 0
  %v223 = vsel %vm194, %v149, 0
  %v226 = vsel %vm194, %v150, 0
  %v229 = vsel %vm194, %v151, 0
  %v232 = vsel %vm194, %v152, 0
  %v235 = vsel %vm194, %v153, 0
  %v238 = vsel %vm194, %v154, 0
  %v241 = vsel %vm194, %v155, 0
  %243 = vmatprep.subr.mxu0 0.0
  %v244 = vand.u32 %v156, 4294901760
  %245 = vmatpush1.msra.mxu0 %v244
  %246 = vmatprep.subr.mxu0 0.0
  %v247 = vand.u32 %v157, 4294901760
  %248 = vmatpush1.msra.mxu0 %v247
  %249 = vmatprep.subr.mxu0 0.0
  %v250 = vand.u32 %v158, 4294901760
  %251 = vmatpush1.msra.mxu0 %v250
  %252 = vmatprep.subr.mxu0 0.0
  %v253 = vand.u32 %v159, 4294901760
  %254 = vmatpush1.msra.mxu0 %v253
  %255 = vmatprep.subr.mxu0 0.0
  %256 = vmatpush1.msra.mxu0 0.0
  %257 = vmatprep.subr.mxu0 0.0
  %258 = vmatpush1.msra.mxu0 0.0
  %259 = vmatprep.subr.mxu0 0.0
  %260 = vmatpush1.msra.mxu0 0.0
  %261 = vmatprep.subr.mxu0 0.0
  %262 = vmatpush1.msra.mxu0 0.0
  %263 = vmatprep.subr.mxu0 0.0
  %264 = vmatpush1.msra.mxu0 0.0
  %265 = vmatprep.subr.mxu0 0.0
  %266 = vmatpush1.msra.mxu0 0.0
  %267 = vmatprep.subr.mxu0 0.0
  %268 = vmatpush1.msra.mxu0 0.0
  %269 = vmatprep.subr.mxu0 0.0
  %270 = vmatpush1.msra.mxu0 0.0
  %271 = vmatprep.subr.mxu0 0.0
  %272 = vmatpush1.msra.mxu0 0.0
  %273 = vmatprep.subr.mxu0 0.0
  %274 = vmatpush1.msra.mxu0 0.0
  %275 = vmatprep.subr.mxu0 0.0
  %276 = vmatpush1.msra.mxu0 0.0
  %277 = vmatprep.subr.mxu0 0.0
  %278 = vmatpush1.msra.mxu0 0.0
  %279 = vmatprep.subr.mxu0 0.0
  %280 = vmatpush1.msra.mxu0 0.0
  %281 = vmatprep.subr.mxu0 0.0
  %282 = vmatpush1.msra.mxu0 0.0
  %283 = vmatprep.subr.mxu0 0.0
  %284 = vmatpush1.msra.mxu0 0.0
  %285 = vmatprep.subr.mxu0 0.0
  %286 = vmatpush1.msra.mxu0 0.0
  %287 = vmatprep.subr.mxu0 0.0
  %288 = vmatpush1.msra.mxu0 0.0
  %289 = vmatprep.subr.mxu0 0.0
  %290 = vmatpush1.msra.mxu0 0.0
  %291 = vmatprep.subr.mxu0 0.0
  %292 = vmatpush1.msra.mxu0 0.0
  %293 = vmatprep.subr.mxu0 0.0
  %294 = vmatpush1.msra.mxu0 0.0
  %295 = vmatprep.subr.mxu0 0.0
  %296 = vmatpush1.msra.mxu0 0.0
  %297 = vmatprep.subr.mxu0 0.0
  %298 = vmatpush1.msra.mxu0 0.0
  %299 = vmatprep.subr.mxu0 0.0
  %300 = vmatpush1.msra.mxu0 0.0
  %301 = vmatprep.subr.mxu0 0.0
  %302 = vmatpush1.msra.mxu0 0.0
  %303 = vmatprep.subr.mxu0 0.0
  %304 = vmatpush1.msra.mxu0 0.0
  %305 = vmatprep.subr.mxu0 0.0
  %306 = vmatpush1.msra.mxu0 0.0
  %307 = vmatprep.subr.mxu0 0.0
  %308 = vmatpush1.msra.mxu0 0.0
  %309 = vmatprep.subr.mxu0 0.0
  %310 = vmatpush1.msra.mxu0 0.0
  %311 = vmatprep.mubr.f32.mxu0 0.0
  %v312 = vand.u32 %v196, 4294901760
  %v313 = vsub.f32 %v196, %v312
  %v314 = vand.u32 %v313, 4294901760
  %v315 = vsub.f32 %v313, %v314
  %v316 = vand.u32 %v315, 4294901760
  %317 = vmatmul.mubr.f32.gmra.mrb[0].mxu0 %v316
  %v318 = vpop.f32.mrb[0].mxu0
  %v319 = vadd.f32 0.0, %v318
  %v320 = vpop.f32.mrb[0].mxu0
  %321 = vmatprep.mubr.f32.mxu0 0.0
  %v322 = vand.u32 %v199, 4294901760
  %v323 = vsub.f32 %v199, %v322
  %v324 = vand.u32 %v323, 4294901760
  %v325 = vsub.f32 %v323, %v324
  %v326 = vand.u32 %v325, 4294901760
  %327 = vmatmul.mubr.f32.gmra.mrb[0].mxu0 %v326
  %v328 = vpop.f32.mrb[0].mxu0
  %v329 = vadd.f32 0.0, %v328
  %v330 = vpop.f32.mrb[0].mxu0
  %331 = vmatprep.mubr.f32.mxu0 0.0
  %v332 = vand.u32 %v202, 4294901760
  %v333 = vsub.f32 %v202, %v332
  %v334 = vand.u32 %v333, 4294901760
  %v335 = vsub.f32 %v333, %v334
  %v336 = vand.u32 %v335, 4294901760
  %337 = vmatmul.mubr.f32.gmra.mrb[0].mxu0 %v336
  %v338 = vpop.f32.mrb[0].mxu0
  %v339 = vadd.f32 0.0, %v338
  %v340 = vpop.f32.mrb[0].mxu0
  %341 = vmatprep.mubr.f32.mxu0 0.0
  %v342 = vand.u32 %v205, 4294901760
  %v343 = vsub.f32 %v205, %v342
  %v344 = vand.u32 %v343, 4294901760
  %v345 = vsub.f32 %v343, %v344
  %v346 = vand.u32 %v345, 4294901760
  %347 = vmatmul.mubr.f32.gmra.mrb[0].mxu0 %v346
  %v348 = vpop.f32.mrb[0].mxu0
  %v349 = vadd.f32 0.0, %v348
  %v350 = vpop.f32.mrb[0].mxu0
  %351 = vmatprep.mubr.f32.mxu0 0.0
  %v352 = vand.u32 %v208, 4294901760
  %v353 = vsub.f32 %v208, %v352
  %v354 = vand.u32 %v353, 4294901760
  %v355 = vsub.f32 %v353, %v354
  %v356 = vand.u32 %v355, 4294901760
  %357 = vmatmul.mubr.f32.gmra.mrb[0].mxu0 %v356
  %v358 = vpop.f32.mrb[0].mxu0
  %v359 = vadd.f32 0.0, %v358
  %v360 = vpop.f32.mrb[0].mxu0
  %361 = vmatprep.mubr.f32.mxu0 0.0
  %v362 = vand.u32 %v211, 4294901760
  %v363 = vsub.f32 %v211, %v362
  %v364 = vand.u32 %v363, 4294901760
  %v365 = vsub.f32 %v363, %v364
  %v366 = vand.u32 %v365, 4294901760
  %367 = vmatmul.mubr.f32.gmra.mrb[0].mxu0 %v366
  %v368 = vpop.f32.mrb[0].mxu0
  %v369 = vadd.f32 0.0, %v368
  %v370 = vpop.f32.mrb[0].mxu0
  %371 = vmatprep.mubr.f32.mxu0 0.0
  %v372 = vand.u32 %v214, 4294901760
  %v373 = vsub.f32 %v214, %v372
  %v374 = vand.u32 %v373, 4294901760
  %v375 = vsub.f32 %v373, %v374
  %v376 = vand.u32 %v375, 4294901760
  %377 = vmatmul.mubr.f32.gmra.mrb[0].mxu0 %v376
  %v378 = vpop.f32.mrb[0].mxu0
  %v379 = vadd.f32 0.0, %v378
  %v380 = vpop.f32.mrb[0].mxu0
  %381 = vmatprep.mubr.f32.mxu0 0.0
  %v382 = vand.u32 %v217, 4294901760
  %v383 = vsub.f32 %v217, %v382
  %v384 = vand.u32 %v383, 4294901760
  %v385 = vsub.f32 %v383, %v384
  %v386 = vand.u32 %v385, 4294901760
  %387 = vmatmul.mubr.f32.gmra.mrb[0].mxu0 %v386
  %v388 = vpop.f32.mrb[0].mxu0
  %v389 = vadd.f32 0.0, %v388
  %v390 = vpop.f32.mrb[0].mxu0
  %391 = vmatprep.mubr.f32.mxu0 0.0
  %v392 = vand.u32 %v220, 4294901760
  %v393 = vsub.f32 %v220, %v392
  %v394 = vand.u32 %v393, 4294901760
  %v395 = vsub.f32 %v393, %v394
  %v396 = vand.u32 %v395, 4294901760
  %397 = vmatmul.mubr.f32.gmra.mrb[0].mxu0 %v396
  %v398 = vpop.f32.mrb[0].mxu0
  %v399 = vadd.f32 0.0, %v398
  %v400 = vpop.f32.mrb[0].mxu0
  %401 = vmatprep.mubr.f32.mxu0 0.0
  %v402 = vand.u32 %v223, 4294901760
  %v403 = vsub.f32 %v223, %v402
  %v404 = vand.u32 %v403, 4294901760
  %v405 = vsub.f32 %v403, %v404
  %v406 = vand.u32 %v405, 4294901760
  %407 = vmatmul.mubr.f32.gmra.mrb[0].mxu0 %v406
  %v408 = vpop.f32.mrb[0].mxu0
  %v409 = vadd.f32 0.0, %v408
  %v410 = vpop.f32.mrb[0].mxu0
  %411 = vmatprep.mubr.f32.mxu0 0.0
  %v412 = vand.u32 %v226, 4294901760
  %v413 = vsub.f32 %v226, %v412
  %v414 = vand.u32 %v413, 4294901760
  %v415 = vsub.f32 %v413, %v414
  %v416 = vand.u32 %v415, 4294901760
  %417 = vmatmul.mubr.f32.gmra.mrb[0].mxu0 %v416
  %v418 = vpop.f32.mrb[0].mxu0
  %v419 = vadd.f32 0.0, %v418
  %v420 = vpop.f32.mrb[0].mxu0
  %421 = vmatprep.mubr.f32.mxu0 0.0
  %v422 = vand.u32 %v229, 4294901760
  %v423 = vsub.f32 %v229, %v422
  %v424 = vand.u32 %v423, 4294901760
  %v425 = vsub.f32 %v423, %v424
  %v426 = vand.u32 %v425, 4294901760
  %427 = vmatmul.mubr.f32.gmra.mrb[0].mxu0 %v426
  %v428 = vpop.f32.mrb[0].mxu0
  %v429 = vadd.f32 0.0, %v428
  %v430 = vpop.f32.mrb[0].mxu0
  %431 = vmatprep.mubr.f32.mxu0 0.0
  %v432 = vand.u32 %v232, 4294901760
  %v433 = vsub.f32 %v232, %v432
  %v434 = vand.u32 %v433, 4294901760
  %v435 = vsub.f32 %v433, %v434
  %v436 = vand.u32 %v435, 4294901760
  %437 = vmatmul.mubr.f32.gmra.mrb[0].mxu0 %v436
  %v438 = vpop.f32.mrb[0].mxu0
  %v439 = vadd.f32 0.0, %v438
  %v440 = vpop.f32.mrb[0].mxu0
  %441 = vmatprep.mubr.f32.mxu0 0.0
  %v442 = vand.u32 %v235, 4294901760
  %v443 = vsub.f32 %v235, %v442
  %v444 = vand.u32 %v443, 4294901760
  %v445 = vsub.f32 %v443, %v444
  %v446 = vand.u32 %v445, 4294901760
  %447 = vmatmul.mubr.f32.gmra.mrb[0].mxu0 %v446
  %v448 = vpop.f32.mrb[0].mxu0
  %v449 = vadd.f32 0.0, %v448
  %v450 = vpop.f32.mrb[0].mxu0
  %451 = vmatprep.mubr.f32.mxu0 0.0
  %v452 = vand.u32 %v238, 4294901760
  %v453 = vsub.f32 %v238, %v452
  %v454 = vand.u32 %v453, 4294901760
  %v455 = vsub.f32 %v453, %v454
  %v456 = vand.u32 %v455, 4294901760
  %457 = vmatmul.mubr.f32.gmra.mrb[0].mxu0 %v456
  %v458 = vpop.f32.mrb[0].mxu0
  %v459 = vadd.f32 0.0, %v458
  %v460 = vpop.f32.mrb[0].mxu0
  %461 = vmatprep.mubr.f32.mxu0 0.0
  %v462 = vand.u32 %v241, 4294901760
  %v463 = vsub.f32 %v241, %v462
  %v464 = vand.u32 %v463, 4294901760
  %v465 = vsub.f32 %v463, %v464
  %v466 = vand.u32 %v465, 4294901760
  %467 = vmatmul.mubr.f32.gmra.mrb[0].mxu0 %v466
  %v468 = vpop.f32.mrb[0].mxu0
  %v469 = vadd.f32 0.0, %v468
  %v470 = vpop.f32.mrb[0].mxu0
  %471 = vdwg.mxu0
  %472 = vmatprep.subr.mxu0 0.0
  %v473 = vand.u32 %v156, 4294901760
  %v474 = vsub.f32 %v156, %v473
  %v475 = vand.u32 %v474, 4294901760
  %v476 = vsub.f32 %v474, %v475
  %v477 = vand.u32 %v476, 4294901760
  %478 = vmatpush1.msra.mxu0 %v477
  %479 = vmatprep.subr.mxu0 0.0
  %v480 = vand.u32 %v157, 4294901760
  %v481 = vsub.f32 %v157, %v480
  %v482 = vand.u32 %v481, 4294901760
  %v483 = vsub.f32 %v481, %v482
  %v484 = vand.u32 %v483, 4294901760
  %485 = vmatpush1.msra.mxu0 %v484
  %486 = vmatprep.subr.mxu0 0.0
  %v487 = vand.u32 %v158, 4294901760
  %v488 = vsub.f32 %v158, %v487
  %v489 = vand.u32 %v488, 4294901760
  %v490 = vsub.f32 %v488, %v489
  %v491 = vand.u32 %v490, 4294901760
  %492 = vmatpush1.msra.mxu0 %v491
  %493 = vmatprep.subr.mxu0 0.0
  %v494 = vand.u32 %v159, 4294901760
  %v495 = vsub.f32 %v159, %v494
  %v496 = vand.u32 %v495, 4294901760
  %v497 = vsub.f32 %v495, %v496
  %v498 = vand.u32 %v497, 4294901760
  %499 = vmatpush1.msra.mxu0 %v498
  %500 = vmatprep.subr.mxu0 0.0
  %501 = vmatpush1.msra.mxu0 0.0
  %502 = vmatprep.subr.mxu0 0.0
  %503 = vmatpush1.msra.mxu0 0.0
  %504 = vmatprep.subr.mxu0 0.0
  %505 = vmatpush1.msra.mxu0 0.0
  %506 = vmatprep.subr.mxu0 0.0
  %507 = vmatpush1.msra.mxu0 0.0
  %508 = vmatprep.subr.mxu0 0.0
  %509 = vmatpush1.msra.mxu0 0.0
  %510 = vmatprep.subr.mxu0 0.0
  %511 = vmatpush1.msra.mxu0 0.0
  %512 = vmatprep.subr.mxu0 0.0
  %513 = vmatpush1.msra.mxu0 0.0
  %514 = vmatprep.subr.mxu0 0.0
  %515 = vmatpush1.msra.mxu0 0.0
  %516 = vmatprep.subr.mxu0 0.0
  %517 = vmatpush1.msra.mxu0 0.0
  %518 = vmatprep.subr.mxu0 0.0
  %519 = vmatpush1.msra.mxu0 0.0
  %520 = vmatprep.subr.mxu0 0.0
  %521 = vmatpush1.msra.mxu0 0.0
  %522 = vmatprep.subr.mxu0 0.0
  %523 = vmatpush1.msra.mxu0 0.0
  %524 = vmatprep.subr.mxu0 0.0
  %525 = vmatpush1.msra.mxu0 0.0
  %526 = vmatprep.subr.mxu0 0.0
  %527 = vmatpush1.msra.mxu0 0.0
  %528 = vmatprep.subr.mxu0 0.0
  %529 = vmatpush1.msra.mxu0 0.0
  %530 = vmatprep.subr.mxu0 0.0
  %531 = vmatpush1.msra.mxu0 0.0
  %532 = vmatprep.subr.mxu0 0.0
  %533 = vmatpush1.msra.mxu0 0.0
  %534 = vmatprep.subr.mxu0 0.0
  %535 = vmatpush1.msra.mxu0 0.0
  %536 = vmatprep.subr.mxu0 0.0
  %537 = vmatpush1.msra.mxu0 0.0
  %538 = vmatprep.subr.mxu0 0.0
  %539 = vmatpush1.msra.mxu0 0.0
  %540 = vmatprep.subr.mxu0 0.0
  %541 = vmatpush1.msra.mxu0 0.0
  %542 = vmatprep.subr.mxu0 0.0
  %543 = vmatpush1.msra.mxu0 0.0
  %544 = vmatprep.subr.mxu0 0.0
  %545 = vmatpush1.msra.mxu0 0.0
  %546 = vmatprep.subr.mxu0 0.0
  %547 = vmatpush1.msra.mxu0 0.0
  %548 = vmatprep.subr.mxu0 0.0
  %549 = vmatpush1.msra.mxu0 0.0
  %550 = vmatprep.subr.mxu0 0.0
  %551 = vmatpush1.msra.mxu0 0.0
  %552 = vmatprep.subr.mxu0 0.0
  %553 = vmatpush1.msra.mxu0 0.0
  %554 = vmatprep.subr.mxu0 0.0
  %555 = vmatpush1.msra.mxu0 0.0
  %556 = vmatprep.mubr.f32.mxu0 0.0
  %v557 = vand.u32 %v196, 4294901760
  %558 = vmatmul.mubr.f32.gmra.mrb[0].mxu0 %v557
  %v559 = vpop.f32.mrb[0].mxu0
  %v560 = vadd.f32 %v319, %v559
  %v561 = vpop.f32.mrb[0].mxu0
  %562 = vmatprep.mubr.f32.mxu0 0.0
  %v563 = vand.u32 %v199, 4294901760
  %564 = vmatmul.mubr.f32.gmra.mrb[0].mxu0 %v563
  %v565 = vpop.f32.mrb[0].mxu0
  %v566 = vadd.f32 %v329, %v565
  %v567 = vpop.f32.mrb[0].mxu0
  %568 = vmatprep.mubr.f32.mxu0 0.0
  %v569 = vand.u32 %v202, 4294901760
  %570 = vmatmul.mubr.f32.gmra.mrb[0].mxu0 %v569
  %v571 = vpop.f32.mrb[0].mxu0
  %v572 = vadd.f32 %v339, %v571
  %v573 = vpop.f32.mrb[0].mxu0
  %574 = vmatprep.mubr.f32.mxu0 0.0
  %v575 = vand.u32 %v205, 4294901760
  %576 = vmatmul.mubr.f32.gmra.mrb[0].mxu0 %v575
  %v577 = vpop.f32.mrb[0].mxu0
  %v578 = vadd.f32 %v349, %v577
  %v579 = vpop.f32.mrb[0].mxu0
  %580 = vmatprep.mubr.f32.mxu0 0.0
  %v581 = vand.u32 %v208, 4294901760
  %582 = vmatmul.mubr.f32.gmra.mrb[0].mxu0 %v581
  %v583 = vpop.f32.mrb[0].mxu0
  %v584 = vadd.f32 %v359, %v583
  %v585 = vpop.f32.mrb[0].mxu0
  %586 = vmatprep.mubr.f32.mxu0 0.0
  %v587 = vand.u32 %v211, 4294901760
  %588 = vmatmul.mubr.f32.gmra.mrb[0].mxu0 %v587
  %v589 = vpop.f32.mrb[0].mxu0
  %v590 = vadd.f32 %v369, %v589
  %v591 = vpop.f32.mrb[0].mxu0
  %592 = vmatprep.mubr.f32.mxu0 0.0
  %v593 = vand.u32 %v214, 4294901760
  %594 = vmatmul.mubr.f32.gmra.mrb[0].mxu0 %v593
  %v595 = vpop.f32.mrb[0].mxu0
  %v596 = vadd.f32 %v379, %v595
  %v597 = vpop.f32.mrb[0].mxu0
  %598 = vmatprep.mubr.f32.mxu0 0.0
  %v599 = vand.u32 %v217, 4294901760
  %600 = vmatmul.mubr.f32.gmra.mrb[0].mxu0 %v599
  %v601 = vpop.f32.mrb[0].mxu0
  %v602 = vadd.f32 %v389, %v601
  %v603 = vpop.f32.mrb[0].mxu0
  %604 = vmatprep.mubr.f32.mxu0 0.0
  %v605 = vand.u32 %v220, 4294901760
  %606 = vmatmul.mubr.f32.gmra.mrb[0].mxu0 %v605
  %v607 = vpop.f32.mrb[0].mxu0
  %v608 = vadd.f32 %v399, %v607
  %v609 = vpop.f32.mrb[0].mxu0
  %610 = vmatprep.mubr.f32.mxu0 0.0
  %v611 = vand.u32 %v223, 4294901760
  %612 = vmatmul.mubr.f32.gmra.mrb[0].mxu0 %v611
  %v613 = vpop.f32.mrb[0].mxu0
  %v614 = vadd.f32 %v409, %v613
  %v615 = vpop.f32.mrb[0].mxu0
  %616 = vmatprep.mubr.f32.mxu0 0.0
  %v617 = vand.u32 %v226, 4294901760
  %618 = vmatmul.mubr.f32.gmra.mrb[0].mxu0 %v617
  %v619 = vpop.f32.mrb[0].mxu0
  %v620 = vadd.f32 %v419, %v619
  %v621 = vpop.f32.mrb[0].mxu0
  %622 = vmatprep.mubr.f32.mxu0 0.0
  %v623 = vand.u32 %v229, 4294901760
  %624 = vmatmul.mubr.f32.gmra.mrb[0].mxu0 %v623
  %v625 = vpop.f32.mrb[0].mxu0
  %v626 = vadd.f32 %v429, %v625
  %v627 = vpop.f32.mrb[0].mxu0
  %628 = vmatprep.mubr.f32.mxu0 0.0
  %v629 = vand.u32 %v232, 4294901760
  %630 = vmatmul.mubr.f32.gmra.mrb[0].mxu0 %v629
  %v631 = vpop.f32.mrb[0].mxu0
  %v632 = vadd.f32 %v439, %v631
  %v633 = vpop.f32.mrb[0].mxu0
  %634 = vmatprep.mubr.f32.mxu0 0.0
  %v635 = vand.u32 %v235, 4294901760
  %636 = vmatmul.mubr.f32.gmra.mrb[0].mxu0 %v635
  %v637 = vpop.f32.mrb[0].mxu0
  %v638 = vadd.f32 %v449, %v637
  %v639 = vpop.f32.mrb[0].mxu0
  %640 = vmatprep.mubr.f32.mxu0 0.0
  %v641 = vand.u32 %v238, 4294901760
  %642 = vmatmul.mubr.f32.gmra.mrb[0].mxu0 %v641
  %v643 = vpop.f32.mrb[0].mxu0
  %v644 = vadd.f32 %v459, %v643
  %v645 = vpop.f32.mrb[0].mxu0
  %646 = vmatprep.mubr.f32.mxu0 0.0
  %v647 = vand.u32 %v241, 4294901760
  %648 = vmatmul.mubr.f32.gmra.mrb[0].mxu0 %v647
  %v649 = vpop.f32.mrb[0].mxu0
  %v650 = vadd.f32 %v469, %v649
  %v651 = vpop.f32.mrb[0].mxu0
  %652 = vdwg.mxu0
  %653 = vmatprep.subr.mxu0 0.0
  %v654 = vand.u32 %v156, 4294901760
  %v655 = vsub.f32 %v156, %v654
  %656 = vmatpush1.msra.mxu0 %v655
  %657 = vmatprep.subr.mxu0 0.0
  %v658 = vand.u32 %v157, 4294901760
  %v659 = vsub.f32 %v157, %v658
  %660 = vmatpush1.msra.mxu0 %v659
  %661 = vmatprep.subr.mxu0 0.0
  %v662 = vand.u32 %v158, 4294901760
  %v663 = vsub.f32 %v158, %v662
  %664 = vmatpush1.msra.mxu0 %v663
  %665 = vmatprep.subr.mxu0 0.0
  %v666 = vand.u32 %v159, 4294901760
  %v667 = vsub.f32 %v159, %v666
  %668 = vmatpush1.msra.mxu0 %v667
  %669 = vmatprep.subr.mxu0 0.0
  %670 = vmatpush1.msra.mxu0 0.0
  %671 = vmatprep.subr.mxu0 0.0
  %672 = vmatpush1.msra.mxu0 0.0
  %673 = vmatprep.subr.mxu0 0.0
  %674 = vmatpush1.msra.mxu0 0.0
  %675 = vmatprep.subr.mxu0 0.0
  %676 = vmatpush1.msra.mxu0 0.0
  %677 = vmatprep.subr.mxu0 0.0
  %678 = vmatpush1.msra.mxu0 0.0
  %679 = vmatprep.subr.mxu0 0.0
  %680 = vmatpush1.msra.mxu0 0.0
  %681 = vmatprep.subr.mxu0 0.0
  %682 = vmatpush1.msra.mxu0 0.0
  %683 = vmatprep.subr.mxu0 0.0
  %684 = vmatpush1.msra.mxu0 0.0
  %685 = vmatprep.subr.mxu0 0.0
  %686 = vmatpush1.msra.mxu0 0.0
  %687 = vmatprep.subr.mxu0 0.0
  %688 = vmatpush1.msra.mxu0 0.0
  %689 = vmatprep.subr.mxu0 0.0
  %690 = vmatpush1.msra.mxu0 0.0
  %691 = vmatprep.subr.mxu0 0.0
  %692 = vmatpush1.msra.mxu0 0.0
  %693 = vmatprep.subr.mxu0 0.0
  %694 = vmatpush1.msra.mxu0 0.0
  %695 = vmatprep.subr.mxu0 0.0
  %696 = vmatpush1.msra.mxu0 0.0
  %697 = vmatprep.subr.mxu0 0.0
  %698 = vmatpush1.msra.mxu0 0.0
  %699 = vmatprep.subr.mxu0 0.0
  %700 = vmatpush1.msra.mxu0 0.0
  %701 = vmatprep.subr.mxu0 0.0
  %702 = vmatpush1.msra.mxu0 0.0
  %703 = vmatprep.subr.mxu0 0.0
  %704 = vmatpush1.msra.mxu0 0.0
  %705 = vmatprep.subr.mxu0 0.0
  %706 = vmatpush1.msra.mxu0 0.0
  %707 = vmatprep.subr.mxu0 0.0
  %708 = vmatpush1.msra.mxu0 0.0
  %709 = vmatprep.subr.mxu0 0.0
  %710 = vmatpush1.msra.mxu0 0.0
  %711 = vmatprep.subr.mxu0 0.0
  %712 = vmatpush1.msra.mxu0 0.0
  %713 = vmatprep.subr.mxu0 0.0
  %714 = vmatpush1.msra.mxu0 0.0
  %715 = vmatprep.subr.mxu0 0.0
  %716 = vmatpush1.msra.mxu0 0.0
  %717 = vmatprep.subr.mxu0 0.0
  %718 = vmatpush1.msra.mxu0 0.0
  %719 = vmatprep.subr.mxu0 0.0
  %720 = vmatpush1.msra.mxu0 0.0
  %721 = vmatprep.subr.mxu0 0.0
  %722 = vmatpush1.msra.mxu0 0.0
  %723 = vmatprep.subr.mxu0 0.0
  %724 = vmatpush1.msra.mxu0 0.0
  %725 = vmatprep.mubr.f32.mxu0 0.0
  %v726 = vand.u32 %v196, 4294901760
  %v727 = vsub.f32 %v196, %v726
  %728 = vmatmul.mubr.f32.gmra.mrb[0].mxu0 %v727
  %v729 = vpop.f32.mrb[0].mxu0
  %v730 = vadd.f32 %v560, %v729
  %v731 = vpop.f32.mrb[0].mxu0
  %732 = vmatprep.mubr.f32.mxu0 0.0
  %v733 = vand.u32 %v199, 4294901760
  %v734 = vsub.f32 %v199, %v733
  %735 = vmatmul.mubr.f32.gmra.mrb[0].mxu0 %v734
  %v736 = vpop.f32.mrb[0].mxu0
  %v737 = vadd.f32 %v566, %v736
  %v738 = vpop.f32.mrb[0].mxu0
  %739 = vmatprep.mubr.f32.mxu0 0.0
  %v740 = vand.u32 %v202, 4294901760
  %v741 = vsub.f32 %v202, %v740
  %742 = vmatmul.mubr.f32.gmra.mrb[0].mxu0 %v741
  %v743 = vpop.f32.mrb[0].mxu0
  %v744 = vadd.f32 %v572, %v743
  %v745 = vpop.f32.mrb[0].mxu0
  %746 = vmatprep.mubr.f32.mxu0 0.0
  %v747 = vand.u32 %v205, 4294901760
  %v748 = vsub.f32 %v205, %v747
  %749 = vmatmul.mubr.f32.gmra.mrb[0].mxu0 %v748
  %v750 = vpop.f32.mrb[0].mxu0
  %v751 = vadd.f32 %v578, %v750
  %v752 = vpop.f32.mrb[0].mxu0
  %753 = vmatprep.mubr.f32.mxu0 0.0
  %v754 = vand.u32 %v208, 4294901760
  %v755 = vsub.f32 %v208, %v754
  %756 = vmatmul.mubr.f32.gmra.mrb[0].mxu0 %v755
  %v757 = vpop.f32.mrb[0].mxu0
  %v758 = vadd.f32 %v584, %v757
  %v759 = vpop.f32.mrb[0].mxu0
  %760 = vmatprep.mubr.f32.mxu0 0.0
  %v761 = vand.u32 %v211, 4294901760
  %v762 = vsub.f32 %v211, %v761
  %763 = vmatmul.mubr.f32.gmra.mrb[0].mxu0 %v762
  %v764 = vpop.f32.mrb[0].mxu0
  %v765 = vadd.f32 %v590, %v764
  %v766 = vpop.f32.mrb[0].mxu0
  %767 = vmatprep.mubr.f32.mxu0 0.0
  %v768 = vand.u32 %v214, 4294901760
  %v769 = vsub.f32 %v214, %v768
  %770 = vmatmul.mubr.f32.gmra.mrb[0].mxu0 %v769
  %v771 = vpop.f32.mrb[0].mxu0
  %v772 = vadd.f32 %v596, %v771
  %v773 = vpop.f32.mrb[0].mxu0
  %774 = vmatprep.mubr.f32.mxu0 0.0
  %v775 = vand.u32 %v217, 4294901760
  %v776 = vsub.f32 %v217, %v775
  %777 = vmatmul.mubr.f32.gmra.mrb[0].mxu0 %v776
  %v778 = vpop.f32.mrb[0].mxu0
  %v779 = vadd.f32 %v602, %v778
  %v780 = vpop.f32.mrb[0].mxu0
  %781 = vmatprep.mubr.f32.mxu0 0.0
  %v782 = vand.u32 %v220, 4294901760
  %v783 = vsub.f32 %v220, %v782
  %784 = vmatmul.mubr.f32.gmra.mrb[0].mxu0 %v783
  %v785 = vpop.f32.mrb[0].mxu0
  %v786 = vadd.f32 %v608, %v785
  %v787 = vpop.f32.mrb[0].mxu0
  %788 = vmatprep.mubr.f32.mxu0 0.0
  %v789 = vand.u32 %v223, 4294901760
  %v790 = vsub.f32 %v223, %v789
  %791 = vmatmul.mubr.f32.gmra.mrb[0].mxu0 %v790
  %v792 = vpop.f32.mrb[0].mxu0
  %v793 = vadd.f32 %v614, %v792
  %v794 = vpop.f32.mrb[0].mxu0
  %795 = vmatprep.mubr.f32.mxu0 0.0
  %v796 = vand.u32 %v226, 4294901760
  %v797 = vsub.f32 %v226, %v796
  %798 = vmatmul.mubr.f32.gmra.mrb[0].mxu0 %v797
  %v799 = vpop.f32.mrb[0].mxu0
  %v800 = vadd.f32 %v620, %v799
  %v801 = vpop.f32.mrb[0].mxu0
  %802 = vmatprep.mubr.f32.mxu0 0.0
  %v803 = vand.u32 %v229, 4294901760
  %v804 = vsub.f32 %v229, %v803
  %805 = vmatmul.mubr.f32.gmra.mrb[0].mxu0 %v804
  %v806 = vpop.f32.mrb[0].mxu0
  %v807 = vadd.f32 %v626, %v806
  %v808 = vpop.f32.mrb[0].mxu0
  %809 = vmatprep.mubr.f32.mxu0 0.0
  %v810 = vand.u32 %v232, 4294901760
  %v811 = vsub.f32 %v232, %v810
  %812 = vmatmul.mubr.f32.gmra.mrb[0].mxu0 %v811
  %v813 = vpop.f32.mrb[0].mxu0
  %v814 = vadd.f32 %v632, %v813
  %v815 = vpop.f32.mrb[0].mxu0
  %816 = vmatprep.mubr.f32.mxu0 0.0
  %v817 = vand.u32 %v235, 4294901760
  %v818 = vsub.f32 %v235, %v817
  %819 = vmatmul.mubr.f32.gmra.mrb[0].mxu0 %v818
  %v820 = vpop.f32.mrb[0].mxu0
  %v821 = vadd.f32 %v638, %v820
  %v822 = vpop.f32.mrb[0].mxu0
  %823 = vmatprep.mubr.f32.mxu0 0.0
  %v824 = vand.u32 %v238, 4294901760
  %v825 = vsub.f32 %v238, %v824
  %826 = vmatmul.mubr.f32.gmra.mrb[0].mxu0 %v825
  %v827 = vpop.f32.mrb[0].mxu0
  %v828 = vadd.f32 %v644, %v827
  %v829 = vpop.f32.mrb[0].mxu0
  %830 = vmatprep.mubr.f32.mxu0 0.0
  %v831 = vand.u32 %v241, 4294901760
  %v832 = vsub.f32 %v241, %v831
  %833 = vmatmul.mubr.f32.gmra.mrb[0].mxu0 %v832
  %v834 = vpop.f32.mrb[0].mxu0
  %v835 = vadd.f32 %v650, %v834
  %v836 = vpop.f32.mrb[0].mxu0
  %837 = vdwg.mxu0
  %838 = vmatprep.subr.mxu0 0.0
  %v839 = vand.u32 %v156, 4294901760
  %840 = vmatpush1.msra.mxu0 %v839
  %841 = vmatprep.subr.mxu0 0.0
  %v842 = vand.u32 %v157, 4294901760
  %843 = vmatpush1.msra.mxu0 %v842
  %844 = vmatprep.subr.mxu0 0.0
  %v845 = vand.u32 %v158, 4294901760
  %846 = vmatpush1.msra.mxu0 %v845
  %847 = vmatprep.subr.mxu0 0.0
  %v848 = vand.u32 %v159, 4294901760
  %849 = vmatpush1.msra.mxu0 %v848
  %850 = vmatprep.subr.mxu0 0.0
  %851 = vmatpush1.msra.mxu0 0.0
  %852 = vmatprep.subr.mxu0 0.0
  %853 = vmatpush1.msra.mxu0 0.0
  %854 = vmatprep.subr.mxu0 0.0
  %855 = vmatpush1.msra.mxu0 0.0
  %856 = vmatprep.subr.mxu0 0.0
  %857 = vmatpush1.msra.mxu0 0.0
  %858 = vmatprep.subr.mxu0 0.0
  %859 = vmatpush1.msra.mxu0 0.0
  %860 = vmatprep.subr.mxu0 0.0
  %861 = vmatpush1.msra.mxu0 0.0
  %862 = vmatprep.subr.mxu0 0.0
  %863 = vmatpush1.msra.mxu0 0.0
  %864 = vmatprep.subr.mxu0 0.0
  %865 = vmatpush1.msra.mxu0 0.0
  %866 = vmatprep.subr.mxu0 0.0
  %867 = vmatpush1.msra.mxu0 0.0
  %868 = vmatprep.subr.mxu0 0.0
  %869 = vmatpush1.msra.mxu0 0.0
  %870 = vmatprep.subr.mxu0 0.0
  %871 = vmatpush1.msra.mxu0 0.0
  %872 = vmatprep.subr.mxu0 0.0
  %873 = vmatpush1.msra.mxu0 0.0
  %874 = vmatprep.subr.mxu0 0.0
  %875 = vmatpush1.msra.mxu0 0.0
  %876 = vmatprep.subr.mxu0 0.0
  %877 = vmatpush1.msra.mxu0 0.0
  %878 = vmatprep.subr.mxu0 0.0
  %879 = vmatpush1.msra.mxu0 0.0
  %880 = vmatprep.subr.mxu0 0.0
  %881 = vmatpush1.msra.mxu0 0.0
  %882 = vmatprep.subr.mxu0 0.0
  %883 = vmatpush1.msra.mxu0 0.0
  %884 = vmatprep.subr.mxu0 0.0
  %885 = vmatpush1.msra.mxu0 0.0
  %886 = vmatprep.subr.mxu0 0.0
  %887 = vmatpush1.msra.mxu0 0.0
  %888 = vmatprep.subr.mxu0 0.0
  %889 = vmatpush1.msra.mxu0 0.0
  %890 = vmatprep.subr.mxu0 0.0
  %891 = vmatpush1.msra.mxu0 0.0
  %892 = vmatprep.subr.mxu0 0.0
  %893 = vmatpush1.msra.mxu0 0.0
  %894 = vmatprep.subr.mxu0 0.0
  %895 = vmatpush1.msra.mxu0 0.0
  %896 = vmatprep.subr.mxu0 0.0
  %897 = vmatpush1.msra.mxu0 0.0
  %898 = vmatprep.subr.mxu0 0.0
  %899 = vmatpush1.msra.mxu0 0.0
  %900 = vmatprep.subr.mxu0 0.0
  %901 = vmatpush1.msra.mxu0 0.0
  %902 = vmatprep.subr.mxu0 0.0
  %903 = vmatpush1.msra.mxu0 0.0
  %904 = vmatprep.subr.mxu0 0.0
  %905 = vmatpush1.msra.mxu0 0.0
  %906 = vmatprep.mubr.f32.mxu0 0.0
  %v907 = vand.u32 %v196, 4294901760
  %v908 = vsub.f32 %v196, %v907
  %v909 = vand.u32 %v908, 4294901760
  %910 = vmatmul.mubr.f32.gmra.mrb[0].mxu0 %v909
  %v911 = vpop.f32.mrb[0].mxu0
  %v912 = vadd.f32 %v730, %v911
  %v913 = vpop.f32.mrb[0].mxu0
  %914 = vmatprep.mubr.f32.mxu0 0.0
  %v915 = vand.u32 %v199, 4294901760
  %v916 = vsub.f32 %v199, %v915
  %v917 = vand.u32 %v916, 4294901760
  %918 = vmatmul.mubr.f32.gmra.mrb[0].mxu0 %v917
  %v919 = vpop.f32.mrb[0].mxu0
  %v920 = vadd.f32 %v737, %v919
  %v921 = vpop.f32.mrb[0].mxu0
  %922 = vmatprep.mubr.f32.mxu0 0.0
  %v923 = vand.u32 %v202, 4294901760
  %v924 = vsub.f32 %v202, %v923
  %v925 = vand.u32 %v924, 4294901760
  %926 = vmatmul.mubr.f32.gmra.mrb[0].mxu0 %v925
  %v927 = vpop.f32.mrb[0].mxu0
  %v928 = vadd.f32 %v744, %v927
  %v929 = vpop.f32.mrb[0].mxu0
  %930 = vmatprep.mubr.f32.mxu0 0.0
  %v931 = vand.u32 %v205, 4294901760
  %v932 = vsub.f32 %v205, %v931
  %v933 = vand.u32 %v932, 4294901760
  %934 = vmatmul.mubr.f32.gmra.mrb[0].mxu0 %v933
  %v935 = vpop.f32.mrb[0].mxu0
  %v936 = vadd.f32 %v751, %v935
  %v937 = vpop.f32.mrb[0].mxu0
  %938 = vmatprep.mubr.f32.mxu0 0.0
  %v939 = vand.u32 %v208, 4294901760
  %v940 = vsub.f32 %v208, %v939
  %v941 = vand.u32 %v940, 4294901760
  %942 = vmatmul.mubr.f32.gmra.mrb[0].mxu0 %v941
  %v943 = vpop.f32.mrb[0].mxu0
  %v944 = vadd.f32 %v758, %v943
  %v945 = vpop.f32.mrb[0].mxu0
  %946 = vmatprep.mubr.f32.mxu0 0.0
  %v947 = vand.u32 %v211, 4294901760
  %v948 = vsub.f32 %v211, %v947
  %v949 = vand.u32 %v948, 4294901760
  %950 = vmatmul.mubr.f32.gmra.mrb[0].mxu0 %v949
  %v951 = vpop.f32.mrb[0].mxu0
  %v952 = vadd.f32 %v765, %v951
  %v953 = vpop.f32.mrb[0].mxu0
  %954 = vmatprep.mubr.f32.mxu0 0.0
  %v955 = vand.u32 %v214, 4294901760
  %v956 = vsub.f32 %v214, %v955
  %v957 = vand.u32 %v956, 4294901760
  %958 = vmatmul.mubr.f32.gmra.mrb[0].mxu0 %v957
  %v959 = vpop.f32.mrb[0].mxu0
  %v960 = vadd.f32 %v772, %v959
  %v961 = vpop.f32.mrb[0].mxu0
  %962 = vmatprep.mubr.f32.mxu0 0.0
  %v963 = vand.u32 %v217, 4294901760
  %v964 = vsub.f32 %v217, %v963
  %v965 = vand.u32 %v964, 4294901760
  %966 = vmatmul.mubr.f32.gmra.mrb[0].mxu0 %v965
  %v967 = vpop.f32.mrb[0].mxu0
  %v968 = vadd.f32 %v779, %v967
  %v969 = vpop.f32.mrb[0].mxu0
  %970 = vmatprep.mubr.f32.mxu0 0.0
  %v971 = vand.u32 %v220, 4294901760
  %v972 = vsub.f32 %v220, %v971
  %v973 = vand.u32 %v972, 4294901760
  %974 = vmatmul.mubr.f32.gmra.mrb[0].mxu0 %v973
  %v975 = vpop.f32.mrb[0].mxu0
  %v976 = vadd.f32 %v786, %v975
  %v977 = vpop.f32.mrb[0].mxu0
  %978 = vmatprep.mubr.f32.mxu0 0.0
  %v979 = vand.u32 %v223, 4294901760
  %v980 = vsub.f32 %v223, %v979
  %v981 = vand.u32 %v980, 4294901760
  %982 = vmatmul.mubr.f32.gmra.mrb[0].mxu0 %v981
  %v983 = vpop.f32.mrb[0].mxu0
  %v984 = vadd.f32 %v793, %v983
  %v985 = vpop.f32.mrb[0].mxu0
  %986 = vmatprep.mubr.f32.mxu0 0.0
  %v987 = vand.u32 %v226, 4294901760
  %v988 = vsub.f32 %v226, %v987
  %v989 = vand.u32 %v988, 4294901760
  %990 = vmatmul.mubr.f32.gmra.mrb[0].mxu0 %v989
  %v991 = vpop.f32.mrb[0].mxu0
  %v992 = vadd.f32 %v800, %v991
  %v993 = vpop.f32.mrb[0].mxu0
  %994 = vmatprep.mubr.f32.mxu0 0.0
  %v995 = vand.u32 %v229, 4294901760
  %v996 = vsub.f32 %v229, %v995
  %v997 = vand.u32 %v996, 4294901760
  %998 = vmatmul.mubr.f32.gmra.mrb[0].mxu0 %v997
  %v999 = vpop.f32.mrb[0].mxu0
  %v1000 = vadd.f32 %v807, %v999
  %v1001 = vpop.f32.mrb[0].mxu0
  %1002 = vmatprep.mubr.f32.mxu0 0.0
  %v1003 = vand.u32 %v232, 4294901760
  %v1004 = vsub.f32 %v232, %v1003
  %v1005 = vand.u32 %v1004, 4294901760
  %1006 = vmatmul.mubr.f32.gmra.mrb[0].mxu0 %v1005
  %v1007 = vpop.f32.mrb[0].mxu0
  %v1008 = vadd.f32 %v814, %v1007
  %v1009 = vpop.f32.mrb[0].mxu0
  %1010 = vmatprep.mubr.f32.mxu0 0.0
  %v1011 = vand.u32 %v235, 4294901760
  %v1012 = vsub.f32 %v235, %v1011
  %v1013 = vand.u32 %v1012, 4294901760
  %1014 = vmatmul.mubr.f32.gmra.mrb[0].mxu0 %v1013
  %v1015 = vpop.f32.mrb[0].mxu0
  %v1016 = vadd.f32 %v821, %v1015
  %v1017 = vpop.f32.mrb[0].mxu0
  %1018 = vmatprep.mubr.f32.mxu0 0.0
  %v1019 = vand.u32 %v238, 4294901760
  %v1020 = vsub.f32 %v238, %v1019
  %v1021 = vand.u32 %v1020, 4294901760
  %1022 = vmatmul.mubr.f32.gmra.mrb[0].mxu0 %v1021
  %v1023 = vpop.f32.mrb[0].mxu0
  %v1024 = vadd.f32 %v828, %v1023
  %v1025 = vpop.f32.mrb[0].mxu0
  %1026 = vmatprep.mubr.f32.mxu0 0.0
  %v1027 = vand.u32 %v241, 4294901760
  %v1028 = vsub.f32 %v241, %v1027
  %v1029 = vand.u32 %v1028, 4294901760
  %1030 = vmatmul.mubr.f32.gmra.mrb[0].mxu0 %v1029
  %v1031 = vpop.f32.mrb[0].mxu0
  %v1032 = vadd.f32 %v835, %v1031
  %v1033 = vpop.f32.mrb[0].mxu0
  %1034 = vdwg.mxu0
  %1035 = vmatprep.subr.mxu0 0.0
  %v1036 = vand.u32 %v156, 4294901760
  %v1037 = vsub.f32 %v156, %v1036
  %v1038 = vand.u32 %v1037, 4294901760
  %1039 = vmatpush1.msra.mxu0 %v1038
  %1040 = vmatprep.subr.mxu0 0.0
  %v1041 = vand.u32 %v157, 4294901760
  %v1042 = vsub.f32 %v157, %v1041
  %v1043 = vand.u32 %v1042, 4294901760
  %1044 = vmatpush1.msra.mxu0 %v1043
  %1045 = vmatprep.subr.mxu0 0.0
  %v1046 = vand.u32 %v158, 4294901760
  %v1047 = vsub.f32 %v158, %v1046
  %v1048 = vand.u32 %v1047, 4294901760
  %1049 = vmatpush1.msra.mxu0 %v1048
  %1050 = vmatprep.subr.mxu0 0.0
  %v1051 = vand.u32 %v159, 4294901760
  %v1052 = vsub.f32 %v159, %v1051
  %v1053 = vand.u32 %v1052, 4294901760
  %1054 = vmatpush1.msra.mxu0 %v1053
  %1055 = vmatprep.subr.mxu0 0.0
  %1056 = vmatpush1.msra.mxu0 0.0
  %1057 = vmatprep.subr.mxu0 0.0
  %1058 = vmatpush1.msra.mxu0 0.0
  %1059 = vmatprep.subr.mxu0 0.0
  %1060 = vmatpush1.msra.mxu0 0.0
  %1061 = vmatprep.subr.mxu0 0.0
  %1062 = vmatpush1.msra.mxu0 0.0
  %1063 = vmatprep.subr.mxu0 0.0
  %1064 = vmatpush1.msra.mxu0 0.0
  %1065 = vmatprep.subr.mxu0 0.0
  %1066 = vmatpush1.msra.mxu0 0.0
  %1067 = vmatprep.subr.mxu0 0.0
  %1068 = vmatpush1.msra.mxu0 0.0
  %1069 = vmatprep.subr.mxu0 0.0
  %1070 = vmatpush1.msra.mxu0 0.0
  %1071 = vmatprep.subr.mxu0 0.0
  %1072 = vmatpush1.msra.mxu0 0.0
  %1073 = vmatprep.subr.mxu0 0.0
  %1074 = vmatpush1.msra.mxu0 0.0
  %1075 = vmatprep.subr.mxu0 0.0
  %1076 = vmatpush1.msra.mxu0 0.0
  %1077 = vmatprep.subr.mxu0 0.0
  %1078 = vmatpush1.msra.mxu0 0.0
  %1079 = vmatprep.subr.mxu0 0.0
  %1080 = vmatpush1.msra.mxu0 0.0
  %1081 = vmatprep.subr.mxu0 0.0
  %1082 = vmatpush1.msra.mxu0 0.0
  %1083 = vmatprep.subr.mxu0 0.0
  %1084 = vmatpush1.msra.mxu0 0.0
  %1085 = vmatprep.subr.mxu0 0.0
  %1086 = vmatpush1.msra.mxu0 0.0
  %1087 = vmatprep.subr.mxu0 0.0
  %1088 = vmatpush1.msra.mxu0 0.0
  %1089 = vmatprep.subr.mxu0 0.0
  %1090 = vmatpush1.msra.mxu0 0.0
  %1091 = vmatprep.subr.mxu0 0.0
  %1092 = vmatpush1.msra.mxu0 0.0
  %1093 = vmatprep.subr.mxu0 0.0
  %1094 = vmatpush1.msra.mxu0 0.0
  %1095 = vmatprep.subr.mxu0 0.0
  %1096 = vmatpush1.msra.mxu0 0.0
  %1097 = vmatprep.subr.mxu0 0.0
  %1098 = vmatpush1.msra.mxu0 0.0
  %1099 = vmatprep.subr.mxu0 0.0
  %1100 = vmatpush1.msra.mxu0 0.0
  %1101 = vmatprep.subr.mxu0 0.0
  %1102 = vmatpush1.msra.mxu0 0.0
  %1103 = vmatprep.subr.mxu0 0.0
  %1104 = vmatpush1.msra.mxu0 0.0
  %1105 = vmatprep.subr.mxu0 0.0
  %1106 = vmatpush1.msra.mxu0 0.0
  %1107 = vmatprep.subr.mxu0 0.0
  %1108 = vmatpush1.msra.mxu0 0.0
  %1109 = vmatprep.subr.mxu0 0.0
  %1110 = vmatpush1.msra.mxu0 0.0
  %1111 = vmatprep.mubr.f32.mxu0 0.0
  %v1112 = vand.u32 %v196, 4294901760
  %1113 = vmatmul.mubr.f32.gmra.mrb[0].mxu0 %v1112
  %v1114 = vpop.f32.mrb[0].mxu0
  %v1115 = vadd.f32 %v912, %v1114
  %v1116 = vpop.f32.mrb[0].mxu0
  %1117 = vmatprep.mubr.f32.mxu0 0.0
  %v1118 = vand.u32 %v199, 4294901760
  %1119 = vmatmul.mubr.f32.gmra.mrb[0].mxu0 %v1118
  %v1120 = vpop.f32.mrb[0].mxu0
  %v1121 = vadd.f32 %v920, %v1120
  %v1122 = vpop.f32.mrb[0].mxu0
  %1123 = vmatprep.mubr.f32.mxu0 0.0
  %v1124 = vand.u32 %v202, 4294901760
  %1125 = vmatmul.mubr.f32.gmra.mrb[0].mxu0 %v1124
  %v1126 = vpop.f32.mrb[0].mxu0
  %v1127 = vadd.f32 %v928, %v1126
  %v1128 = vpop.f32.mrb[0].mxu0
  %1129 = vmatprep.mubr.f32.mxu0 0.0
  %v1130 = vand.u32 %v205, 4294901760
  %1131 = vmatmul.mubr.f32.gmra.mrb[0].mxu0 %v1130
  %v1132 = vpop.f32.mrb[0].mxu0
  %v1133 = vadd.f32 %v936, %v1132
  %v1134 = vpop.f32.mrb[0].mxu0
  %1135 = vmatprep.mubr.f32.mxu0 0.0
  %v1136 = vand.u32 %v208, 4294901760
  %1137 = vmatmul.mubr.f32.gmra.mrb[0].mxu0 %v1136
  %v1138 = vpop.f32.mrb[0].mxu0
  %v1139 = vadd.f32 %v944, %v1138
  %v1140 = vpop.f32.mrb[0].mxu0
  %1141 = vmatprep.mubr.f32.mxu0 0.0
  %v1142 = vand.u32 %v211, 4294901760
  %1143 = vmatmul.mubr.f32.gmra.mrb[0].mxu0 %v1142
  %v1144 = vpop.f32.mrb[0].mxu0
  %v1145 = vadd.f32 %v952, %v1144
  %v1146 = vpop.f32.mrb[0].mxu0
  %1147 = vmatprep.mubr.f32.mxu0 0.0
  %v1148 = vand.u32 %v214, 4294901760
  %1149 = vmatmul.mubr.f32.gmra.mrb[0].mxu0 %v1148
  %v1150 = vpop.f32.mrb[0].mxu0
  %v1151 = vadd.f32 %v960, %v1150
  %v1152 = vpop.f32.mrb[0].mxu0
  %1153 = vmatprep.mubr.f32.mxu0 0.0
  %v1154 = vand.u32 %v217, 4294901760
  %1155 = vmatmul.mubr.f32.gmra.mrb[0].mxu0 %v1154
  %v1156 = vpop.f32.mrb[0].mxu0
  %v1157 = vadd.f32 %v968, %v1156
  %v1158 = vpop.f32.mrb[0].mxu0
  %1159 = vmatprep.mubr.f32.mxu0 0.0
  %v1160 = vand.u32 %v220, 4294901760
  %1161 = vmatmul.mubr.f32.gmra.mrb[0].mxu0 %v1160
  %v1162 = vpop.f32.mrb[0].mxu0
  %v1163 = vadd.f32 %v976, %v1162
  %v1164 = vpop.f32.mrb[0].mxu0
  %1165 = vmatprep.mubr.f32.mxu0 0.0
  %v1166 = vand.u32 %v223, 4294901760
  %1167 = vmatmul.mubr.f32.gmra.mrb[0].mxu0 %v1166
  %v1168 = vpop.f32.mrb[0].mxu0
  %v1169 = vadd.f32 %v984, %v1168
  %v1170 = vpop.f32.mrb[0].mxu0
  %1171 = vmatprep.mubr.f32.mxu0 0.0
  %v1172 = vand.u32 %v226, 4294901760
  %1173 = vmatmul.mubr.f32.gmra.mrb[0].mxu0 %v1172
  %v1174 = vpop.f32.mrb[0].mxu0
  %v1175 = vadd.f32 %v992, %v1174
  %v1176 = vpop.f32.mrb[0].mxu0
  %1177 = vmatprep.mubr.f32.mxu0 0.0
  %v1178 = vand.u32 %v229, 4294901760
  %1179 = vmatmul.mubr.f32.gmra.mrb[0].mxu0 %v1178
  %v1180 = vpop.f32.mrb[0].mxu0
  %v1181 = vadd.f32 %v1000, %v1180
  %v1182 = vpop.f32.mrb[0].mxu0
  %1183 = vmatprep.mubr.f32.mxu0 0.0
  %v1184 = vand.u32 %v232, 4294901760
  %1185 = vmatmul.mubr.f32.gmra.mrb[0].mxu0 %v1184
  %v1186 = vpop.f32.mrb[0].mxu0
  %v1187 = vadd.f32 %v1008, %v1186
  %v1188 = vpop.f32.mrb[0].mxu0
  %1189 = vmatprep.mubr.f32.mxu0 0.0
  %v1190 = vand.u32 %v235, 4294901760
  %1191 = vmatmul.mubr.f32.gmra.mrb[0].mxu0 %v1190
  %v1192 = vpop.f32.mrb[0].mxu0
  %v1193 = vadd.f32 %v1016, %v1192
  %v1194 = vpop.f32.mrb[0].mxu0
  %1195 = vmatprep.mubr.f32.mxu0 0.0
  %v1196 = vand.u32 %v238, 4294901760
  %1197 = vmatmul.mubr.f32.gmra.mrb[0].mxu0 %v1196
  %v1198 = vpop.f32.mrb[0].mxu0
  %v1199 = vadd.f32 %v1024, %v1198
  %v1200 = vpop.f32.mrb[0].mxu0
  %1201 = vmatprep.mubr.f32.mxu0 0.0
  %v1202 = vand.u32 %v241, 4294901760
  %1203 = vmatmul.mubr.f32.gmra.mrb[0].mxu0 %v1202
  %v1204 = vpop.f32.mrb[0].mxu0
  %v1205 = vadd.f32 %v1032, %v1204
  %v1206 = vpop.f32.mrb[0].mxu0
  %1207 = vdwg.mxu0
  %1208 = vmatprep.subr.mxu0 0.0
  %v1209 = vand.u32 %v156, 4294901760
  %1210 = vmatpush1.msra.mxu0 %v1209
  %1211 = vmatprep.subr.mxu0 0.0
  %v1212 = vand.u32 %v157, 4294901760
  %1213 = vmatpush1.msra.mxu0 %v1212
  %1214 = vmatprep.subr.mxu0 0.0
  %v1215 = vand.u32 %v158, 4294901760
  %1216 = vmatpush1.msra.mxu0 %v1215
  %1217 = vmatprep.subr.mxu0 0.0
  %v1218 = vand.u32 %v159, 4294901760
  %1219 = vmatpush1.msra.mxu0 %v1218
  %1220 = vmatprep.subr.mxu0 0.0
  %1221 = vmatpush1.msra.mxu0 0.0
  %1222 = vmatprep.subr.mxu0 0.0
  %1223 = vmatpush1.msra.mxu0 0.0
  %1224 = vmatprep.subr.mxu0 0.0
  %1225 = vmatpush1.msra.mxu0 0.0
  %1226 = vmatprep.subr.mxu0 0.0
  %1227 = vmatpush1.msra.mxu0 0.0
  %1228 = vmatprep.subr.mxu0 0.0
  %1229 = vmatpush1.msra.mxu0 0.0
  %1230 = vmatprep.subr.mxu0 0.0
  %1231 = vmatpush1.msra.mxu0 0.0
  %1232 = vmatprep.subr.mxu0 0.0
  %1233 = vmatpush1.msra.mxu0 0.0
  %1234 = vmatprep.subr.mxu0 0.0
  %1235 = vmatpush1.msra.mxu0 0.0
  %1236 = vmatprep.subr.mxu0 0.0
  %1237 = vmatpush1.msra.mxu0 0.0
  %1238 = vmatprep.subr.mxu0 0.0
  %1239 = vmatpush1.msra.mxu0 0.0
  %1240 = vmatprep.subr.mxu0 0.0
  %1241 = vmatpush1.msra.mxu0 0.0
  %1242 = vmatprep.subr.mxu0 0.0
  %1243 = vmatpush1.msra.mxu0 0.0
  %1244 = vmatprep.subr.mxu0 0.0
  %1245 = vmatpush1.msra.mxu0 0.0
  %1246 = vmatprep.subr.mxu0 0.0
  %1247 = vmatpush1.msra.mxu0 0.0
  %1248 = vmatprep.subr.mxu0 0.0
  %1249 = vmatpush1.msra.mxu0 0.0
  %1250 = vmatprep.subr.mxu0 0.0
  %1251 = vmatpush1.msra.mxu0 0.0
  %1252 = vmatprep.subr.mxu0 0.0
  %1253 = vmatpush1.msra.mxu0 0.0
  %1254 = vmatprep.subr.mxu0 0.0
  %1255 = vmatpush1.msra.mxu0 0.0
  %1256 = vmatprep.subr.mxu0 0.0
  %1257 = vmatpush1.msra.mxu0 0.0
  %1258 = vmatprep.subr.mxu0 0.0
  %1259 = vmatpush1.msra.mxu0 0.0
  %1260 = vmatprep.subr.mxu0 0.0
  %1261 = vmatpush1.msra.mxu0 0.0
  %1262 = vmatprep.subr.mxu0 0.0
  %1263 = vmatpush1.msra.mxu0 0.0
  %1264 = vmatprep.subr.mxu0 0.0
  %1265 = vmatpush1.msra.mxu0 0.0
  %1266 = vmatprep.subr.mxu0 0.0
  %1267 = vmatpush1.msra.mxu0 0.0
  %1268 = vmatprep.subr.mxu0 0.0
  %1269 = vmatpush1.msra.mxu0 0.0
  %1270 = vmatprep.subr.mxu0 0.0
  %1271 = vmatpush1.msra.mxu0 0.0
  %1272 = vmatprep.subr.mxu0 0.0
  %1273 = vmatpush1.msra.mxu0 0.0
  %1274 = vmatprep.subr.mxu0 0.0
  %1275 = vmatpush1.msra.mxu0 0.0
  %1276 = vmatprep.mubr.f32.mxu0 0.0
  %v1277 = vand.u32 %v196, 4294901760
  %1278 = vmatmul.mubr.f32.gmra.mrb[0].mxu0 %v1277
  %v1279 = vpop.f32.mrb[0].mxu0
  %v1280 = vadd.f32 %v1115, %v1279
  %v1281 = vpop.f32.mrb[0].mxu0
  %1282 = vmatprep.mubr.f32.mxu0 0.0
  %v1283 = vand.u32 %v199, 4294901760
  %1284 = vmatmul.mubr.f32.gmra.mrb[0].mxu0 %v1283
  %v1285 = vpop.f32.mrb[0].mxu0
  %v1286 = vadd.f32 %v1121, %v1285
  %v1287 = vpop.f32.mrb[0].mxu0
  %1288 = vmatprep.mubr.f32.mxu0 0.0
  %v1289 = vand.u32 %v202, 4294901760
  %1290 = vmatmul.mubr.f32.gmra.mrb[0].mxu0 %v1289
  %v1291 = vpop.f32.mrb[0].mxu0
  %v1292 = vadd.f32 %v1127, %v1291
  %v1293 = vpop.f32.mrb[0].mxu0
  %1294 = vmatprep.mubr.f32.mxu0 0.0
  %v1295 = vand.u32 %v205, 4294901760
  %1296 = vmatmul.mubr.f32.gmra.mrb[0].mxu0 %v1295
  %v1297 = vpop.f32.mrb[0].mxu0
  %v1298 = vadd.f32 %v1133, %v1297
  %v1299 = vpop.f32.mrb[0].mxu0
  %1300 = vmatprep.mubr.f32.mxu0 0.0
  %v1301 = vand.u32 %v208, 4294901760
  %1302 = vmatmul.mubr.f32.gmra.mrb[0].mxu0 %v1301
  %v1303 = vpop.f32.mrb[0].mxu0
  %v1304 = vadd.f32 %v1139, %v1303
  %v1305 = vpop.f32.mrb[0].mxu0
  %1306 = vmatprep.mubr.f32.mxu0 0.0
  %v1307 = vand.u32 %v211, 4294901760
  %1308 = vmatmul.mubr.f32.gmra.mrb[0].mxu0 %v1307
  %v1309 = vpop.f32.mrb[0].mxu0
  %v1310 = vadd.f32 %v1145, %v1309
  %v1311 = vpop.f32.mrb[0].mxu0
  %1312 = vmatprep.mubr.f32.mxu0 0.0
  %v1313 = vand.u32 %v214, 4294901760
  %1314 = vmatmul.mubr.f32.gmra.mrb[0].mxu0 %v1313
  %v1315 = vpop.f32.mrb[0].mxu0
  %v1316 = vadd.f32 %v1151, %v1315
  %v1317 = vpop.f32.mrb[0].mxu0
  %1318 = vmatprep.mubr.f32.mxu0 0.0
  %v1319 = vand.u32 %v217, 4294901760
  %1320 = vmatmul.mubr.f32.gmra.mrb[0].mxu0 %v1319
  %v1321 = vpop.f32.mrb[0].mxu0
  %v1322 = vadd.f32 %v1157, %v1321
  %v1323 = vpop.f32.mrb[0].mxu0
  %1324 = vmatprep.mubr.f32.mxu0 0.0
  %v1325 = vand.u32 %v220, 4294901760
  %1326 = vmatmul.mubr.f32.gmra.mrb[0].mxu0 %v1325
  %v1327 = vpop.f32.mrb[0].mxu0
  %v1328 = vadd.f32 %v1163, %v1327
  %v1329 = vpop.f32.mrb[0].mxu0
  %1330 = vmatprep.mubr.f32.mxu0 0.0
  %v1331 = vand.u32 %v223, 4294901760
  %1332 = vmatmul.mubr.f32.gmra.mrb[0].mxu0 %v1331
  %v1333 = vpop.f32.mrb[0].mxu0
  %v1334 = vadd.f32 %v1169, %v1333
  %v1335 = vpop.f32.mrb[0].mxu0
  %1336 = vmatprep.mubr.f32.mxu0 0.0
  %v1337 = vand.u32 %v226, 4294901760
  %1338 = vmatmul.mubr.f32.gmra.mrb[0].mxu0 %v1337
  %v1339 = vpop.f32.mrb[0].mxu0
  %v1340 = vadd.f32 %v1175, %v1339
  %v1341 = vpop.f32.mrb[0].mxu0
  %1342 = vmatprep.mubr.f32.mxu0 0.0
  %v1343 = vand.u32 %v229, 4294901760
  %1344 = vmatmul.mubr.f32.gmra.mrb[0].mxu0 %v1343
  %v1345 = vpop.f32.mrb[0].mxu0
  %v1346 = vadd.f32 %v1181, %v1345
  %v1347 = vpop.f32.mrb[0].mxu0
  %1348 = vmatprep.mubr.f32.mxu0 0.0
  %v1349 = vand.u32 %v232, 4294901760
  %1350 = vmatmul.mubr.f32.gmra.mrb[0].mxu0 %v1349
  %v1351 = vpop.f32.mrb[0].mxu0
  %v1352 = vadd.f32 %v1187, %v1351
  %v1353 = vpop.f32.mrb[0].mxu0
  %1354 = vmatprep.mubr.f32.mxu0 0.0
  %v1355 = vand.u32 %v235, 4294901760
  %1356 = vmatmul.mubr.f32.gmra.mrb[0].mxu0 %v1355
  %v1357 = vpop.f32.mrb[0].mxu0
  %v1358 = vadd.f32 %v1193, %v1357
  %v1359 = vpop.f32.mrb[0].mxu0
  %1360 = vmatprep.mubr.f32.mxu0 0.0
  %v1361 = vand.u32 %v238, 4294901760
  %1362 = vmatmul.mubr.f32.gmra.mrb[0].mxu0 %v1361
  %v1363 = vpop.f32.mrb[0].mxu0
  %v1364 = vadd.f32 %v1199, %v1363
  %v1365 = vpop.f32.mrb[0].mxu0
  %1366 = vmatprep.mubr.f32.mxu0 0.0
  %v1367 = vand.u32 %v241, 4294901760
  %1368 = vmatmul.mubr.f32.gmra.mrb[0].mxu0 %v1367
  %v1369 = vpop.f32.mrb[0].mxu0
  %v1370 = vadd.f32 %v1205, %v1369
  %v1371 = vpop.f32.mrb[0].mxu0
  %1372 = vdwg.mxu0
  %1374 = vset.pattern.permute.xlu0 0
  %1375 = vperm.xlu0 %1374, %v160
  %v1376 = vpop.permute.xlu0 %1375
  %1379 = vset.pattern.permute.xlu0 0
  %1380 = vperm.xlu0 %1379, %v161
  %v1381 = vpop.permute.xlu0 %1380
  %1384 = vset.pattern.permute.xlu0 0
  %1385 = vperm.xlu0 %1384, %v162
  %v1386 = vpop.permute.xlu0 %1385
  %1389 = vset.pattern.permute.xlu0 0
  %1390 = vperm.xlu0 %1389, %v163
  %v1391 = vpop.permute.xlu0 %1390
  %1394 = vset.pattern.permute.xlu0 0
  %1395 = vperm.xlu0 %1394, %v164
  %v1396 = vpop.permute.xlu0 %1395
  %1399 = vset.pattern.permute.xlu0 0
  %1400 = vperm.xlu0 %1399, %v165
  %v1401 = vpop.permute.xlu0 %1400
  %1404 = vset.pattern.permute.xlu0 0
  %1405 = vperm.xlu0 %1404, %v166
  %v1406 = vpop.permute.xlu0 %1405
  %1409 = vset.pattern.permute.xlu0 0
  %1410 = vperm.xlu0 %1409, %v167
  %v1411 = vpop.permute.xlu0 %1410
  %1414 = vset.pattern.permute.xlu0 0
  %1415 = vperm.xlu0 %1414, %v168
  %v1416 = vpop.permute.xlu0 %1415
  %1419 = vset.pattern.permute.xlu0 0
  %1420 = vperm.xlu0 %1419, %v169
  %v1421 = vpop.permute.xlu0 %1420
  %1424 = vset.pattern.permute.xlu0 0
  %1425 = vperm.xlu0 %1424, %v170
  %v1426 = vpop.permute.xlu0 %1425
  %1429 = vset.pattern.permute.xlu0 0
  %1430 = vperm.xlu0 %1429, %v171
  %v1431 = vpop.permute.xlu0 %1430
  %1434 = vset.pattern.permute.xlu0 0
  %1435 = vperm.xlu0 %1434, %v172
  %v1436 = vpop.permute.xlu0 %1435
  %1439 = vset.pattern.permute.xlu0 0
  %1440 = vperm.xlu0 %1439, %v173
  %v1441 = vpop.permute.xlu0 %1440
  %1444 = vset.pattern.permute.xlu0 0
  %1445 = vperm.xlu0 %1444, %v174
  %v1446 = vpop.permute.xlu0 %1445
  %1449 = vset.pattern.permute.xlu0 0
  %1450 = vperm.xlu0 %1449, %v175
  %v1451 = vpop.permute.xlu0 %1450
  %v1454 = vlaneseq
  %v1455 = vshrl.u32 %v1454, 7
  %v1456 = vsub.s32 0, %v1455
  %v1457 = vrot.slane %v176, %v1456
  %v1459 = vadd.f32 %v1376, %v1457
  %v1460 = vadd.f32 %v1381, %v1457
  %v1461 = vadd.f32 %v1386, %v1457
  %v1462 = vadd.f32 %v1391, %v1457
  %v1463 = vadd.f32 %v1396, %v1457
  %v1464 = vadd.f32 %v1401, %v1457
  %v1465 = vadd.f32 %v1406, %v1457
  %v1466 = vadd.f32 %v1411, %v1457
  %v1467 = vadd.f32 %v1416, %v1457
  %v1468 = vadd.f32 %v1421, %v1457
  %v1469 = vadd.f32 %v1426, %v1457
  %v1470 = vadd.f32 %v1431, %v1457
  %v1471 = vadd.f32 %v1436, %v1457
  %v1472 = vadd.f32 %v1441, %v1457
  %v1473 = vadd.f32 %v1446, %v1457
  %v1474 = vadd.f32 %v1451, %v1457
  %v1475 = vmul.f32 %v1280, 2.0
  %v1476 = vmul.f32 %v1286, 2.0
  %v1477 = vmul.f32 %v1292, 2.0
  %v1478 = vmul.f32 %v1298, 2.0
  %v1479 = vmul.f32 %v1304, 2.0
  %v1480 = vmul.f32 %v1310, 2.0
  %v1481 = vmul.f32 %v1316, 2.0
  %v1482 = vmul.f32 %v1322, 2.0
  %v1483 = vmul.f32 %v1328, 2.0
  %v1484 = vmul.f32 %v1334, 2.0
  %v1485 = vmul.f32 %v1340, 2.0
  %v1486 = vmul.f32 %v1346, 2.0
  %v1487 = vmul.f32 %v1352, 2.0
  %v1488 = vmul.f32 %v1358, 2.0
  %v1489 = vmul.f32 %v1364, 2.0
  %v1490 = vmul.f32 %v1370, 2.0
  %v1491 = vsub.f32 %v1459, %v1475
  %v1492 = vsub.f32 %v1460, %v1476
  %v1493 = vsub.f32 %v1461, %v1477
  %v1494 = vsub.f32 %v1462, %v1478
  %v1495 = vsub.f32 %v1463, %v1479
  %v1496 = vsub.f32 %v1464, %v1480
  %v1497 = vsub.f32 %v1465, %v1481
  %v1498 = vsub.f32 %v1466, %v1482
  %v1499 = vsub.f32 %v1467, %v1483
  %v1500 = vsub.f32 %v1468, %v1484
  %v1501 = vsub.f32 %v1469, %v1485
  %v1502 = vsub.f32 %v1470, %v1486
  %v1503 = vsub.f32 %v1471, %v1487
  %v1504 = vsub.f32 %v1472, %v1488
  %v1505 = vsub.f32 %v1473, %v1489
  %v1506 = vsub.f32 %v1474, %v1490
  %v1507 = vmax.f32 %v1491, 0.0
  %v1508 = vmax.f32 %v1492, 0.0
  %v1509 = vmax.f32 %v1493, 0.0
  %v1510 = vmax.f32 %v1494, 0.0
  %v1511 = vmax.f32 %v1495, 0.0
  %v1512 = vmax.f32 %v1496, 0.0
  %v1513 = vmax.f32 %v1497, 0.0
  %v1514 = vmax.f32 %v1498, 0.0
  %v1515 = vmax.f32 %v1499, 0.0
  %v1516 = vmax.f32 %v1500, 0.0
  %v1517 = vmax.f32 %v1501, 0.0
  %v1518 = vmax.f32 %v1502, 0.0
  %v1519 = vmax.f32 %v1503, 0.0
  %v1520 = vmax.f32 %v1504, 0.0
  %v1521 = vmax.f32 %v1505, 0.0
  %v1522 = vmax.f32 %v1506, 0.0
  %v1523 = vrsqrt.pop %v1507
  %v1524 = vmul.f32 %v1507, %v1523
  %vm1525 = vcmp.eq.f32.partialorder %v1507, inf
  %v1526 = vsel %vm1525, %v1507, %v1524
  %vm1527 = vcmp.eq.f32.partialorder %v1507, 0.0
  %v1528 = vand.u32 %v1507, 2147483648
  %v1529 = vsel %vm1527, %v1528, %v1526
  %v1530 = vrsqrt.pop %v1508
  %v1531 = vmul.f32 %v1508, %v1530
  %vm1532 = vcmp.eq.f32.partialorder %v1508, inf
  %v1533 = vsel %vm1532, %v1508, %v1531
  %vm1534 = vcmp.eq.f32.partialorder %v1508, 0.0
  %v1535 = vand.u32 %v1508, 2147483648
  %v1536 = vsel %vm1534, %v1535, %v1533
  %v1537 = vrsqrt.pop %v1509
  %v1538 = vmul.f32 %v1509, %v1537
  %vm1539 = vcmp.eq.f32.partialorder %v1509, inf
  %v1540 = vsel %vm1539, %v1509, %v1538
  %vm1541 = vcmp.eq.f32.partialorder %v1509, 0.0
  %v1542 = vand.u32 %v1509, 2147483648
  %v1543 = vsel %vm1541, %v1542, %v1540
  %v1544 = vrsqrt.pop %v1510
  %v1545 = vmul.f32 %v1510, %v1544
  %vm1546 = vcmp.eq.f32.partialorder %v1510, inf
  %v1547 = vsel %vm1546, %v1510, %v1545
  %vm1548 = vcmp.eq.f32.partialorder %v1510, 0.0
  %v1549 = vand.u32 %v1510, 2147483648
  %v1550 = vsel %vm1548, %v1549, %v1547
  %v1551 = vrsqrt.pop %v1511
  %v1552 = vmul.f32 %v1511, %v1551
  %vm1553 = vcmp.eq.f32.partialorder %v1511, inf
  %v1554 = vsel %vm1553, %v1511, %v1552
  %vm1555 = vcmp.eq.f32.partialorder %v1511, 0.0
  %v1556 = vand.u32 %v1511, 2147483648
  %v1557 = vsel %vm1555, %v1556, %v1554
  %v1558 = vrsqrt.pop %v1512
  %v1559 = vmul.f32 %v1512, %v1558
  %vm1560 = vcmp.eq.f32.partialorder %v1512, inf
  %v1561 = vsel %vm1560, %v1512, %v1559
  %vm1562 = vcmp.eq.f32.partialorder %v1512, 0.0
  %v1563 = vand.u32 %v1512, 2147483648
  %v1564 = vsel %vm1562, %v1563, %v1561
  %v1565 = vrsqrt.pop %v1513
  %v1566 = vmul.f32 %v1513, %v1565
  %vm1567 = vcmp.eq.f32.partialorder %v1513, inf
  %v1568 = vsel %vm1567, %v1513, %v1566
  %vm1569 = vcmp.eq.f32.partialorder %v1513, 0.0
  %v1570 = vand.u32 %v1513, 2147483648
  %v1571 = vsel %vm1569, %v1570, %v1568
  %v1572 = vrsqrt.pop %v1514
  %v1573 = vmul.f32 %v1514, %v1572
  %vm1574 = vcmp.eq.f32.partialorder %v1514, inf
  %v1575 = vsel %vm1574, %v1514, %v1573
  %vm1576 = vcmp.eq.f32.partialorder %v1514, 0.0
  %v1577 = vand.u32 %v1514, 2147483648
  %v1578 = vsel %vm1576, %v1577, %v1575
  %v1579 = vrsqrt.pop %v1515
  %v1580 = vmul.f32 %v1515, %v1579
  %vm1581 = vcmp.eq.f32.partialorder %v1515, inf
  %v1582 = vsel %vm1581, %v1515, %v1580
  %vm1583 = vcmp.eq.f32.partialorder %v1515, 0.0
  %v1584 = vand.u32 %v1515, 2147483648
  %v1585 = vsel %vm1583, %v1584, %v1582
  %v1586 = vrsqrt.pop %v1516
  %v1587 = vmul.f32 %v1516, %v1586
  %vm1588 = vcmp.eq.f32.partialorder %v1516, inf
  %v1589 = vsel %vm1588, %v1516, %v1587
  %vm1590 = vcmp.eq.f32.partialorder %v1516, 0.0
  %v1591 = vand.u32 %v1516, 2147483648
  %v1592 = vsel %vm1590, %v1591, %v1589
  %v1593 = vrsqrt.pop %v1517
  %v1594 = vmul.f32 %v1517, %v1593
  %vm1595 = vcmp.eq.f32.partialorder %v1517, inf
  %v1596 = vsel %vm1595, %v1517, %v1594
  %vm1597 = vcmp.eq.f32.partialorder %v1517, 0.0
  %v1598 = vand.u32 %v1517, 2147483648
  %v1599 = vsel %vm1597, %v1598, %v1596
  %v1600 = vrsqrt.pop %v1518
  %v1601 = vmul.f32 %v1518, %v1600
  %vm1602 = vcmp.eq.f32.partialorder %v1518, inf
  %v1603 = vsel %vm1602, %v1518, %v1601
  %vm1604 = vcmp.eq.f32.partialorder %v1518, 0.0
  %v1605 = vand.u32 %v1518, 2147483648
  %v1606 = vsel %vm1604, %v1605, %v1603
  %v1607 = vrsqrt.pop %v1519
  %v1608 = vmul.f32 %v1519, %v1607
  %vm1609 = vcmp.eq.f32.partialorder %v1519, inf
  %v1610 = vsel %vm1609, %v1519, %v1608
  %vm1611 = vcmp.eq.f32.partialorder %v1519, 0.0
  %v1612 = vand.u32 %v1519, 2147483648
  %v1613 = vsel %vm1611, %v1612, %v1610
  %v1614 = vrsqrt.pop %v1520
  %v1615 = vmul.f32 %v1520, %v1614
  %vm1616 = vcmp.eq.f32.partialorder %v1520, inf
  %v1617 = vsel %vm1616, %v1520, %v1615
  %vm1618 = vcmp.eq.f32.partialorder %v1520, 0.0
  %v1619 = vand.u32 %v1520, 2147483648
  %v1620 = vsel %vm1618, %v1619, %v1617
  %v1621 = vrsqrt.pop %v1521
  %v1622 = vmul.f32 %v1521, %v1621
  %vm1623 = vcmp.eq.f32.partialorder %v1521, inf
  %v1624 = vsel %vm1623, %v1521, %v1622
  %vm1625 = vcmp.eq.f32.partialorder %v1521, 0.0
  %v1626 = vand.u32 %v1521, 2147483648
  %v1627 = vsel %vm1625, %v1626, %v1624
  %v1628 = vrsqrt.pop %v1522
  %v1629 = vmul.f32 %v1522, %v1628
  %vm1630 = vcmp.eq.f32.partialorder %v1522, inf
  %v1631 = vsel %vm1630, %v1522, %v1629
  %vm1632 = vcmp.eq.f32.partialorder %v1522, 0.0
  %v1633 = vand.u32 %v1522, 2147483648
  %v1634 = vsel %vm1632, %v1633, %v1631
  %1636 = vset.pattern.permute.xlu0 0
  %1637 = vperm.xlu0 %1636, %v177
  %v1638 = vpop.permute.xlu0 %1637
  %1641 = vset.pattern.permute.xlu0 0
  %1642 = vperm.xlu0 %1641, %v178
  %v1643 = vpop.permute.xlu0 %1642
  %1646 = vset.pattern.permute.xlu0 0
  %1647 = vperm.xlu0 %1646, %v179
  %v1648 = vpop.permute.xlu0 %1647
  %1651 = vset.pattern.permute.xlu0 0
  %1652 = vperm.xlu0 %1651, %v180
  %v1653 = vpop.permute.xlu0 %1652
  %1656 = vset.pattern.permute.xlu0 0
  %1657 = vperm.xlu0 %1656, %v181
  %v1658 = vpop.permute.xlu0 %1657
  %1661 = vset.pattern.permute.xlu0 0
  %1662 = vperm.xlu0 %1661, %v182
  %v1663 = vpop.permute.xlu0 %1662
  %1666 = vset.pattern.permute.xlu0 0
  %1667 = vperm.xlu0 %1666, %v183
  %v1668 = vpop.permute.xlu0 %1667
  %1671 = vset.pattern.permute.xlu0 0
  %1672 = vperm.xlu0 %1671, %v184
  %v1673 = vpop.permute.xlu0 %1672
  %1676 = vset.pattern.permute.xlu0 0
  %1677 = vperm.xlu0 %1676, %v185
  %v1678 = vpop.permute.xlu0 %1677
  %1681 = vset.pattern.permute.xlu0 0
  %1682 = vperm.xlu0 %1681, %v186
  %v1683 = vpop.permute.xlu0 %1682
  %1686 = vset.pattern.permute.xlu0 0
  %1687 = vperm.xlu0 %1686, %v187
  %v1688 = vpop.permute.xlu0 %1687
  %1691 = vset.pattern.permute.xlu0 0
  %1692 = vperm.xlu0 %1691, %v188
  %v1693 = vpop.permute.xlu0 %1692
  %1696 = vset.pattern.permute.xlu0 0
  %1697 = vperm.xlu0 %1696, %v189
  %v1698 = vpop.permute.xlu0 %1697
  %1701 = vset.pattern.permute.xlu0 0
  %1702 = vperm.xlu0 %1701, %v190
  %v1703 = vpop.permute.xlu0 %1702
  %1706 = vset.pattern.permute.xlu0 0
  %1707 = vperm.xlu0 %1706, %v191
  %v1708 = vpop.permute.xlu0 %1707
  %1711 = vset.pattern.permute.xlu0 0
  %1712 = vperm.xlu0 %1711, %v192
  %v1713 = vpop.permute.xlu0 %1712
  %v1716 = vlaneseq
  %v1717 = vshrl.u32 %v1716, 7
  %v1718 = vsub.s32 0, %v1717
  %v1719 = vrot.slane %v193, %v1718
  %v1721 = vsub.f32 %v1638, %v1719
  %v1722 = vsub.f32 %v1643, %v1719
  %v1723 = vsub.f32 %v1648, %v1719
  %v1724 = vsub.f32 %v1653, %v1719
  %v1725 = vsub.f32 %v1658, %v1719
  %v1726 = vsub.f32 %v1663, %v1719
  %v1727 = vsub.f32 %v1668, %v1719
  %v1728 = vsub.f32 %v1673, %v1719
  %v1729 = vsub.f32 %v1678, %v1719
  %v1730 = vsub.f32 %v1683, %v1719
  %v1731 = vsub.f32 %v1688, %v1719
  %v1732 = vsub.f32 %v1693, %v1719
  %v1733 = vsub.f32 %v1698, %v1719
  %v1734 = vsub.f32 %v1703, %v1719
  %v1735 = vsub.f32 %v1708, %v1719
  %v1736 = vsub.f32 %v1713, %v1719
  %v1737 = vand.u32 2147483647, %v1721
  %v1738 = vand.u32 2147483647, %v1722
  %v1739 = vand.u32 2147483647, %v1723
  %v1740 = vand.u32 2147483647, %v1724
  %v1741 = vand.u32 2147483647, %v1725
  %v1742 = vand.u32 2147483647, %v1726
  %v1743 = vand.u32 2147483647, %v1727
  %v1744 = vand.u32 2147483647, %v1728
  %v1745 = vand.u32 2147483647, %v1729
  %v1746 = vand.u32 2147483647, %v1730
  %v1747 = vand.u32 2147483647, %v1731
  %v1748 = vand.u32 2147483647, %v1732
  %v1749 = vand.u32 2147483647, %v1733
  %v1750 = vand.u32 2147483647, %v1734
  %v1751 = vand.u32 2147483647, %v1735
  %v1752 = vand.u32 2147483647, %v1736
  %v1753 = vmul.f32 %v1737, %v1737
  %v1754 = vmul.f32 %v1738, %v1738
  %v1755 = vmul.f32 %v1739, %v1739
  %v1756 = vmul.f32 %v1740, %v1740
  %v1757 = vmul.f32 %v1741, %v1741
  %v1758 = vmul.f32 %v1742, %v1742
  %v1759 = vmul.f32 %v1743, %v1743
  %v1760 = vmul.f32 %v1744, %v1744
  %v1761 = vmul.f32 %v1745, %v1745
  %v1762 = vmul.f32 %v1746, %v1746
  %v1763 = vmul.f32 %v1747, %v1747
  %v1764 = vmul.f32 %v1748, %v1748
  %v1765 = vmul.f32 %v1749, %v1749
  %v1766 = vmul.f32 %v1750, %v1750
  %v1767 = vmul.f32 %v1751, %v1751
  %v1768 = vmul.f32 %v1752, %v1752
  %v1769 = vmul.f32 %v1753, -0.5
  %v1770 = vmul.f32 %v1754, -0.5
  %v1771 = vmul.f32 %v1755, -0.5
  %v1772 = vmul.f32 %v1756, -0.5
  %v1773 = vmul.f32 %v1757, -0.5
  %v1774 = vmul.f32 %v1758, -0.5
  %v1775 = vmul.f32 %v1759, -0.5
  %v1776 = vmul.f32 %v1760, -0.5
  %v1777 = vmul.f32 %v1761, -0.5
  %v1778 = vmul.f32 %v1762, -0.5
  %v1779 = vmul.f32 %v1763, -0.5
  %v1780 = vmul.f32 %v1764, -0.5
  %v1781 = vmul.f32 %v1765, -0.5
  %v1782 = vmul.f32 %v1766, -0.5
  %v1783 = vmul.f32 %v1767, -0.5
  %v1784 = vmul.f32 %v1768, -0.5
  %v1785 = vmul.f32 %v1769, 1.442695
  %v1786 = vpow.pop %v1785
  %v1787 = vmul.f32 %v1770, 1.442695
  %v1788 = vpow.pop %v1787
  %v1789 = vmul.f32 %v1771, 1.442695
  %v1790 = vpow.pop %v1789
  %v1791 = vmul.f32 %v1772, 1.442695
  %v1792 = vpow.pop %v1791
  %v1793 = vmul.f32 %v1773, 1.442695
  %v1794 = vpow.pop %v1793
  %v1795 = vmul.f32 %v1774, 1.442695
  %v1796 = vpow.pop %v1795
  %v1797 = vmul.f32 %v1775, 1.442695
  %v1798 = vpow.pop %v1797
  %v1799 = vmul.f32 %v1776, 1.442695
  %v1800 = vpow.pop %v1799
  %v1801 = vmul.f32 %v1777, 1.442695
  %v1802 = vpow.pop %v1801
  %v1803 = vmul.f32 %v1778, 1.442695
  %v1804 = vpow.pop %v1803
  %v1805 = vmul.f32 %v1779, 1.442695
  %v1806 = vpow.pop %v1805
  %v1807 = vmul.f32 %v1780, 1.442695
  %v1808 = vpow.pop %v1807
  %v1809 = vmul.f32 %v1781, 1.442695
  %v1810 = vpow.pop %v1809
  %v1811 = vmul.f32 %v1782, 1.442695
  %v1812 = vpow.pop %v1811
  %v1813 = vmul.f32 %v1783, 1.442695
  %v1814 = vpow.pop %v1813
  %v1815 = vmul.f32 %v1784, 1.442695
  %v1816 = vpow.pop %v1815
  %v1817 = vadd.f32 %v1786, 0.2
  %v1818 = vadd.f32 %v1788, 0.2
  %v1819 = vadd.f32 %v1790, 0.2
  %v1820 = vadd.f32 %v1792, 0.2
  %v1821 = vadd.f32 %v1794, 0.2
  %v1822 = vadd.f32 %v1796, 0.2
  %v1823 = vadd.f32 %v1798, 0.2
  %v1824 = vadd.f32 %v1800, 0.2
  %v1825 = vadd.f32 %v1802, 0.2
  %v1826 = vadd.f32 %v1804, 0.2
  %v1827 = vadd.f32 %v1806, 0.2
  %v1828 = vadd.f32 %v1808, 0.2
  %v1829 = vadd.f32 %v1810, 0.2
  %v1830 = vadd.f32 %v1812, 0.2
  %v1831 = vadd.f32 %v1814, 0.2
  %v1832 = vadd.f32 %v1816, 0.2
  %v1833 = vsub.f32 %v1529, %v1737
  %v1834 = vsub.f32 %v1536, %v1738
  %v1835 = vsub.f32 %v1543, %v1739
  %v1836 = vsub.f32 %v1550, %v1740
  %v1837 = vsub.f32 %v1557, %v1741
  %v1838 = vsub.f32 %v1564, %v1742
  %v1839 = vsub.f32 %v1571, %v1743
  %v1840 = vsub.f32 %v1578, %v1744
  %v1841 = vsub.f32 %v1585, %v1745
  %v1842 = vsub.f32 %v1592, %v1746
  %v1843 = vsub.f32 %v1599, %v1747
  %v1844 = vsub.f32 %v1606, %v1748
  %v1845 = vsub.f32 %v1613, %v1749
  %v1846 = vsub.f32 %v1620, %v1750
  %v1847 = vsub.f32 %v1627, %v1751
  %v1848 = vsub.f32 %v1634, %v1752
  %v1849 = vand.u32 2147483647, %v1833
  %v1850 = vand.u32 2147483647, %v1834
  %v1851 = vand.u32 2147483647, %v1835
  %v1852 = vand.u32 2147483647, %v1836
  %v1853 = vand.u32 2147483647, %v1837
  %v1854 = vand.u32 2147483647, %v1838
  %v1855 = vand.u32 2147483647, %v1839
  %v1856 = vand.u32 2147483647, %v1840
  %v1857 = vand.u32 2147483647, %v1841
  %v1858 = vand.u32 2147483647, %v1842
  %v1859 = vand.u32 2147483647, %v1843
  %v1860 = vand.u32 2147483647, %v1844
  %v1861 = vand.u32 2147483647, %v1845
  %v1862 = vand.u32 2147483647, %v1846
  %v1863 = vand.u32 2147483647, %v1847
  %v1864 = vand.u32 2147483647, %v1848
  %v1865 = vmul.f32 %v1817, %v1849
  %v1866 = vmul.f32 %v1818, %v1850
  %v1867 = vmul.f32 %v1819, %v1851
  %v1868 = vmul.f32 %v1820, %v1852
  %v1869 = vmul.f32 %v1821, %v1853
  %v1870 = vmul.f32 %v1822, %v1854
  %v1871 = vmul.f32 %v1823, %v1855
  %v1872 = vmul.f32 %v1824, %v1856
  %v1873 = vmul.f32 %v1825, %v1857
  %v1874 = vmul.f32 %v1826, %v1858
  %v1875 = vmul.f32 %v1827, %v1859
  %v1876 = vmul.f32 %v1828, %v1860
  %v1877 = vmul.f32 %v1829, %v1861
  %v1878 = vmul.f32 %v1830, %v1862
  %v1879 = vmul.f32 %v1831, %v1863
  %v1880 = vmul.f32 %v1832, %v1864
  %v1881 = vlaneseq
  %v1882 = vshrl.u32 %v1881, 7
  %v1883 = vadd.s32 %v1882, 8
  %v1884 = vadd.s32 %v1882, 16
  %v1885 = vadd.s32 %v1882, 24
  %v1886 = vadd.s32 %v1882, 32
  %v1887 = vadd.s32 %v1882, 40
  %v1888 = vadd.s32 %v1882, 48
  %v1889 = vadd.s32 %v1882, 56
  %v1890 = vadd.s32 %v1882, 64
  %v1891 = vadd.s32 %v1882, 72
  %v1892 = vadd.s32 %v1882, 80
  %v1893 = vadd.s32 %v1882, 88
  %v1894 = vadd.s32 %v1882, 96
  %v1895 = vadd.s32 %v1882, 104
  %v1896 = vadd.s32 %v1882, 112
  %v1897 = vadd.s32 %v1882, 120
  %s1898 = smul.u32 %s138, 128
  %v1899 = vstv %s1898
  %v1900 = vadd.s32 %v1882, %v1899
  %v1901 = vadd.s32 %v1883, %v1899
  %v1902 = vadd.s32 %v1884, %v1899
  %v1903 = vadd.s32 %v1885, %v1899
  %v1904 = vadd.s32 %v1886, %v1899
  %v1905 = vadd.s32 %v1887, %v1899
  %v1906 = vadd.s32 %v1888, %v1899
  %v1907 = vadd.s32 %v1889, %v1899
  %v1908 = vadd.s32 %v1890, %v1899
  %v1909 = vadd.s32 %v1891, %v1899
  %v1910 = vadd.s32 %v1892, %v1899
  %v1911 = vadd.s32 %v1893, %v1899
  %v1912 = vadd.s32 %v1894, %v1899
  %v1913 = vadd.s32 %v1895, %v1899
  %v1914 = vadd.s32 %v1896, %v1899
  %v1915 = vadd.s32 %v1897, %v1899
  %v1916 = vlaneseq
  %v1917 = vand.u32 %v1916, 127
  %s1918 = smul.u32 %s139, 128
  %v1919 = vstv %s1918
  %v1920 = vadd.s32 %v1917, %v1919
  %vm1921 = vcmp.lt.s32.totalorder %v1900, 8
  %vm1922 = vcmp.lt.s32.totalorder %v1901, 8
  %vm1923 = vcmp.lt.s32.totalorder %v1902, 8
  %vm1924 = vcmp.lt.s32.totalorder %v1903, 8
  %vm1925 = vcmp.lt.s32.totalorder %v1904, 8
  %vm1926 = vcmp.lt.s32.totalorder %v1905, 8
  %vm1927 = vcmp.lt.s32.totalorder %v1906, 8
  %vm1928 = vcmp.lt.s32.totalorder %v1907, 8
  %vm1929 = vcmp.lt.s32.totalorder %v1908, 8
  %vm1930 = vcmp.lt.s32.totalorder %v1909, 8
  %vm1931 = vcmp.lt.s32.totalorder %v1910, 8
  %vm1932 = vcmp.lt.s32.totalorder %v1911, 8
  %vm1933 = vcmp.lt.s32.totalorder %v1912, 8
  %vm1934 = vcmp.lt.s32.totalorder %v1913, 8
  %vm1935 = vcmp.lt.s32.totalorder %v1914, 8
  %vm1936 = vcmp.lt.s32.totalorder %v1915, 8
  %vm1937 = vcmp.lt.s32.totalorder %v1920, 8
  %v1938 = vsel %vm1921, 1, 0
  %v1939 = vsel %vm1922, 1, 0
  %v1940 = vsel %vm1923, 1, 0
  %v1941 = vsel %vm1924, 1, 0
  %v1942 = vsel %vm1925, 1, 0
  %v1943 = vsel %vm1926, 1, 0
  %v1944 = vsel %vm1927, 1, 0
  %v1945 = vsel %vm1928, 1, 0
  %v1946 = vsel %vm1929, 1, 0
  %v1947 = vsel %vm1930, 1, 0
  %v1948 = vsel %vm1931, 1, 0
  %v1949 = vsel %vm1932, 1, 0
  %v1950 = vsel %vm1933, 1, 0
  %v1951 = vsel %vm1934, 1, 0
  %v1952 = vsel %vm1935, 1, 0
  %v1953 = vsel %vm1936, 1, 0
  %vm1954 = vcmp.eq.s32.totalorder %v1938, 1
  %vm1955 = vcmp.eq.s32.totalorder %v1939, 1
  %vm1956 = vcmp.eq.s32.totalorder %v1940, 1
  %vm1957 = vcmp.eq.s32.totalorder %v1941, 1
  %vm1958 = vcmp.eq.s32.totalorder %v1942, 1
  %vm1959 = vcmp.eq.s32.totalorder %v1943, 1
  %vm1960 = vcmp.eq.s32.totalorder %v1944, 1
  %vm1961 = vcmp.eq.s32.totalorder %v1945, 1
  %vm1962 = vcmp.eq.s32.totalorder %v1946, 1
  %vm1963 = vcmp.eq.s32.totalorder %v1947, 1
  %vm1964 = vcmp.eq.s32.totalorder %v1948, 1
  %vm1965 = vcmp.eq.s32.totalorder %v1949, 1
  %vm1966 = vcmp.eq.s32.totalorder %v1950, 1
  %vm1967 = vcmp.eq.s32.totalorder %v1951, 1
  %vm1968 = vcmp.eq.s32.totalorder %v1952, 1
  %vm1969 = vcmp.eq.s32.totalorder %v1953, 1
  %v1970 = vsel %vm1937, 1, 0
  %vm1971 = vcmp.eq.s32.totalorder %v1970, 1
  %vm1972 = vmand %vm1954, %vm1971
  %vm1973 = vmand %vm1955, %vm1971
  %vm1974 = vmand %vm1956, %vm1971
  %vm1975 = vmand %vm1957, %vm1971
  %vm1976 = vmand %vm1958, %vm1971
  %vm1977 = vmand %vm1959, %vm1971
  %vm1978 = vmand %vm1960, %vm1971
  %vm1979 = vmand %vm1961, %vm1971
  %vm1980 = vmand %vm1962, %vm1971
  %vm1981 = vmand %vm1963, %vm1971
  %vm1982 = vmand %vm1964, %vm1971
  %vm1983 = vmand %vm1965, %vm1971
  %vm1984 = vmand %vm1966, %vm1971
  %vm1985 = vmand %vm1967, %vm1971
  %vm1986 = vmand %vm1968, %vm1971
  %vm1987 = vmand %vm1969, %vm1971
  %v1988 = vsel %vm1972, %v1865, 0.0
  %v1989 = vsel %vm1973, %v1866, 0.0
  %v1990 = vsel %vm1974, %v1867, 0.0
  %v1991 = vsel %vm1975, %v1868, 0.0
  %v1992 = vsel %vm1976, %v1869, 0.0
  %v1993 = vsel %vm1977, %v1870, 0.0
  %v1994 = vsel %vm1978, %v1871, 0.0
  %v1995 = vsel %vm1979, %v1872, 0.0
  %v1996 = vsel %vm1980, %v1873, 0.0
  %v1997 = vsel %vm1981, %v1874, 0.0
  %v1998 = vsel %vm1982, %v1875, 0.0
  %v1999 = vsel %vm1983, %v1876, 0.0
  %v2000 = vsel %vm1984, %v1877, 0.0
  %v2001 = vsel %vm1985, %v1878, 0.0
  %v2002 = vsel %vm1986, %v1879, 0.0
  %v2003 = vsel %vm1987, %v1880, 0.0
  %p2004 = scmp.eq.s32.totalorder %s138, %s139
  %s2005 = scalar_select %p2004, 1.0, 2.0
  %v2006 = vadd.f32 %v1988, %v1989
  %v2007 = vadd.f32 %v2006, %v1990
  %v2008 = vadd.f32 %v2007, %v1991
  %v2009 = vadd.f32 %v2008, %v1992
  %v2010 = vadd.f32 %v2009, %v1993
  %v2011 = vadd.f32 %v2010, %v1994
  %v2012 = vadd.f32 %v2011, %v1995
  %v2013 = vadd.f32 %v2012, %v1996
  %v2014 = vadd.f32 %v2013, %v1997
  %v2015 = vadd.f32 %v2014, %v1998
  %v2016 = vadd.f32 %v2015, %v1999
  %v2017 = vadd.f32 %v2016, %v2000
  %v2018 = vadd.f32 %v2017, %v2001
  %v2019 = vadd.f32 %v2018, %v2002
  %v2020 = vadd.f32 %v2019, %v2003
  %v2021 = vstv %s2005
  %v2022 = vmul.f32 %v2021, %v2020
  %2023 = vst [vmem:[%s8] sm:$0xff] %v2022
  // Predicated region
  $region26: #{_reg_metric_forward.2} parent=0 // pred_check
    _
  $region27: #{_reg_metric_forward.2} parent=0 // pred_check_branch
    %2025 = sbr.rel (0) target = $region29
  $region28: #{_reg_metric_forward.2} parent=0 // pred_region
    _
  $region29: #{_reg_metric_forward.2} parent=0 // pred_fallthru
    _
  // Predicated region
  $region30: #{_reg_metric_forward.2} parent=0 // pred_check
    _
  $region31: #{_reg_metric_forward.2} parent=0 // pred_check_branch
    %2027 = sbr.rel (0) target = $region33
  $region32: #{_reg_metric_forward.2} parent=0 // pred_region
    _
  $region33: #{_reg_metric_forward.2} parent=0 // pred_fallthru
    _

// kernel: _reg_metric_forward.3
$region0: #{_reg_metric_forward.3}
  #allocation0 [shape = 'u32[]', space=smem, size = 0x4, offset = 0x4, fixed_abs, tag = 'smem constant byte address 0x4 - core index']
  #allocation1 [shape = 'u32[144,128]{1,0:T(1,128)}', space=vmem, size = 0x12000, scoped, tag = 'internal scratch']
  #allocation2 [shape = 's32[1]{0}', space=sflag, size = 0x4, scoped, tag = 'scoped memory for _reg_metric_forward.3']
  #allocation3 [shape = 's32[1]{0:T(128)S(6)}', space=smem, size = 0x200, scoped, tag = 'prefetched SMEM operand 0']
  #allocation4 [shape = 's32[1]{0:T(128)S(6)}', space=smem, size = 0x200, scoped, tag = 'prefetched SMEM operand 1']
  #allocation5 [shape = 'f32[1]{0:T(128)S(6)}', space=smem, size = 0x200, scoped, tag = 'prefetched SMEM operand 2']
  %s0 = inlined_call_operand.<no memory space> [shape: s32[1], index: 0, kind: input, shape index: {}, may-alias: {0,1}]
  %s1 = inlined_call_operand.<no memory space> [shape: s32[1], index: 1, kind: input, shape index: {}, may-alias: {0,1}]
  %s2 = inlined_call_operand.<no memory space> [shape: f32[1], index: 2, kind: input, shape index: {}]
  %s3 = inlined_call_operand.vmem [shape: f32[128,32], index: 3, kind: input, shape index: {}]
  %s4 = inlined_call_operand.vmem [shape: f32[32,128], index: 4, kind: input, shape index: {}]
  %s5 = inlined_call_operand.vmem [shape: f32[128,1], index: 5, kind: input, shape index: {}]
  %s6 = inlined_call_operand.vmem [shape: f32[1,128], index: 6, kind: input, shape index: {}]
  %s7 = inlined_call_operand.vmem [shape: f32[128,1], index: 7, kind: input, shape index: {}]
  %s8 = inlined_call_operand.vmem [shape: f32[1,128], index: 8, kind: input, shape index: {}]
  %s9 = inlined_call_operand.vmem [shape: f32[24,128], index: 9, kind: output, shape index: {}]
  %s10 = sld [smem:[#allocation0]]
  $region34: #{_reg_metric_forward.3} parent=0
    _
  %s12 = ssub.s32 1, %s10
  %s13 = scalar_select 0, %s12, %s10
  %14 = sst [smem:[#allocation3]] %s0
  %15 = sst [smem:[#allocation4]] %s1
  %16 = sst [smem:[#allocation5]] %s2
  // Predicated region
  $region2: #{_reg_metric_forward.3} parent=0 // pred_check
    _
  $region3: #{_reg_metric_forward.3} parent=0 // pred_check_branch
    %18 = sbr.rel (0) target = $region5
  $region4: #{_reg_metric_forward.3} parent=0 // pred_region
    %s19 = sld [smem:[#allocation3]]
    %s20 = smul.u32 16, %s19
    %p21 = scmp.lt.s32.totalorder %s20, 15
    %s22 = scalar_select %p21, %s20, 15
    %s23 = smul.addr %s22, 8
    %s24 = scalar_lea.vmem %s3, %s23
    %s25 = sld [smem:[#allocation3]]
    %s26 = smul.u32 16, %s25
  $region5: #{_reg_metric_forward.3} parent=0 // pred_fallthru
    _
  // Predicated region
  $region6: #{_reg_metric_forward.3} parent=0 // pred_check
    _
  $region7: #{_reg_metric_forward.3} parent=0 // pred_check_branch
    %28 = sbr.rel (0) target = $region9
  $region8: #{_reg_metric_forward.3} parent=0 // pred_region
    %s29 = sld [smem:[#allocation4]]
    %p30 = scmp.lt.s32.totalorder %s29, 0
    %s31 = scalar_select %p30, %s29, 0
    %s32 = smul.addr %s31, 8
    %s33 = scalar_lea.vmem %s4, %s32
    %s34 = sld [smem:[#allocation4]]
  $region9: #{_reg_metric_forward.3} parent=0 // pred_fallthru
    _
  // Predicated region
  $region10: #{_reg_metric_forward.3} parent=0 // pred_check
    _
  $region11: #{_reg_metric_forward.3} parent=0 // pred_check_branch
    %36 = sbr.rel (0) target = $region13
  $region12: #{_reg_metric_forward.3} parent=0 // pred_region
    %s37 = sld [smem:[#allocation3]]
    %s38 = smul.u32 16, %s37
    %p39 = scmp.lt.s32.totalorder %s38, 15
    %s40 = scalar_select %p39, %s38, 15
    %s41 = smul.addr %s40, 8
    %s42 = scalar_lea.vmem %s5, %s41
    %s43 = sld [smem:[#allocation3]]
    %s44 = smul.u32 16, %s43
  $region13: #{_reg_metric_forward.3} parent=0 // pred_fallthru
    _
  // Predicated region
  $region14: #{_reg_metric_forward.3} parent=0 // pred_check
    _
  $region15: #{_reg_metric_forward.3} parent=0 // pred_check_branch
    %46 = sbr.rel (0) target = $region17
  $region16: #{_reg_metric_forward.3} parent=0 // pred_region
    %s47 = sld [smem:[#allocation4]]
    %p48 = scmp.lt.s32.totalorder %s47, 0
    %s49 = scalar_select %p48, %s47, 0
    %s50 = scalar_lea.vmem %s6, %s49
    %s51 = sld [smem:[#allocation4]]
  $region17: #{_reg_metric_forward.3} parent=0 // pred_fallthru
    _
  // Predicated region
  $region18: #{_reg_metric_forward.3} parent=0 // pred_check
    _
  $region19: #{_reg_metric_forward.3} parent=0 // pred_check_branch
    %53 = sbr.rel (0) target = $region21
  $region20: #{_reg_metric_forward.3} parent=0 // pred_region
    %s54 = sld [smem:[#allocation3]]
    %s55 = smul.u32 16, %s54
    %p56 = scmp.lt.s32.totalorder %s55, 15
    %s57 = scalar_select %p56, %s55, 15
    %s58 = smul.addr %s57, 8
    %s59 = scalar_lea.vmem %s7, %s58
    %s60 = sld [smem:[#allocation3]]
    %s61 = smul.u32 16, %s60
  $region21: #{_reg_metric_forward.3} parent=0 // pred_fallthru
    _
  // Predicated region
  $region22: #{_reg_metric_forward.3} parent=0 // pred_check
    _
  $region23: #{_reg_metric_forward.3} parent=0 // pred_check_branch
    %63 = sbr.rel (0) target = $region25
  $region24: #{_reg_metric_forward.3} parent=0 // pred_region
    %s64 = sld [smem:[#allocation4]]
    %p65 = scmp.lt.s32.totalorder %s64, 0
    %s66 = scalar_select %p65, %s64, 0
    %s67 = scalar_lea.vmem %s8, %s66
    %s68 = sld [smem:[#allocation4]]
  $region25: #{_reg_metric_forward.3} parent=0 // pred_fallthru
    _
  %s69 = sld [smem:[#allocation3]]
  %s70 = smul.u32 16, %s69
  %p71 = scmp.lt.s32.totalorder %s70, 15
  %s72 = scalar_select %p71, %s70, 15
  %s73 = smul.addr %s72, 8
  %s74 = scalar_lea.vmem %s3, %s73
  %s75 = sld [smem:[#allocation4]]
  %p76 = scmp.lt.s32.totalorder %s75, 0
  %s77 = scalar_select %p76, %s75, 0
  %s78 = smul.addr %s77, 8
  %s79 = scalar_lea.vmem %s4, %s78
  %s80 = sld [smem:[#allocation3]]
  %s81 = smul.u32 16, %s80
  %p82 = scmp.lt.s32.totalorder %s81, 15
  %s83 = scalar_select %p82, %s81, 15
  %s84 = smul.addr %s83, 8
  %s85 = scalar_lea.vmem %s5, %s84
  %s86 = sld [smem:[#allocation4]]
  %p87 = scmp.lt.s32.totalorder %s86, 0
  %s88 = scalar_select %p87, %s86, 0
  %s89 = scalar_lea.vmem %s6, %s88
  %s90 = sld [smem:[#allocation3]]
  %s91 = smul.u32 16, %s90
  %p92 = scmp.lt.s32.totalorder %s91, 15
  %s93 = scalar_select %p92, %s91, 15
  %s94 = smul.addr %s93, 8
  %s95 = scalar_lea.vmem %s7, %s94
  %s96 = sld [smem:[#allocation4]]
  %p97 = scmp.lt.s32.totalorder %s96, 0
  %s98 = scalar_select %p97, %s96, 0
  %s99 = scalar_lea.vmem %s8, %s98
  %s100 = sld [smem:[#allocation3]]
  %s101 = smul.u32 16, %s100
  %p102 = scmp.lt.s32.totalorder %s101, 15
  %s103 = scalar_select %p102, %s101, 15
  %s104 = smul.addr %s103, 8
  %s105 = scalar_lea.vmem %s3, %s104
  %s106 = sld [smem:[#allocation3]]
  %s107 = smul.u32 16, %s106
  %s108 = sld [smem:[#allocation4]]
  %p109 = scmp.lt.s32.totalorder %s108, 0
  %s110 = scalar_select %p109, %s108, 0
  %s111 = smul.addr %s110, 8
  %s112 = scalar_lea.vmem %s4, %s111
  %s113 = sld [smem:[#allocation4]]
  %s114 = sld [smem:[#allocation3]]
  %s115 = smul.u32 16, %s114
  %p116 = scmp.lt.s32.totalorder %s115, 15
  %s117 = scalar_select %p116, %s115, 15
  %s118 = smul.addr %s117, 8
  %s119 = scalar_lea.vmem %s5, %s118
  %s120 = sld [smem:[#allocation3]]
  %s121 = smul.u32 16, %s120
  %s122 = sld [smem:[#allocation4]]
  %p123 = scmp.lt.s32.totalorder %s122, 0
  %s124 = scalar_select %p123, %s122, 0
  %s125 = scalar_lea.vmem %s6, %s124
  %s126 = sld [smem:[#allocation4]]
  %s127 = sld [smem:[#allocation3]]
  %s128 = smul.u32 16, %s127
  %p129 = scmp.lt.s32.totalorder %s128, 15
  %s130 = scalar_select %p129, %s128, 15
  %s131 = smul.addr %s130, 8
  %s132 = scalar_lea.vmem %s7, %s131
  %s133 = sld [smem:[#allocation3]]
  %s134 = smul.u32 16, %s133
  %s135 = sld [smem:[#allocation4]]
  %p136 = scmp.lt.s32.totalorder %s135, 0
  %s137 = scalar_select %p136, %s135, 0
  %s138 = scalar_lea.vmem %s8, %s137
  %s139 = sld [smem:[#allocation4]]
  %s140 = sld [smem:[#allocation3]]
  %s141 = sld [smem:[#allocation4]]
  %s142 = sld [smem:[#allocation5]]
  %v143 = vld [vmem:[%s105] sm:$0xff]
  %v144 = vld [vmem:[%s105 + $0x8] sm:$0xff]
  %v145 = vld [vmem:[%s105 + $0x10] sm:$0xff]
  %v146 = vld [vmem:[%s105 + $0x18] sm:$0xff]
  %v147 = vld [vmem:[%s105 + $0x20] sm:$0xff]
  %v148 = vld [vmem:[%s105 + $0x28] sm:$0xff]
  %v149 = vld [vmem:[%s105 + $0x30] sm:$0xff]
  %v150 = vld [vmem:[%s105 + $0x38] sm:$0xff]
  %v151 = vld [vmem:[%s105 + $0x40] sm:$0xff]
  %v152 = vld [vmem:[%s105 + $0x48] sm:$0xff]
  %v153 = vld [vmem:[%s105 + $0x50] sm:$0xff]
  %v154 = vld [vmem:[%s105 + $0x58] sm:$0xff]
  %v155 = vld [vmem:[%s105 + $0x60] sm:$0xff]
  %v156 = vld [vmem:[%s105 + $0x68] sm:$0xff]
  %v157 = vld [vmem:[%s105 + $0x70] sm:$0xff]
  %v158 = vld [vmem:[%s105 + $0x78] sm:$0xff]
  %v159 = vld [vmem:[%s112] sm:$0xff]
  %v160 = vld [vmem:[%s112 + $0x8] sm:$0xff]
  %v161 = vld [vmem:[%s112 + $0x10] sm:$0xff]
  %v162 = vld [vmem:[%s112 + $0x18] sm:$0xff]
  %v163 = vld [vmem:[%s119] sm:$0xff]
  %v164 = vld [vmem:[%s119 + $0x8] sm:$0xff]
  %v165 = vld [vmem:[%s119 + $0x10] sm:$0xff]
  %v166 = vld [vmem:[%s119 + $0x18] sm:$0xff]
  %v167 = vld [vmem:[%s119 + $0x20] sm:$0xff]
  %v168 = vld [vmem:[%s119 + $0x28] sm:$0xff]
  %v169 = vld [vmem:[%s119 + $0x30] sm:$0xff]
  %v170 = vld [vmem:[%s119 + $0x38] sm:$0xff]
  %v171 = vld [vmem:[%s119 + $0x40] sm:$0xff]
  %v172 = vld [vmem:[%s119 + $0x48] sm:$0xff]
  %v173 = vld [vmem:[%s119 + $0x50] sm:$0xff]
  %v174 = vld [vmem:[%s119 + $0x58] sm:$0xff]
  %v175 = vld [vmem:[%s119 + $0x60] sm:$0xff]
  %v176 = vld [vmem:[%s119 + $0x68] sm:$0xff]
  %v177 = vld [vmem:[%s119 + $0x70] sm:$0xff]
  %v178 = vld [vmem:[%s119 + $0x78] sm:$0xff]
  %v179 = vld [vmem:[%s125] sm:$0x1]
  %v180 = vld [vmem:[%s132] sm:$0xff]
  %v181 = vld [vmem:[%s132 + $0x8] sm:$0xff]
  %v182 = vld [vmem:[%s132 + $0x10] sm:$0xff]
  %v183 = vld [vmem:[%s132 + $0x18] sm:$0xff]
  %v184 = vld [vmem:[%s132 + $0x20] sm:$0xff]
  %v185 = vld [vmem:[%s132 + $0x28] sm:$0xff]
  %v186 = vld [vmem:[%s132 + $0x30] sm:$0xff]
  %v187 = vld [vmem:[%s132 + $0x38] sm:$0xff]
  %v188 = vld [vmem:[%s132 + $0x40] sm:$0xff]
  %v189 = vld [vmem:[%s132 + $0x48] sm:$0xff]
  %v190 = vld [vmem:[%s132 + $0x50] sm:$0xff]
  %v191 = vld [vmem:[%s132 + $0x58] sm:$0xff]
  %v192 = vld [vmem:[%s132 + $0x60] sm:$0xff]
  %v193 = vld [vmem:[%s132 + $0x68] sm:$0xff]
  %v194 = vld [vmem:[%s132 + $0x70] sm:$0xff]
  %v195 = vld [vmem:[%s132 + $0x78] sm:$0xff]
  %v196 = vld [vmem:[%s138] sm:$0x1]
  %vm197 = vcmask 261120
  %v199 = vsel %vm197, %v143, 0
  %v202 = vsel %vm197, %v144, 0
  %v205 = vsel %vm197, %v145, 0
  %v208 = vsel %vm197, %v146, 0
  %v211 = vsel %vm197, %v147, 0
  %v214 = vsel %vm197, %v148, 0
  %v217 = vsel %vm197, %v149, 0
  %v220 = vsel %vm197, %v150, 0
  %v223 = vsel %vm197, %v151, 0
  %v226 = vsel %vm197, %v152, 0
  %v229 = vsel %vm197, %v153, 0
  %v232 = vsel %vm197, %v154, 0
  %v235 = vsel %vm197, %v155, 0
  %v238 = vsel %vm197, %v156, 0
  %v241 = vsel %vm197, %v157, 0
  %v244 = vsel %vm197, %v158, 0
  %246 = vmatprep.subr.mxu0 0.0
  %v247 = vand.u32 %v159, 4294901760
  %248 = vmatpush1.msra.mxu0 %v247
  %249 = vmatprep.subr.mxu0 0.0
  %v250 = vand.u32 %v160, 4294901760
  %251 = vmatpush1.msra.mxu0 %v250
  %252 = vmatprep.subr.mxu0 0.0
  %v253 = vand.u32 %v161, 4294901760
  %254 = vmatpush1.msra.mxu0 %v253
  %255 = vmatprep.subr.mxu0 0.0
  %v256 = vand.u32 %v162, 4294901760
  %257 = vmatpush1.msra.mxu0 %v256
  %258 = vmatprep.subr.mxu0 0.0
  %259 = vmatpush1.msra.mxu0 0.0
  %260 = vmatprep.subr.mxu0 0.0
  %261 = vmatpush1.msra.mxu0 0.0
  %262 = vmatprep.subr.mxu0 0.0
  %263 = vmatpush1.msra.mxu0 0.0
  %264 = vmatprep.subr.mxu0 0.0
  %265 = vmatpush1.msra.mxu0 0.0
  %266 = vmatprep.subr.mxu0 0.0
  %267 = vmatpush1.msra.mxu0 0.0
  %268 = vmatprep.subr.mxu0 0.0
  %269 = vmatpush1.msra.mxu0 0.0
  %270 = vmatprep.subr.mxu0 0.0
  %271 = vmatpush1.msra.mxu0 0.0
  %272 = vmatprep.subr.mxu0 0.0
  %273 = vmatpush1.msra.mxu0 0.0
  %274 = vmatprep.subr.mxu0 0.0
  %275 = vmatpush1.msra.mxu0 0.0
  %276 = vmatprep.subr.mxu0 0.0
  %277 = vmatpush1.msra.mxu0 0.0
  %278 = vmatprep.subr.mxu0 0.0
  %279 = vmatpush1.msra.mxu0 0.0
  %280 = vmatprep.subr.mxu0 0.0
  %281 = vmatpush1.msra.mxu0 0.0
  %282 = vmatprep.subr.mxu0 0.0
  %283 = vmatpush1.msra.mxu0 0.0
  %284 = vmatprep.subr.mxu0 0.0
  %285 = vmatpush1.msra.mxu0 0.0
  %286 = vmatprep.subr.mxu0 0.0
  %287 = vmatpush1.msra.mxu0 0.0
  %288 = vmatprep.subr.mxu0 0.0
  %289 = vmatpush1.msra.mxu0 0.0
  %290 = vmatprep.subr.mxu0 0.0
  %291 = vmatpush1.msra.mxu0 0.0
  %292 = vmatprep.subr.mxu0 0.0
  %293 = vmatpush1.msra.mxu0 0.0
  %294 = vmatprep.subr.mxu0 0.0
  %295 = vmatpush1.msra.mxu0 0.0
  %296 = vmatprep.subr.mxu0 0.0
  %297 = vmatpush1.msra.mxu0 0.0
  %298 = vmatprep.subr.mxu0 0.0
  %299 = vmatpush1.msra.mxu0 0.0
  %300 = vmatprep.subr.mxu0 0.0
  %301 = vmatpush1.msra.mxu0 0.0
  %302 = vmatprep.subr.mxu0 0.0
  %303 = vmatpush1.msra.mxu0 0.0
  %304 = vmatprep.subr.mxu0 0.0
  %305 = vmatpush1.msra.mxu0 0.0
  %306 = vmatprep.subr.mxu0 0.0
  %307 = vmatpush1.msra.mxu0 0.0
  %308 = vmatprep.subr.mxu0 0.0
  %309 = vmatpush1.msra.mxu0 0.0
  %310 = vmatprep.subr.mxu0 0.0
  %311 = vmatpush1.msra.mxu0 0.0
  %312 = vmatprep.subr.mxu0 0.0
  %313 = vmatpush1.msra.mxu0 0.0
  %314 = vmatprep.mubr.f32.mxu0 0.0
  %v315 = vand.u32 %v199, 4294901760
  %v316 = vsub.f32 %v199, %v315
  %v317 = vand.u32 %v316, 4294901760
  %v318 = vsub.f32 %v316, %v317
  %v319 = vand.u32 %v318, 4294901760
  %320 = vmatmul.mubr.f32.gmra.mrb[0].mxu0 %v319
  %v321 = vpop.f32.mrb[0].mxu0
  %v322 = vadd.f32 0.0, %v321
  %v323 = vpop.f32.mrb[0].mxu0
  %324 = vmatprep.mubr.f32.mxu0 0.0
  %v325 = vand.u32 %v202, 4294901760
  %v326 = vsub.f32 %v202, %v325
  %v327 = vand.u32 %v326, 4294901760
  %v328 = vsub.f32 %v326, %v327
  %v329 = vand.u32 %v328, 4294901760
  %330 = vmatmul.mubr.f32.gmra.mrb[0].mxu0 %v329
  %v331 = vpop.f32.mrb[0].mxu0
  %v332 = vadd.f32 0.0, %v331
  %v333 = vpop.f32.mrb[0].mxu0
  %334 = vmatprep.mubr.f32.mxu0 0.0
  %v335 = vand.u32 %v205, 4294901760
  %v336 = vsub.f32 %v205, %v335
  %v337 = vand.u32 %v336, 4294901760
  %v338 = vsub.f32 %v336, %v337
  %v339 = vand.u32 %v338, 4294901760
  %340 = vmatmul.mubr.f32.gmra.mrb[0].mxu0 %v339
  %v341 = vpop.f32.mrb[0].mxu0
  %v342 = vadd.f32 0.0, %v341
  %v343 = vpop.f32.mrb[0].mxu0
  %344 = vmatprep.mubr.f32.mxu0 0.0
  %v345 = vand.u32 %v208, 4294901760
  %v346 = vsub.f32 %v208, %v345
  %v347 = vand.u32 %v346, 4294901760
  %v348 = vsub.f32 %v346, %v347
  %v349 = vand.u32 %v348, 4294901760
  %350 = vmatmul.mubr.f32.gmra.mrb[0].mxu0 %v349
  %v351 = vpop.f32.mrb[0].mxu0
  %v352 = vadd.f32 0.0, %v351
  %v353 = vpop.f32.mrb[0].mxu0
  %354 = vmatprep.mubr.f32.mxu0 0.0
  %v355 = vand.u32 %v211, 4294901760
  %v356 = vsub.f32 %v211, %v355
  %v357 = vand.u32 %v356, 4294901760
  %v358 = vsub.f32 %v356, %v357
  %v359 = vand.u32 %v358, 4294901760
  %360 = vmatmul.mubr.f32.gmra.mrb[0].mxu0 %v359
  %v361 = vpop.f32.mrb[0].mxu0
  %v362 = vadd.f32 0.0, %v361
  %v363 = vpop.f32.mrb[0].mxu0
  %364 = vmatprep.mubr.f32.mxu0 0.0
  %v365 = vand.u32 %v214, 4294901760
  %v366 = vsub.f32 %v214, %v365
  %v367 = vand.u32 %v366, 4294901760
  %v368 = vsub.f32 %v366, %v367
  %v369 = vand.u32 %v368, 4294901760
  %370 = vmatmul.mubr.f32.gmra.mrb[0].mxu0 %v369
  %v371 = vpop.f32.mrb[0].mxu0
  %v372 = vadd.f32 0.0, %v371
  %v373 = vpop.f32.mrb[0].mxu0
  %374 = vmatprep.mubr.f32.mxu0 0.0
  %v375 = vand.u32 %v217, 4294901760
  %v376 = vsub.f32 %v217, %v375
  %v377 = vand.u32 %v376, 4294901760
  %v378 = vsub.f32 %v376, %v377
  %v379 = vand.u32 %v378, 4294901760
  %380 = vmatmul.mubr.f32.gmra.mrb[0].mxu0 %v379
  %v381 = vpop.f32.mrb[0].mxu0
  %v382 = vadd.f32 0.0, %v381
  %v383 = vpop.f32.mrb[0].mxu0
  %384 = vmatprep.mubr.f32.mxu0 0.0
  %v385 = vand.u32 %v220, 4294901760
  %v386 = vsub.f32 %v220, %v385
  %v387 = vand.u32 %v386, 4294901760
  %v388 = vsub.f32 %v386, %v387
  %v389 = vand.u32 %v388, 4294901760
  %390 = vmatmul.mubr.f32.gmra.mrb[0].mxu0 %v389
  %v391 = vpop.f32.mrb[0].mxu0
  %v392 = vadd.f32 0.0, %v391
  %v393 = vpop.f32.mrb[0].mxu0
  %394 = vmatprep.mubr.f32.mxu0 0.0
  %v395 = vand.u32 %v223, 4294901760
  %v396 = vsub.f32 %v223, %v395
  %v397 = vand.u32 %v396, 4294901760
  %v398 = vsub.f32 %v396, %v397
  %v399 = vand.u32 %v398, 4294901760
  %400 = vmatmul.mubr.f32.gmra.mrb[0].mxu0 %v399
  %v401 = vpop.f32.mrb[0].mxu0
  %v402 = vadd.f32 0.0, %v401
  %v403 = vpop.f32.mrb[0].mxu0
  %404 = vmatprep.mubr.f32.mxu0 0.0
  %v405 = vand.u32 %v226, 4294901760
  %v406 = vsub.f32 %v226, %v405
  %v407 = vand.u32 %v406, 4294901760
  %v408 = vsub.f32 %v406, %v407
  %v409 = vand.u32 %v408, 4294901760
  %410 = vmatmul.mubr.f32.gmra.mrb[0].mxu0 %v409
  %v411 = vpop.f32.mrb[0].mxu0
  %v412 = vadd.f32 0.0, %v411
  %v413 = vpop.f32.mrb[0].mxu0
  %414 = vmatprep.mubr.f32.mxu0 0.0
  %v415 = vand.u32 %v229, 4294901760
  %v416 = vsub.f32 %v229, %v415
  %v417 = vand.u32 %v416, 4294901760
  %v418 = vsub.f32 %v416, %v417
  %v419 = vand.u32 %v418, 4294901760
  %420 = vmatmul.mubr.f32.gmra.mrb[0].mxu0 %v419
  %v421 = vpop.f32.mrb[0].mxu0
  %v422 = vadd.f32 0.0, %v421
  %v423 = vpop.f32.mrb[0].mxu0
  %424 = vmatprep.mubr.f32.mxu0 0.0
  %v425 = vand.u32 %v232, 4294901760
  %v426 = vsub.f32 %v232, %v425
  %v427 = vand.u32 %v426, 4294901760
  %v428 = vsub.f32 %v426, %v427
  %v429 = vand.u32 %v428, 4294901760
  %430 = vmatmul.mubr.f32.gmra.mrb[0].mxu0 %v429
  %v431 = vpop.f32.mrb[0].mxu0
  %v432 = vadd.f32 0.0, %v431
  %v433 = vpop.f32.mrb[0].mxu0
  %434 = vmatprep.mubr.f32.mxu0 0.0
  %v435 = vand.u32 %v235, 4294901760
  %v436 = vsub.f32 %v235, %v435
  %v437 = vand.u32 %v436, 4294901760
  %v438 = vsub.f32 %v436, %v437
  %v439 = vand.u32 %v438, 4294901760
  %440 = vmatmul.mubr.f32.gmra.mrb[0].mxu0 %v439
  %v441 = vpop.f32.mrb[0].mxu0
  %v442 = vadd.f32 0.0, %v441
  %v443 = vpop.f32.mrb[0].mxu0
  %444 = vmatprep.mubr.f32.mxu0 0.0
  %v445 = vand.u32 %v238, 4294901760
  %v446 = vsub.f32 %v238, %v445
  %v447 = vand.u32 %v446, 4294901760
  %v448 = vsub.f32 %v446, %v447
  %v449 = vand.u32 %v448, 4294901760
  %450 = vmatmul.mubr.f32.gmra.mrb[0].mxu0 %v449
  %v451 = vpop.f32.mrb[0].mxu0
  %v452 = vadd.f32 0.0, %v451
  %v453 = vpop.f32.mrb[0].mxu0
  %454 = vmatprep.mubr.f32.mxu0 0.0
  %v455 = vand.u32 %v241, 4294901760
  %v456 = vsub.f32 %v241, %v455
  %v457 = vand.u32 %v456, 4294901760
  %v458 = vsub.f32 %v456, %v457
  %v459 = vand.u32 %v458, 4294901760
  %460 = vmatmul.mubr.f32.gmra.mrb[0].mxu0 %v459
  %v461 = vpop.f32.mrb[0].mxu0
  %v462 = vadd.f32 0.0, %v461
  %v463 = vpop.f32.mrb[0].mxu0
  %464 = vmatprep.mubr.f32.mxu0 0.0
  %v465 = vand.u32 %v244, 4294901760
  %v466 = vsub.f32 %v244, %v465
  %v467 = vand.u32 %v466, 4294901760
  %v468 = vsub.f32 %v466, %v467
  %v469 = vand.u32 %v468, 4294901760
  %470 = vmatmul.mubr.f32.gmra.mrb[0].mxu0 %v469
  %v471 = vpop.f32.mrb[0].mxu0
  %v472 = vadd.f32 0.0, %v471
  %v473 = vpop.f32.mrb[0].mxu0
  %474 = vdwg.mxu0
  %475 = vmatprep.subr.mxu0 0.0
  %v476 = vand.u32 %v159, 4294901760
  %v477 = vsub.f32 %v159, %v476
  %v478 = vand.u32 %v477, 4294901760
  %v479 = vsub.f32 %v477, %v478
  %v480 = vand.u32 %v479, 4294901760
  %481 = vmatpush1.msra.mxu0 %v480
  %482 = vmatprep.subr.mxu0 0.0
  %v483 = vand.u32 %v160, 4294901760
  %v484 = vsub.f32 %v160, %v483
  %v485 = vand.u32 %v484, 4294901760
  %v486 = vsub.f32 %v484, %v485
  %v487 = vand.u32 %v486, 4294901760
  %488 = vmatpush1.msra.mxu0 %v487
  %489 = vmatprep.subr.mxu0 0.0
  %v490 = vand.u32 %v161, 4294901760
  %v491 = vsub.f32 %v161, %v490
  %v492 = vand.u32 %v491, 4294901760
  %v493 = vsub.f32 %v491, %v492
  %v494 = vand.u32 %v493, 4294901760
  %495 = vmatpush1.msra.mxu0 %v494
  %496 = vmatprep.subr.mxu0 0.0
  %v497 = vand.u32 %v162, 4294901760
  %v498 = vsub.f32 %v162, %v497
  %v499 = vand.u32 %v498, 4294901760
  %v500 = vsub.f32 %v498, %v499
  %v501 = vand.u32 %v500, 4294901760
  %502 = vmatpush1.msra.mxu0 %v501
  %503 = vmatprep.subr.mxu0 0.0
  %504 = vmatpush1.msra.mxu0 0.0
  %505 = vmatprep.subr.mxu0 0.0
  %506 = vmatpush1.msra.mxu0 0.0
  %507 = vmatprep.subr.mxu0 0.0
  %508 = vmatpush1.msra.mxu0 0.0
  %509 = vmatprep.subr.mxu0 0.0
  %510 = vmatpush1.msra.mxu0 0.0
  %511 = vmatprep.subr.mxu0 0.0
  %512 = vmatpush1.msra.mxu0 0.0
  %513 = vmatprep.subr.mxu0 0.0
  %514 = vmatpush1.msra.mxu0 0.0
  %515 = vmatprep.subr.mxu0 0.0
  %516 = vmatpush1.msra.mxu0 0.0
  %517 = vmatprep.subr.mxu0 0.0
  %518 = vmatpush1.msra.mxu0 0.0
  %519 = vmatprep.subr.mxu0 0.0
  %520 = vmatpush1.msra.mxu0 0.0
  %521 = vmatprep.subr.mxu0 0.0
  %522 = vmatpush1.msra.mxu0 0.0
  %523 = vmatprep.subr.mxu0 0.0
  %524 = vmatpush1.msra.mxu0 0.0
  %525 = vmatprep.subr.mxu0 0.0
  %526 = vmatpush1.msra.mxu0 0.0
  %527 = vmatprep.subr.mxu0 0.0
  %528 = vmatpush1.msra.mxu0 0.0
  %529 = vmatprep.subr.mxu0 0.0
  %530 = vmatpush1.msra.mxu0 0.0
  %531 = vmatprep.subr.mxu0 0.0
  %532 = vmatpush1.msra.mxu0 0.0
  %533 = vmatprep.subr.mxu0 0.0
  %534 = vmatpush1.msra.mxu0 0.0
  %535 = vmatprep.subr.mxu0 0.0
  %536 = vmatpush1.msra.mxu0 0.0
  %537 = vmatprep.subr.mxu0 0.0
  %538 = vmatpush1.msra.mxu0 0.0
  %539 = vmatprep.subr.mxu0 0.0
  %540 = vmatpush1.msra.mxu0 0.0
  %541 = vmatprep.subr.mxu0 0.0
  %542 = vmatpush1.msra.mxu0 0.0
  %543 = vmatprep.subr.mxu0 0.0
  %544 = vmatpush1.msra.mxu0 0.0
  %545 = vmatprep.subr.mxu0 0.0
  %546 = vmatpush1.msra.mxu0 0.0
  %547 = vmatprep.subr.mxu0 0.0
  %548 = vmatpush1.msra.mxu0 0.0
  %549 = vmatprep.subr.mxu0 0.0
  %550 = vmatpush1.msra.mxu0 0.0
  %551 = vmatprep.subr.mxu0 0.0
  %552 = vmatpush1.msra.mxu0 0.0
  %553 = vmatprep.subr.mxu0 0.0
  %554 = vmatpush1.msra.mxu0 0.0
  %555 = vmatprep.subr.mxu0 0.0
  %556 = vmatpush1.msra.mxu0 0.0
  %557 = vmatprep.subr.mxu0 0.0
  %558 = vmatpush1.msra.mxu0 0.0
  %559 = vmatprep.mubr.f32.mxu0 0.0
  %v560 = vand.u32 %v199, 4294901760
  %561 = vmatmul.mubr.f32.gmra.mrb[0].mxu0 %v560
  %v562 = vpop.f32.mrb[0].mxu0
  %v563 = vadd.f32 %v322, %v562
  %v564 = vpop.f32.mrb[0].mxu0
  %565 = vmatprep.mubr.f32.mxu0 0.0
  %v566 = vand.u32 %v202, 4294901760
  %567 = vmatmul.mubr.f32.gmra.mrb[0].mxu0 %v566
  %v568 = vpop.f32.mrb[0].mxu0
  %v569 = vadd.f32 %v332, %v568
  %v570 = vpop.f32.mrb[0].mxu0
  %571 = vmatprep.mubr.f32.mxu0 0.0
  %v572 = vand.u32 %v205, 4294901760
  %573 = vmatmul.mubr.f32.gmra.mrb[0].mxu0 %v572
  %v574 = vpop.f32.mrb[0].mxu0
  %v575 = vadd.f32 %v342, %v574
  %v576 = vpop.f32.mrb[0].mxu0
  %577 = vmatprep.mubr.f32.mxu0 0.0
  %v578 = vand.u32 %v208, 4294901760
  %579 = vmatmul.mubr.f32.gmra.mrb[0].mxu0 %v578
  %v580 = vpop.f32.mrb[0].mxu0
  %v581 = vadd.f32 %v352, %v580
  %v582 = vpop.f32.mrb[0].mxu0
  %583 = vmatprep.mubr.f32.mxu0 0.0
  %v584 = vand.u32 %v211, 4294901760
  %585 = vmatmul.mubr.f32.gmra.mrb[0].mxu0 %v584
  %v586 = vpop.f32.mrb[0].mxu0
  %v587 = vadd.f32 %v362, %v586
  %v588 = vpop.f32.mrb[0].mxu0
  %589 = vmatprep.mubr.f32.mxu0 0.0
  %v590 = vand.u32 %v214, 4294901760
  %591 = vmatmul.mubr.f32.gmra.mrb[0].mxu0 %v590
  %v592 = vpop.f32.mrb[0].mxu0
  %v593 = vadd.f32 %v372, %v592
  %v594 = vpop.f32.mrb[0].mxu0
  %595 = vmatprep.mubr.f32.mxu0 0.0
  %v596 = vand.u32 %v217, 4294901760
  %597 = vmatmul.mubr.f32.gmra.mrb[0].mxu0 %v596
  %v598 = vpop.f32.mrb[0].mxu0
  %v599 = vadd.f32 %v382, %v598
  %v600 = vpop.f32.mrb[0].mxu0
  %601 = vmatprep.mubr.f32.mxu0 0.0
  %v602 = vand.u32 %v220, 4294901760
  %603 = vmatmul.mubr.f32.gmra.mrb[0].mxu0 %v602
  %v604 = vpop.f32.mrb[0].mxu0
  %v605 = vadd.f32 %v392, %v604
  %v606 = vpop.f32.mrb[0].mxu0
  %607 = vmatprep.mubr.f32.mxu0 0.0
  %v608 = vand.u32 %v223, 4294901760
  %609 = vmatmul.mubr.f32.gmra.mrb[0].mxu0 %v608
  %v610 = vpop.f32.mrb[0].mxu0
  %v611 = vadd.f32 %v402, %v610
  %v612 = vpop.f32.mrb[0].mxu0
  %613 = vmatprep.mubr.f32.mxu0 0.0
  %v614 = vand.u32 %v226, 4294901760
  %615 = vmatmul.mubr.f32.gmra.mrb[0].mxu0 %v614
  %v616 = vpop.f32.mrb[0].mxu0
  %v617 = vadd.f32 %v412, %v616
  %v618 = vpop.f32.mrb[0].mxu0
  %619 = vmatprep.mubr.f32.mxu0 0.0
  %v620 = vand.u32 %v229, 4294901760
  %621 = vmatmul.mubr.f32.gmra.mrb[0].mxu0 %v620
  %v622 = vpop.f32.mrb[0].mxu0
  %v623 = vadd.f32 %v422, %v622
  %v624 = vpop.f32.mrb[0].mxu0
  %625 = vmatprep.mubr.f32.mxu0 0.0
  %v626 = vand.u32 %v232, 4294901760
  %627 = vmatmul.mubr.f32.gmra.mrb[0].mxu0 %v626
  %v628 = vpop.f32.mrb[0].mxu0
  %v629 = vadd.f32 %v432, %v628
  %v630 = vpop.f32.mrb[0].mxu0
  %631 = vmatprep.mubr.f32.mxu0 0.0
  %v632 = vand.u32 %v235, 4294901760
  %633 = vmatmul.mubr.f32.gmra.mrb[0].mxu0 %v632
  %v634 = vpop.f32.mrb[0].mxu0
  %v635 = vadd.f32 %v442, %v634
  %v636 = vpop.f32.mrb[0].mxu0
  %637 = vmatprep.mubr.f32.mxu0 0.0
  %v638 = vand.u32 %v238, 4294901760
  %639 = vmatmul.mubr.f32.gmra.mrb[0].mxu0 %v638
  %v640 = vpop.f32.mrb[0].mxu0
  %v641 = vadd.f32 %v452, %v640
  %v642 = vpop.f32.mrb[0].mxu0
  %643 = vmatprep.mubr.f32.mxu0 0.0
  %v644 = vand.u32 %v241, 4294901760
  %645 = vmatmul.mubr.f32.gmra.mrb[0].mxu0 %v644
  %v646 = vpop.f32.mrb[0].mxu0
  %v647 = vadd.f32 %v462, %v646
  %v648 = vpop.f32.mrb[0].mxu0
  %649 = vmatprep.mubr.f32.mxu0 0.0
  %v650 = vand.u32 %v244, 4294901760
  %651 = vmatmul.mubr.f32.gmra.mrb[0].mxu0 %v650
  %v652 = vpop.f32.mrb[0].mxu0
  %v653 = vadd.f32 %v472, %v652
  %v654 = vpop.f32.mrb[0].mxu0
  %655 = vdwg.mxu0
  %656 = vmatprep.subr.mxu0 0.0
  %v657 = vand.u32 %v159, 4294901760
  %v658 = vsub.f32 %v159, %v657
  %659 = vmatpush1.msra.mxu0 %v658
  %660 = vmatprep.subr.mxu0 0.0
  %v661 = vand.u32 %v160, 4294901760
  %v662 = vsub.f32 %v160, %v661
  %663 = vmatpush1.msra.mxu0 %v662
  %664 = vmatprep.subr.mxu0 0.0
  %v665 = vand.u32 %v161, 4294901760
  %v666 = vsub.f32 %v161, %v665
  %667 = vmatpush1.msra.mxu0 %v666
  %668 = vmatprep.subr.mxu0 0.0
  %v669 = vand.u32 %v162, 4294901760
  %v670 = vsub.f32 %v162, %v669
  %671 = vmatpush1.msra.mxu0 %v670
  %672 = vmatprep.subr.mxu0 0.0
  %673 = vmatpush1.msra.mxu0 0.0
  %674 = vmatprep.subr.mxu0 0.0
  %675 = vmatpush1.msra.mxu0 0.0
  %676 = vmatprep.subr.mxu0 0.0
  %677 = vmatpush1.msra.mxu0 0.0
  %678 = vmatprep.subr.mxu0 0.0
  %679 = vmatpush1.msra.mxu0 0.0
  %680 = vmatprep.subr.mxu0 0.0
  %681 = vmatpush1.msra.mxu0 0.0
  %682 = vmatprep.subr.mxu0 0.0
  %683 = vmatpush1.msra.mxu0 0.0
  %684 = vmatprep.subr.mxu0 0.0
  %685 = vmatpush1.msra.mxu0 0.0
  %686 = vmatprep.subr.mxu0 0.0
  %687 = vmatpush1.msra.mxu0 0.0
  %688 = vmatprep.subr.mxu0 0.0
  %689 = vmatpush1.msra.mxu0 0.0
  %690 = vmatprep.subr.mxu0 0.0
  %691 = vmatpush1.msra.mxu0 0.0
  %692 = vmatprep.subr.mxu0 0.0
  %693 = vmatpush1.msra.mxu0 0.0
  %694 = vmatprep.subr.mxu0 0.0
  %695 = vmatpush1.msra.mxu0 0.0
  %696 = vmatprep.subr.mxu0 0.0
  %697 = vmatpush1.msra.mxu0 0.0
  %698 = vmatprep.subr.mxu0 0.0
  %699 = vmatpush1.msra.mxu0 0.0
  %700 = vmatprep.subr.mxu0 0.0
  %701 = vmatpush1.msra.mxu0 0.0
  %702 = vmatprep.subr.mxu0 0.0
  %703 = vmatpush1.msra.mxu0 0.0
  %704 = vmatprep.subr.mxu0 0.0
  %705 = vmatpush1.msra.mxu0 0.0
  %706 = vmatprep.subr.mxu0 0.0
  %707 = vmatpush1.msra.mxu0 0.0
  %708 = vmatprep.subr.mxu0 0.0
  %709 = vmatpush1.msra.mxu0 0.0
  %710 = vmatprep.subr.mxu0 0.0
  %711 = vmatpush1.msra.mxu0 0.0
  %712 = vmatprep.subr.mxu0 0.0
  %713 = vmatpush1.msra.mxu0 0.0
  %714 = vmatprep.subr.mxu0 0.0
  %715 = vmatpush1.msra.mxu0 0.0
  %716 = vmatprep.subr.mxu0 0.0
  %717 = vmatpush1.msra.mxu0 0.0
  %718 = vmatprep.subr.mxu0 0.0
  %719 = vmatpush1.msra.mxu0 0.0
  %720 = vmatprep.subr.mxu0 0.0
  %721 = vmatpush1.msra.mxu0 0.0
  %722 = vmatprep.subr.mxu0 0.0
  %723 = vmatpush1.msra.mxu0 0.0
  %724 = vmatprep.subr.mxu0 0.0
  %725 = vmatpush1.msra.mxu0 0.0
  %726 = vmatprep.subr.mxu0 0.0
  %727 = vmatpush1.msra.mxu0 0.0
  %728 = vmatprep.mubr.f32.mxu0 0.0
  %v729 = vand.u32 %v199, 4294901760
  %v730 = vsub.f32 %v199, %v729
  %731 = vmatmul.mubr.f32.gmra.mrb[0].mxu0 %v730
  %v732 = vpop.f32.mrb[0].mxu0
  %v733 = vadd.f32 %v563, %v732
  %v734 = vpop.f32.mrb[0].mxu0
  %735 = vmatprep.mubr.f32.mxu0 0.0
  %v736 = vand.u32 %v202, 4294901760
  %v737 = vsub.f32 %v202, %v736
  %738 = vmatmul.mubr.f32.gmra.mrb[0].mxu0 %v737
  %v739 = vpop.f32.mrb[0].mxu0
  %v740 = vadd.f32 %v569, %v739
  %v741 = vpop.f32.mrb[0].mxu0
  %742 = vmatprep.mubr.f32.mxu0 0.0
  %v743 = vand.u32 %v205, 4294901760
  %v744 = vsub.f32 %v205, %v743
  %745 = vmatmul.mubr.f32.gmra.mrb[0].mxu0 %v744
  %v746 = vpop.f32.mrb[0].mxu0
  %v747 = vadd.f32 %v575, %v746
  %v748 = vpop.f32.mrb[0].mxu0
  %749 = vmatprep.mubr.f32.mxu0 0.0
  %v750 = vand.u32 %v208, 4294901760
  %v751 = vsub.f32 %v208, %v750
  %752 = vmatmul.mubr.f32.gmra.mrb[0].mxu0 %v751
  %v753 = vpop.f32.mrb[0].mxu0
  %v754 = vadd.f32 %v581, %v753
  %v755 = vpop.f32.mrb[0].mxu0
  %756 = vmatprep.mubr.f32.mxu0 0.0
  %v757 = vand.u32 %v211, 4294901760
  %v758 = vsub.f32 %v211, %v757
  %759 = vmatmul.mubr.f32.gmra.mrb[0].mxu0 %v758
  %v760 = vpop.f32.mrb[0].mxu0
  %v761 = vadd.f32 %v587, %v760
  %v762 = vpop.f32.mrb[0].mxu0
  %763 = vmatprep.mubr.f32.mxu0 0.0
  %v764 = vand.u32 %v214, 4294901760
  %v765 = vsub.f32 %v214, %v764
  %766 = vmatmul.mubr.f32.gmra.mrb[0].mxu0 %v765
  %v767 = vpop.f32.mrb[0].mxu0
  %v768 = vadd.f32 %v593, %v767
  %v769 = vpop.f32.mrb[0].mxu0
  %770 = vmatprep.mubr.f32.mxu0 0.0
  %v771 = vand.u32 %v217, 4294901760
  %v772 = vsub.f32 %v217, %v771
  %773 = vmatmul.mubr.f32.gmra.mrb[0].mxu0 %v772
  %v774 = vpop.f32.mrb[0].mxu0
  %v775 = vadd.f32 %v599, %v774
  %v776 = vpop.f32.mrb[0].mxu0
  %777 = vmatprep.mubr.f32.mxu0 0.0
  %v778 = vand.u32 %v220, 4294901760
  %v779 = vsub.f32 %v220, %v778
  %780 = vmatmul.mubr.f32.gmra.mrb[0].mxu0 %v779
  %v781 = vpop.f32.mrb[0].mxu0
  %v782 = vadd.f32 %v605, %v781
  %v783 = vpop.f32.mrb[0].mxu0
  %784 = vmatprep.mubr.f32.mxu0 0.0
  %v785 = vand.u32 %v223, 4294901760
  %v786 = vsub.f32 %v223, %v785
  %787 = vmatmul.mubr.f32.gmra.mrb[0].mxu0 %v786
  %v788 = vpop.f32.mrb[0].mxu0
  %v789 = vadd.f32 %v611, %v788
  %v790 = vpop.f32.mrb[0].mxu0
  %791 = vmatprep.mubr.f32.mxu0 0.0
  %v792 = vand.u32 %v226, 4294901760
  %v793 = vsub.f32 %v226, %v792
  %794 = vmatmul.mubr.f32.gmra.mrb[0].mxu0 %v793
  %v795 = vpop.f32.mrb[0].mxu0
  %v796 = vadd.f32 %v617, %v795
  %v797 = vpop.f32.mrb[0].mxu0
  %798 = vmatprep.mubr.f32.mxu0 0.0
  %v799 = vand.u32 %v229, 4294901760
  %v800 = vsub.f32 %v229, %v799
  %801 = vmatmul.mubr.f32.gmra.mrb[0].mxu0 %v800
  %v802 = vpop.f32.mrb[0].mxu0
  %v803 = vadd.f32 %v623, %v802
  %v804 = vpop.f32.mrb[0].mxu0
  %805 = vmatprep.mubr.f32.mxu0 0.0
  %v806 = vand.u32 %v232, 4294901760
  %v807 = vsub.f32 %v232, %v806
  %808 = vmatmul.mubr.f32.gmra.mrb[0].mxu0 %v807
  %v809 = vpop.f32.mrb[0].mxu0
  %v810 = vadd.f32 %v629, %v809
  %v811 = vpop.f32.mrb[0].mxu0
  %812 = vmatprep.mubr.f32.mxu0 0.0
  %v813 = vand.u32 %v235, 4294901760
  %v814 = vsub.f32 %v235, %v813
  %815 = vmatmul.mubr.f32.gmra.mrb[0].mxu0 %v814
  %v816 = vpop.f32.mrb[0].mxu0
  %v817 = vadd.f32 %v635, %v816
  %v818 = vpop.f32.mrb[0].mxu0
  %819 = vmatprep.mubr.f32.mxu0 0.0
  %v820 = vand.u32 %v238, 4294901760
  %v821 = vsub.f32 %v238, %v820
  %822 = vmatmul.mubr.f32.gmra.mrb[0].mxu0 %v821
  %v823 = vpop.f32.mrb[0].mxu0
  %v824 = vadd.f32 %v641, %v823
  %v825 = vpop.f32.mrb[0].mxu0
  %826 = vmatprep.mubr.f32.mxu0 0.0
  %v827 = vand.u32 %v241, 4294901760
  %v828 = vsub.f32 %v241, %v827
  %829 = vmatmul.mubr.f32.gmra.mrb[0].mxu0 %v828
  %v830 = vpop.f32.mrb[0].mxu0
  %v831 = vadd.f32 %v647, %v830
  %v832 = vpop.f32.mrb[0].mxu0
  %833 = vmatprep.mubr.f32.mxu0 0.0
  %v834 = vand.u32 %v244, 4294901760
  %v835 = vsub.f32 %v244, %v834
  %836 = vmatmul.mubr.f32.gmra.mrb[0].mxu0 %v835
  %v837 = vpop.f32.mrb[0].mxu0
  %v838 = vadd.f32 %v653, %v837
  %v839 = vpop.f32.mrb[0].mxu0
  %840 = vdwg.mxu0
  %841 = vmatprep.subr.mxu0 0.0
  %v842 = vand.u32 %v159, 4294901760
  %843 = vmatpush1.msra.mxu0 %v842
  %844 = vmatprep.subr.mxu0 0.0
  %v845 = vand.u32 %v160, 4294901760
  %846 = vmatpush1.msra.mxu0 %v845
  %847 = vmatprep.subr.mxu0 0.0
  %v848 = vand.u32 %v161, 4294901760
  %849 = vmatpush1.msra.mxu0 %v848
  %850 = vmatprep.subr.mxu0 0.0
  %v851 = vand.u32 %v162, 4294901760
  %852 = vmatpush1.msra.mxu0 %v851
  %853 = vmatprep.subr.mxu0 0.0
  %854 = vmatpush1.msra.mxu0 0.0
  %855 = vmatprep.subr.mxu0 0.0
  %856 = vmatpush1.msra.mxu0 0.0
  %857 = vmatprep.subr.mxu0 0.0
  %858 = vmatpush1.msra.mxu0 0.0
  %859 = vmatprep.subr.mxu0 0.0
  %860 = vmatpush1.msra.mxu0 0.0
  %861 = vmatprep.subr.mxu0 0.0
  %862 = vmatpush1.msra.mxu0 0.0
  %863 = vmatprep.subr.mxu0 0.0
  %864 = vmatpush1.msra.mxu0 0.0
  %865 = vmatprep.subr.mxu0 0.0
  %866 = vmatpush1.msra.mxu0 0.0
  %867 = vmatprep.subr.mxu0 0.0
  %868 = vmatpush1.msra.mxu0 0.0
  %869 = vmatprep.subr.mxu0 0.0
  %870 = vmatpush1.msra.mxu0 0.0
  %871 = vmatprep.subr.mxu0 0.0
  %872 = vmatpush1.msra.mxu0 0.0
  %873 = vmatprep.subr.mxu0 0.0
  %874 = vmatpush1.msra.mxu0 0.0
  %875 = vmatprep.subr.mxu0 0.0
  %876 = vmatpush1.msra.mxu0 0.0
  %877 = vmatprep.subr.mxu0 0.0
  %878 = vmatpush1.msra.mxu0 0.0
  %879 = vmatprep.subr.mxu0 0.0
  %880 = vmatpush1.msra.mxu0 0.0
  %881 = vmatprep.subr.mxu0 0.0
  %882 = vmatpush1.msra.mxu0 0.0
  %883 = vmatprep.subr.mxu0 0.0
  %884 = vmatpush1.msra.mxu0 0.0
  %885 = vmatprep.subr.mxu0 0.0
  %886 = vmatpush1.msra.mxu0 0.0
  %887 = vmatprep.subr.mxu0 0.0
  %888 = vmatpush1.msra.mxu0 0.0
  %889 = vmatprep.subr.mxu0 0.0
  %890 = vmatpush1.msra.mxu0 0.0
  %891 = vmatprep.subr.mxu0 0.0
  %892 = vmatpush1.msra.mxu0 0.0
  %893 = vmatprep.subr.mxu0 0.0
  %894 = vmatpush1.msra.mxu0 0.0
  %895 = vmatprep.subr.mxu0 0.0
  %896 = vmatpush1.msra.mxu0 0.0
  %897 = vmatprep.subr.mxu0 0.0
  %898 = vmatpush1.msra.mxu0 0.0
  %899 = vmatprep.subr.mxu0 0.0
  %900 = vmatpush1.msra.mxu0 0.0
  %901 = vmatprep.subr.mxu0 0.0
  %902 = vmatpush1.msra.mxu0 0.0
  %903 = vmatprep.subr.mxu0 0.0
  %904 = vmatpush1.msra.mxu0 0.0
  %905 = vmatprep.subr.mxu0 0.0
  %906 = vmatpush1.msra.mxu0 0.0
  %907 = vmatprep.subr.mxu0 0.0
  %908 = vmatpush1.msra.mxu0 0.0
  %909 = vmatprep.mubr.f32.mxu0 0.0
  %v910 = vand.u32 %v199, 4294901760
  %v911 = vsub.f32 %v199, %v910
  %v912 = vand.u32 %v911, 4294901760
  %913 = vmatmul.mubr.f32.gmra.mrb[0].mxu0 %v912
  %v914 = vpop.f32.mrb[0].mxu0
  %v915 = vadd.f32 %v733, %v914
  %v916 = vpop.f32.mrb[0].mxu0
  %917 = vmatprep.mubr.f32.mxu0 0.0
  %v918 = vand.u32 %v202, 4294901760
  %v919 = vsub.f32 %v202, %v918
  %v920 = vand.u32 %v919, 4294901760
  %921 = vmatmul.mubr.f32.gmra.mrb[0].mxu0 %v920
  %v922 = vpop.f32.mrb[0].mxu0
  %v923 = vadd.f32 %v740, %v922
  %v924 = vpop.f32.mrb[0].mxu0
  %925 = vmatprep.mubr.f32.mxu0 0.0
  %v926 = vand.u32 %v205, 4294901760
  %v927 = vsub.f32 %v205, %v926
  %v928 = vand.u32 %v927, 4294901760
  %929 = vmatmul.mubr.f32.gmra.mrb[0].mxu0 %v928
  %v930 = vpop.f32.mrb[0].mxu0
  %v931 = vadd.f32 %v747, %v930
  %v932 = vpop.f32.mrb[0].mxu0
  %933 = vmatprep.mubr.f32.mxu0 0.0
  %v934 = vand.u32 %v208, 4294901760
  %v935 = vsub.f32 %v208, %v934
  %v936 = vand.u32 %v935, 4294901760
  %937 = vmatmul.mubr.f32.gmra.mrb[0].mxu0 %v936
  %v938 = vpop.f32.mrb[0].mxu0
  %v939 = vadd.f32 %v754, %v938
  %v940 = vpop.f32.mrb[0].mxu0
  %941 = vmatprep.mubr.f32.mxu0 0.0
  %v942 = vand.u32 %v211, 4294901760
  %v943 = vsub.f32 %v211, %v942
  %v944 = vand.u32 %v943, 4294901760
  %945 = vmatmul.mubr.f32.gmra.mrb[0].mxu0 %v944
  %v946 = vpop.f32.mrb[0].mxu0
  %v947 = vadd.f32 %v761, %v946
  %v948 = vpop.f32.mrb[0].mxu0
  %949 = vmatprep.mubr.f32.mxu0 0.0
  %v950 = vand.u32 %v214, 4294901760
  %v951 = vsub.f32 %v214, %v950
  %v952 = vand.u32 %v951, 4294901760
  %953 = vmatmul.mubr.f32.gmra.mrb[0].mxu0 %v952
  %v954 = vpop.f32.mrb[0].mxu0
  %v955 = vadd.f32 %v768, %v954
  %v956 = vpop.f32.mrb[0].mxu0
  %957 = vmatprep.mubr.f32.mxu0 0.0
  %v958 = vand.u32 %v217, 4294901760
  %v959 = vsub.f32 %v217, %v958
  %v960 = vand.u32 %v959, 4294901760
  %961 = vmatmul.mubr.f32.gmra.mrb[0].mxu0 %v960
  %v962 = vpop.f32.mrb[0].mxu0
  %v963 = vadd.f32 %v775, %v962
  %v964 = vpop.f32.mrb[0].mxu0
  %965 = vmatprep.mubr.f32.mxu0 0.0
  %v966 = vand.u32 %v220, 4294901760
  %v967 = vsub.f32 %v220, %v966
  %v968 = vand.u32 %v967, 4294901760
  %969 = vmatmul.mubr.f32.gmra.mrb[0].mxu0 %v968
  %v970 = vpop.f32.mrb[0].mxu0
  %v971 = vadd.f32 %v782, %v970
  %v972 = vpop.f32.mrb[0].mxu0
  %973 = vmatprep.mubr.f32.mxu0 0.0
  %v974 = vand.u32 %v223, 4294901760
  %v975 = vsub.f32 %v223, %v974
  %v976 = vand.u32 %v975, 4294901760
  %977 = vmatmul.mubr.f32.gmra.mrb[0].mxu0 %v976
  %v978 = vpop.f32.mrb[0].mxu0
  %v979 = vadd.f32 %v789, %v978
  %v980 = vpop.f32.mrb[0].mxu0
  %981 = vmatprep.mubr.f32.mxu0 0.0
  %v982 = vand.u32 %v226, 4294901760
  %v983 = vsub.f32 %v226, %v982
  %v984 = vand.u32 %v983, 4294901760
  %985 = vmatmul.mubr.f32.gmra.mrb[0].mxu0 %v984
  %v986 = vpop.f32.mrb[0].mxu0
  %v987 = vadd.f32 %v796, %v986
  %v988 = vpop.f32.mrb[0].mxu0
  %989 = vmatprep.mubr.f32.mxu0 0.0
  %v990 = vand.u32 %v229, 4294901760
  %v991 = vsub.f32 %v229, %v990
  %v992 = vand.u32 %v991, 4294901760
  %993 = vmatmul.mubr.f32.gmra.mrb[0].mxu0 %v992
  %v994 = vpop.f32.mrb[0].mxu0
  %v995 = vadd.f32 %v803, %v994
  %v996 = vpop.f32.mrb[0].mxu0
  %997 = vmatprep.mubr.f32.mxu0 0.0
  %v998 = vand.u32 %v232, 4294901760
  %v999 = vsub.f32 %v232, %v998
  %v1000 = vand.u32 %v999, 4294901760
  %1001 = vmatmul.mubr.f32.gmra.mrb[0].mxu0 %v1000
  %v1002 = vpop.f32.mrb[0].mxu0
  %v1003 = vadd.f32 %v810, %v1002
  %v1004 = vpop.f32.mrb[0].mxu0
  %1005 = vmatprep.mubr.f32.mxu0 0.0
  %v1006 = vand.u32 %v235, 4294901760
  %v1007 = vsub.f32 %v235, %v1006
  %v1008 = vand.u32 %v1007, 4294901760
  %1009 = vmatmul.mubr.f32.gmra.mrb[0].mxu0 %v1008
  %v1010 = vpop.f32.mrb[0].mxu0
  %v1011 = vadd.f32 %v817, %v1010
  %v1012 = vpop.f32.mrb[0].mxu0
  %1013 = vmatprep.mubr.f32.mxu0 0.0
  %v1014 = vand.u32 %v238, 4294901760
  %v1015 = vsub.f32 %v238, %v1014
  %v1016 = vand.u32 %v1015, 4294901760
  %1017 = vmatmul.mubr.f32.gmra.mrb[0].mxu0 %v1016
  %v1018 = vpop.f32.mrb[0].mxu0
  %v1019 = vadd.f32 %v824, %v1018
  %v1020 = vpop.f32.mrb[0].mxu0
  %1021 = vmatprep.mubr.f32.mxu0 0.0
  %v1022 = vand.u32 %v241, 4294901760
  %v1023 = vsub.f32 %v241, %v1022
  %v1024 = vand.u32 %v1023, 4294901760
  %1025 = vmatmul.mubr.f32.gmra.mrb[0].mxu0 %v1024
  %v1026 = vpop.f32.mrb[0].mxu0
  %v1027 = vadd.f32 %v831, %v1026
  %v1028 = vpop.f32.mrb[0].mxu0
  %1029 = vmatprep.mubr.f32.mxu0 0.0
  %v1030 = vand.u32 %v244, 4294901760
  %v1031 = vsub.f32 %v244, %v1030
  %v1032 = vand.u32 %v1031, 4294901760
  %1033 = vmatmul.mubr.f32.gmra.mrb[0].mxu0 %v1032
  %v1034 = vpop.f32.mrb[0].mxu0
  %v1035 = vadd.f32 %v838, %v1034
  %v1036 = vpop.f32.mrb[0].mxu0
  %1037 = vdwg.mxu0
  %1038 = vmatprep.subr.mxu0 0.0
  %v1039 = vand.u32 %v159, 4294901760
  %v1040 = vsub.f32 %v159, %v1039
  %v1041 = vand.u32 %v1040, 4294901760
  %1042 = vmatpush1.msra.mxu0 %v1041
  %1043 = vmatprep.subr.mxu0 0.0
  %v1044 = vand.u32 %v160, 4294901760
  %v1045 = vsub.f32 %v160, %v1044
  %v1046 = vand.u32 %v1045, 4294901760
  %1047 = vmatpush1.msra.mxu0 %v1046
  %1048 = vmatprep.subr.mxu0 0.0
  %v1049 = vand.u32 %v161, 4294901760
  %v1050 = vsub.f32 %v161, %v1049
  %v1051 = vand.u32 %v1050, 4294901760
  %1052 = vmatpush1.msra.mxu0 %v1051
  %1053 = vmatprep.subr.mxu0 0.0
  %v1054 = vand.u32 %v162, 4294901760
  %v1055 = vsub.f32 %v162, %v1054
  %v1056 = vand.u32 %v1055, 4294901760
  %1057 = vmatpush1.msra.mxu0 %v1056
  %1058 = vmatprep.subr.mxu0 0.0
  %1059 = vmatpush1.msra.mxu0 0.0
  %1060 = vmatprep.subr.mxu0 0.0
  %1061 = vmatpush1.msra.mxu0 0.0
  %1062 = vmatprep.subr.mxu0 0.0
  %1063 = vmatpush1.msra.mxu0 0.0
  %1064 = vmatprep.subr.mxu0 0.0
  %1065 = vmatpush1.msra.mxu0 0.0
  %1066 = vmatprep.subr.mxu0 0.0
  %1067 = vmatpush1.msra.mxu0 0.0
  %1068 = vmatprep.subr.mxu0 0.0
  %1069 = vmatpush1.msra.mxu0 0.0
  %1070 = vmatprep.subr.mxu0 0.0
  %1071 = vmatpush1.msra.mxu0 0.0
  %1072 = vmatprep.subr.mxu0 0.0
  %1073 = vmatpush1.msra.mxu0 0.0
  %1074 = vmatprep.subr.mxu0 0.0
  %1075 = vmatpush1.msra.mxu0 0.0
  %1076 = vmatprep.subr.mxu0 0.0
  %1077 = vmatpush1.msra.mxu0 0.0
  %1078 = vmatprep.subr.mxu0 0.0
  %1079 = vmatpush1.msra.mxu0 0.0
  %1080 = vmatprep.subr.mxu0 0.0
  %1081 = vmatpush1.msra.mxu0 0.0
  %1082 = vmatprep.subr.mxu0 0.0
  %1083 = vmatpush1.msra.mxu0 0.0
  %1084 = vmatprep.subr.mxu0 0.0
  %1085 = vmatpush1.msra.mxu0 0.0
  %1086 = vmatprep.subr.mxu0 0.0
  %1087 = vmatpush1.msra.mxu0 0.0
  %1088 = vmatprep.subr.mxu0 0.0
  %1089 = vmatpush1.msra.mxu0 0.0
  %1090 = vmatprep.subr.mxu0 0.0
  %1091 = vmatpush1.msra.mxu0 0.0
  %1092 = vmatprep.subr.mxu0 0.0
  %1093 = vmatpush1.msra.mxu0 0.0
  %1094 = vmatprep.subr.mxu0 0.0
  %1095 = vmatpush1.msra.mxu0 0.0
  %1096 = vmatprep.subr.mxu0 0.0
  %1097 = vmatpush1.msra.mxu0 0.0
  %1098 = vmatprep.subr.mxu0 0.0
  %1099 = vmatpush1.msra.mxu0 0.0
  %1100 = vmatprep.subr.mxu0 0.0
  %1101 = vmatpush1.msra.mxu0 0.0
  %1102 = vmatprep.subr.mxu0 0.0
  %1103 = vmatpush1.msra.mxu0 0.0
  %1104 = vmatprep.subr.mxu0 0.0
  %1105 = vmatpush1.msra.mxu0 0.0
  %1106 = vmatprep.subr.mxu0 0.0
  %1107 = vmatpush1.msra.mxu0 0.0
  %1108 = vmatprep.subr.mxu0 0.0
  %1109 = vmatpush1.msra.mxu0 0.0
  %1110 = vmatprep.subr.mxu0 0.0
  %1111 = vmatpush1.msra.mxu0 0.0
  %1112 = vmatprep.subr.mxu0 0.0
  %1113 = vmatpush1.msra.mxu0 0.0
  %1114 = vmatprep.mubr.f32.mxu0 0.0
  %v1115 = vand.u32 %v199, 4294901760
  %1116 = vmatmul.mubr.f32.gmra.mrb[0].mxu0 %v1115
  %v1117 = vpop.f32.mrb[0].mxu0
  %v1118 = vadd.f32 %v915, %v1117
  %v1119 = vpop.f32.mrb[0].mxu0
  %1120 = vmatprep.mubr.f32.mxu0 0.0
  %v1121 = vand.u32 %v202, 4294901760
  %1122 = vmatmul.mubr.f32.gmra.mrb[0].mxu0 %v1121
  %v1123 = vpop.f32.mrb[0].mxu0
  %v1124 = vadd.f32 %v923, %v1123
  %v1125 = vpop.f32.mrb[0].mxu0
  %1126 = vmatprep.mubr.f32.mxu0 0.0
  %v1127 = vand.u32 %v205, 4294901760
  %1128 = vmatmul.mubr.f32.gmra.mrb[0].mxu0 %v1127
  %v1129 = vpop.f32.mrb[0].mxu0
  %v1130 = vadd.f32 %v931, %v1129
  %v1131 = vpop.f32.mrb[0].mxu0
  %1132 = vmatprep.mubr.f32.mxu0 0.0
  %v1133 = vand.u32 %v208, 4294901760
  %1134 = vmatmul.mubr.f32.gmra.mrb[0].mxu0 %v1133
  %v1135 = vpop.f32.mrb[0].mxu0
  %v1136 = vadd.f32 %v939, %v1135
  %v1137 = vpop.f32.mrb[0].mxu0
  %1138 = vmatprep.mubr.f32.mxu0 0.0
  %v1139 = vand.u32 %v211, 4294901760
  %1140 = vmatmul.mubr.f32.gmra.mrb[0].mxu0 %v1139
  %v1141 = vpop.f32.mrb[0].mxu0
  %v1142 = vadd.f32 %v947, %v1141
  %v1143 = vpop.f32.mrb[0].mxu0
  %1144 = vmatprep.mubr.f32.mxu0 0.0
  %v1145 = vand.u32 %v214, 4294901760
  %1146 = vmatmul.mubr.f32.gmra.mrb[0].mxu0 %v1145
  %v1147 = vpop.f32.mrb[0].mxu0
  %v1148 = vadd.f32 %v955, %v1147
  %v1149 = vpop.f32.mrb[0].mxu0
  %1150 = vmatprep.mubr.f32.mxu0 0.0
  %v1151 = vand.u32 %v217, 4294901760
  %1152 = vmatmul.mubr.f32.gmra.mrb[0].mxu0 %v1151
  %v1153 = vpop.f32.mrb[0].mxu0
  %v1154 = vadd.f32 %v963, %v1153
  %v1155 = vpop.f32.mrb[0].mxu0
  %1156 = vmatprep.mubr.f32.mxu0 0.0
  %v1157 = vand.u32 %v220, 4294901760
  %1158 = vmatmul.mubr.f32.gmra.mrb[0].mxu0 %v1157
  %v1159 = vpop.f32.mrb[0].mxu0
  %v1160 = vadd.f32 %v971, %v1159
  %v1161 = vpop.f32.mrb[0].mxu0
  %1162 = vmatprep.mubr.f32.mxu0 0.0
  %v1163 = vand.u32 %v223, 4294901760
  %1164 = vmatmul.mubr.f32.gmra.mrb[0].mxu0 %v1163
  %v1165 = vpop.f32.mrb[0].mxu0
  %v1166 = vadd.f32 %v979, %v1165
  %v1167 = vpop.f32.mrb[0].mxu0
  %1168 = vmatprep.mubr.f32.mxu0 0.0
  %v1169 = vand.u32 %v226, 4294901760
  %1170 = vmatmul.mubr.f32.gmra.mrb[0].mxu0 %v1169
  %v1171 = vpop.f32.mrb[0].mxu0
  %v1172 = vadd.f32 %v987, %v1171
  %v1173 = vpop.f32.mrb[0].mxu0
  %1174 = vmatprep.mubr.f32.mxu0 0.0
  %v1175 = vand.u32 %v229, 4294901760
  %1176 = vmatmul.mubr.f32.gmra.mrb[0].mxu0 %v1175
  %v1177 = vpop.f32.mrb[0].mxu0
  %v1178 = vadd.f32 %v995, %v1177
  %v1179 = vpop.f32.mrb[0].mxu0
  %1180 = vmatprep.mubr.f32.mxu0 0.0
  %v1181 = vand.u32 %v232, 4294901760
  %1182 = vmatmul.mubr.f32.gmra.mrb[0].mxu0 %v1181
  %v1183 = vpop.f32.mrb[0].mxu0
  %v1184 = vadd.f32 %v1003, %v1183
  %v1185 = vpop.f32.mrb[0].mxu0
  %1186 = vmatprep.mubr.f32.mxu0 0.0
  %v1187 = vand.u32 %v235, 4294901760
  %1188 = vmatmul.mubr.f32.gmra.mrb[0].mxu0 %v1187
  %v1189 = vpop.f32.mrb[0].mxu0
  %v1190 = vadd.f32 %v1011, %v1189
  %v1191 = vpop.f32.mrb[0].mxu0
  %1192 = vmatprep.mubr.f32.mxu0 0.0
  %v1193 = vand.u32 %v238, 4294901760
  %1194 = vmatmul.mubr.f32.gmra.mrb[0].mxu0 %v1193
  %v1195 = vpop.f32.mrb[0].mxu0
  %v1196 = vadd.f32 %v1019, %v1195
  %v1197 = vpop.f32.mrb[0].mxu0
  %1198 = vmatprep.mubr.f32.mxu0 0.0
  %v1199 = vand.u32 %v241, 4294901760
  %1200 = vmatmul.mubr.f32.gmra.mrb[0].mxu0 %v1199
  %v1201 = vpop.f32.mrb[0].mxu0
  %v1202 = vadd.f32 %v1027, %v1201
  %v1203 = vpop.f32.mrb[0].mxu0
  %1204 = vmatprep.mubr.f32.mxu0 0.0
  %v1205 = vand.u32 %v244, 4294901760
  %1206 = vmatmul.mubr.f32.gmra.mrb[0].mxu0 %v1205
  %v1207 = vpop.f32.mrb[0].mxu0
  %v1208 = vadd.f32 %v1035, %v1207
  %v1209 = vpop.f32.mrb[0].mxu0
  %1210 = vdwg.mxu0
  %1211 = vmatprep.subr.mxu0 0.0
  %v1212 = vand.u32 %v159, 4294901760
  %1213 = vmatpush1.msra.mxu0 %v1212
  %1214 = vmatprep.subr.mxu0 0.0
  %v1215 = vand.u32 %v160, 4294901760
  %1216 = vmatpush1.msra.mxu0 %v1215
  %1217 = vmatprep.subr.mxu0 0.0
  %v1218 = vand.u32 %v161, 4294901760
  %1219 = vmatpush1.msra.mxu0 %v1218
  %1220 = vmatprep.subr.mxu0 0.0
  %v1221 = vand.u32 %v162, 4294901760
  %1222 = vmatpush1.msra.mxu0 %v1221
  %1223 = vmatprep.subr.mxu0 0.0
  %1224 = vmatpush1.msra.mxu0 0.0
  %1225 = vmatprep.subr.mxu0 0.0
  %1226 = vmatpush1.msra.mxu0 0.0
  %1227 = vmatprep.subr.mxu0 0.0
  %1228 = vmatpush1.msra.mxu0 0.0
  %1229 = vmatprep.subr.mxu0 0.0
  %1230 = vmatpush1.msra.mxu0 0.0
  %1231 = vmatprep.subr.mxu0 0.0
  %1232 = vmatpush1.msra.mxu0 0.0
  %1233 = vmatprep.subr.mxu0 0.0
  %1234 = vmatpush1.msra.mxu0 0.0
  %1235 = vmatprep.subr.mxu0 0.0
  %1236 = vmatpush1.msra.mxu0 0.0
  %1237 = vmatprep.subr.mxu0 0.0
  %1238 = vmatpush1.msra.mxu0 0.0
  %1239 = vmatprep.subr.mxu0 0.0
  %1240 = vmatpush1.msra.mxu0 0.0
  %1241 = vmatprep.subr.mxu0 0.0
  %1242 = vmatpush1.msra.mxu0 0.0
  %1243 = vmatprep.subr.mxu0 0.0
  %1244 = vmatpush1.msra.mxu0 0.0
  %1245 = vmatprep.subr.mxu0 0.0
  %1246 = vmatpush1.msra.mxu0 0.0
  %1247 = vmatprep.subr.mxu0 0.0
  %1248 = vmatpush1.msra.mxu0 0.0
  %1249 = vmatprep.subr.mxu0 0.0
  %1250 = vmatpush1.msra.mxu0 0.0
  %1251 = vmatprep.subr.mxu0 0.0
  %1252 = vmatpush1.msra.mxu0 0.0
  %1253 = vmatprep.subr.mxu0 0.0
  %1254 = vmatpush1.msra.mxu0 0.0
  %1255 = vmatprep.subr.mxu0 0.0
  %1256 = vmatpush1.msra.mxu0 0.0
  %1257 = vmatprep.subr.mxu0 0.0
  %1258 = vmatpush1.msra.mxu0 0.0
  %1259 = vmatprep.subr.mxu0 0.0
  %1260 = vmatpush1.msra.mxu0 0.0
  %1261 = vmatprep.subr.mxu0 0.0
  %1262 = vmatpush1.msra.mxu0 0.0
  %1263 = vmatprep.subr.mxu0 0.0
  %1264 = vmatpush1.msra.mxu0 0.0
  %1265 = vmatprep.subr.mxu0 0.0
  %1266 = vmatpush1.msra.mxu0 0.0
  %1267 = vmatprep.subr.mxu0 0.0
  %1268 = vmatpush1.msra.mxu0 0.0
  %1269 = vmatprep.subr.mxu0 0.0
  %1270 = vmatpush1.msra.mxu0 0.0
  %1271 = vmatprep.subr.mxu0 0.0
  %1272 = vmatpush1.msra.mxu0 0.0
  %1273 = vmatprep.subr.mxu0 0.0
  %1274 = vmatpush1.msra.mxu0 0.0
  %1275 = vmatprep.subr.mxu0 0.0
  %1276 = vmatpush1.msra.mxu0 0.0
  %1277 = vmatprep.subr.mxu0 0.0
  %1278 = vmatpush1.msra.mxu0 0.0
  %1279 = vmatprep.mubr.f32.mxu0 0.0
  %v1280 = vand.u32 %v199, 4294901760
  %1281 = vmatmul.mubr.f32.gmra.mrb[0].mxu0 %v1280
  %v1282 = vpop.f32.mrb[0].mxu0
  %v1283 = vadd.f32 %v1118, %v1282
  %v1284 = vpop.f32.mrb[0].mxu0
  %1285 = vmatprep.mubr.f32.mxu0 0.0
  %v1286 = vand.u32 %v202, 4294901760
  %1287 = vmatmul.mubr.f32.gmra.mrb[0].mxu0 %v1286
  %v1288 = vpop.f32.mrb[0].mxu0
  %v1289 = vadd.f32 %v1124, %v1288
  %v1290 = vpop.f32.mrb[0].mxu0
  %1291 = vmatprep.mubr.f32.mxu0 0.0
  %v1292 = vand.u32 %v205, 4294901760
  %1293 = vmatmul.mubr.f32.gmra.mrb[0].mxu0 %v1292
  %v1294 = vpop.f32.mrb[0].mxu0
  %v1295 = vadd.f32 %v1130, %v1294
  %v1296 = vpop.f32.mrb[0].mxu0
  %1297 = vmatprep.mubr.f32.mxu0 0.0
  %v1298 = vand.u32 %v208, 4294901760
  %1299 = vmatmul.mubr.f32.gmra.mrb[0].mxu0 %v1298
  %v1300 = vpop.f32.mrb[0].mxu0
  %v1301 = vadd.f32 %v1136, %v1300
  %v1302 = vpop.f32.mrb[0].mxu0
  %1303 = vmatprep.mubr.f32.mxu0 0.0
  %v1304 = vand.u32 %v211, 4294901760
  %1305 = vmatmul.mubr.f32.gmra.mrb[0].mxu0 %v1304
  %v1306 = vpop.f32.mrb[0].mxu0
  %v1307 = vadd.f32 %v1142, %v1306
  %v1308 = vpop.f32.mrb[0].mxu0
  %1309 = vmatprep.mubr.f32.mxu0 0.0
  %v1310 = vand.u32 %v214, 4294901760
  %1311 = vmatmul.mubr.f32.gmra.mrb[0].mxu0 %v1310
  %v1312 = vpop.f32.mrb[0].mxu0
  %v1313 = vadd.f32 %v1148, %v1312
  %v1314 = vpop.f32.mrb[0].mxu0
  %1315 = vmatprep.mubr.f32.mxu0 0.0
  %v1316 = vand.u32 %v217, 4294901760
  %1317 = vmatmul.mubr.f32.gmra.mrb[0].mxu0 %v1316
  %v1318 = vpop.f32.mrb[0].mxu0
  %v1319 = vadd.f32 %v1154, %v1318
  %v1320 = vpop.f32.mrb[0].mxu0
  %1321 = vmatprep.mubr.f32.mxu0 0.0
  %v1322 = vand.u32 %v220, 4294901760
  %1323 = vmatmul.mubr.f32.gmra.mrb[0].mxu0 %v1322
  %v1324 = vpop.f32.mrb[0].mxu0
  %v1325 = vadd.f32 %v1160, %v1324
  %v1326 = vpop.f32.mrb[0].mxu0
  %1327 = vmatprep.mubr.f32.mxu0 0.0
  %v1328 = vand.u32 %v223, 4294901760
  %1329 = vmatmul.mubr.f32.gmra.mrb[0].mxu0 %v1328
  %v1330 = vpop.f32.mrb[0].mxu0
  %v1331 = vadd.f32 %v1166, %v1330
  %v1332 = vpop.f32.mrb[0].mxu0
  %1333 = vmatprep.mubr.f32.mxu0 0.0
  %v1334 = vand.u32 %v226, 4294901760
  %1335 = vmatmul.mubr.f32.gmra.mrb[0].mxu0 %v1334
  %v1336 = vpop.f32.mrb[0].mxu0
  %v1337 = vadd.f32 %v1172, %v1336
  %v1338 = vpop.f32.mrb[0].mxu0
  %1339 = vmatprep.mubr.f32.mxu0 0.0
  %v1340 = vand.u32 %v229, 4294901760
  %1341 = vmatmul.mubr.f32.gmra.mrb[0].mxu0 %v1340
  %v1342 = vpop.f32.mrb[0].mxu0
  %v1343 = vadd.f32 %v1178, %v1342
  %v1344 = vpop.f32.mrb[0].mxu0
  %1345 = vmatprep.mubr.f32.mxu0 0.0
  %v1346 = vand.u32 %v232, 4294901760
  %1347 = vmatmul.mubr.f32.gmra.mrb[0].mxu0 %v1346
  %v1348 = vpop.f32.mrb[0].mxu0
  %v1349 = vadd.f32 %v1184, %v1348
  %v1350 = vpop.f32.mrb[0].mxu0
  %1351 = vmatprep.mubr.f32.mxu0 0.0
  %v1352 = vand.u32 %v235, 4294901760
  %1353 = vmatmul.mubr.f32.gmra.mrb[0].mxu0 %v1352
  %v1354 = vpop.f32.mrb[0].mxu0
  %v1355 = vadd.f32 %v1190, %v1354
  %v1356 = vpop.f32.mrb[0].mxu0
  %1357 = vmatprep.mubr.f32.mxu0 0.0
  %v1358 = vand.u32 %v238, 4294901760
  %1359 = vmatmul.mubr.f32.gmra.mrb[0].mxu0 %v1358
  %v1360 = vpop.f32.mrb[0].mxu0
  %v1361 = vadd.f32 %v1196, %v1360
  %v1362 = vpop.f32.mrb[0].mxu0
  %1363 = vmatprep.mubr.f32.mxu0 0.0
  %v1364 = vand.u32 %v241, 4294901760
  %1365 = vmatmul.mubr.f32.gmra.mrb[0].mxu0 %v1364
  %v1366 = vpop.f32.mrb[0].mxu0
  %v1367 = vadd.f32 %v1202, %v1366
  %v1368 = vpop.f32.mrb[0].mxu0
  %1369 = vmatprep.mubr.f32.mxu0 0.0
  %v1370 = vand.u32 %v244, 4294901760
  %1371 = vmatmul.mubr.f32.gmra.mrb[0].mxu0 %v1370
  %v1372 = vpop.f32.mrb[0].mxu0
  %v1373 = vadd.f32 %v1208, %v1372
  %v1374 = vpop.f32.mrb[0].mxu0
  %1375 = vdwg.mxu0
  %1377 = vset.pattern.permute.xlu0 0
  %1378 = vperm.xlu0 %1377, %v163
  %v1379 = vpop.permute.xlu0 %1378
  %1382 = vset.pattern.permute.xlu0 0
  %1383 = vperm.xlu0 %1382, %v164
  %v1384 = vpop.permute.xlu0 %1383
  %1387 = vset.pattern.permute.xlu0 0
  %1388 = vperm.xlu0 %1387, %v165
  %v1389 = vpop.permute.xlu0 %1388
  %1392 = vset.pattern.permute.xlu0 0
  %1393 = vperm.xlu0 %1392, %v166
  %v1394 = vpop.permute.xlu0 %1393
  %1397 = vset.pattern.permute.xlu0 0
  %1398 = vperm.xlu0 %1397, %v167
  %v1399 = vpop.permute.xlu0 %1398
  %1402 = vset.pattern.permute.xlu0 0
  %1403 = vperm.xlu0 %1402, %v168
  %v1404 = vpop.permute.xlu0 %1403
  %1407 = vset.pattern.permute.xlu0 0
  %1408 = vperm.xlu0 %1407, %v169
  %v1409 = vpop.permute.xlu0 %1408
  %1412 = vset.pattern.permute.xlu0 0
  %1413 = vperm.xlu0 %1412, %v170
  %v1414 = vpop.permute.xlu0 %1413
  %1417 = vset.pattern.permute.xlu0 0
  %1418 = vperm.xlu0 %1417, %v171
  %v1419 = vpop.permute.xlu0 %1418
  %1422 = vset.pattern.permute.xlu0 0
  %1423 = vperm.xlu0 %1422, %v172
  %v1424 = vpop.permute.xlu0 %1423
  %1427 = vset.pattern.permute.xlu0 0
  %1428 = vperm.xlu0 %1427, %v173
  %v1429 = vpop.permute.xlu0 %1428
  %1432 = vset.pattern.permute.xlu0 0
  %1433 = vperm.xlu0 %1432, %v174
  %v1434 = vpop.permute.xlu0 %1433
  %1437 = vset.pattern.permute.xlu0 0
  %1438 = vperm.xlu0 %1437, %v175
  %v1439 = vpop.permute.xlu0 %1438
  %1442 = vset.pattern.permute.xlu0 0
  %1443 = vperm.xlu0 %1442, %v176
  %v1444 = vpop.permute.xlu0 %1443
  %1447 = vset.pattern.permute.xlu0 0
  %1448 = vperm.xlu0 %1447, %v177
  %v1449 = vpop.permute.xlu0 %1448
  %1452 = vset.pattern.permute.xlu0 0
  %1453 = vperm.xlu0 %1452, %v178
  %v1454 = vpop.permute.xlu0 %1453
  %v1457 = vlaneseq
  %v1458 = vshrl.u32 %v1457, 7
  %v1459 = vsub.s32 0, %v1458
  %v1460 = vrot.slane %v179, %v1459
  %v1462 = vadd.f32 %v1379, %v1460
  %v1463 = vadd.f32 %v1384, %v1460
  %v1464 = vadd.f32 %v1389, %v1460
  %v1465 = vadd.f32 %v1394, %v1460
  %v1466 = vadd.f32 %v1399, %v1460
  %v1467 = vadd.f32 %v1404, %v1460
  %v1468 = vadd.f32 %v1409, %v1460
  %v1469 = vadd.f32 %v1414, %v1460
  %v1470 = vadd.f32 %v1419, %v1460
  %v1471 = vadd.f32 %v1424, %v1460
  %v1472 = vadd.f32 %v1429, %v1460
  %v1473 = vadd.f32 %v1434, %v1460
  %v1474 = vadd.f32 %v1439, %v1460
  %v1475 = vadd.f32 %v1444, %v1460
  %v1476 = vadd.f32 %v1449, %v1460
  %v1477 = vadd.f32 %v1454, %v1460
  %v1478 = vmul.f32 %v1283, 2.0
  %v1479 = vmul.f32 %v1289, 2.0
  %v1480 = vmul.f32 %v1295, 2.0
  %v1481 = vmul.f32 %v1301, 2.0
  %v1482 = vmul.f32 %v1307, 2.0
  %v1483 = vmul.f32 %v1313, 2.0
  %v1484 = vmul.f32 %v1319, 2.0
  %v1485 = vmul.f32 %v1325, 2.0
  %v1486 = vmul.f32 %v1331, 2.0
  %v1487 = vmul.f32 %v1337, 2.0
  %v1488 = vmul.f32 %v1343, 2.0
  %v1489 = vmul.f32 %v1349, 2.0
  %v1490 = vmul.f32 %v1355, 2.0
  %v1491 = vmul.f32 %v1361, 2.0
  %v1492 = vmul.f32 %v1367, 2.0
  %v1493 = vmul.f32 %v1373, 2.0
  %v1494 = vsub.f32 %v1462, %v1478
  %v1495 = vsub.f32 %v1463, %v1479
  %v1496 = vsub.f32 %v1464, %v1480
  %v1497 = vsub.f32 %v1465, %v1481
  %v1498 = vsub.f32 %v1466, %v1482
  %v1499 = vsub.f32 %v1467, %v1483
  %v1500 = vsub.f32 %v1468, %v1484
  %v1501 = vsub.f32 %v1469, %v1485
  %v1502 = vsub.f32 %v1470, %v1486
  %v1503 = vsub.f32 %v1471, %v1487
  %v1504 = vsub.f32 %v1472, %v1488
  %v1505 = vsub.f32 %v1473, %v1489
  %v1506 = vsub.f32 %v1474, %v1490
  %v1507 = vsub.f32 %v1475, %v1491
  %v1508 = vsub.f32 %v1476, %v1492
  %v1509 = vsub.f32 %v1477, %v1493
  %v1510 = vmax.f32 %v1494, 0.0
  %v1511 = vmax.f32 %v1495, 0.0
  %v1512 = vmax.f32 %v1496, 0.0
  %v1513 = vmax.f32 %v1497, 0.0
  %v1514 = vmax.f32 %v1498, 0.0
  %v1515 = vmax.f32 %v1499, 0.0
  %v1516 = vmax.f32 %v1500, 0.0
  %v1517 = vmax.f32 %v1501, 0.0
  %v1518 = vmax.f32 %v1502, 0.0
  %v1519 = vmax.f32 %v1503, 0.0
  %v1520 = vmax.f32 %v1504, 0.0
  %v1521 = vmax.f32 %v1505, 0.0
  %v1522 = vmax.f32 %v1506, 0.0
  %v1523 = vmax.f32 %v1507, 0.0
  %v1524 = vmax.f32 %v1508, 0.0
  %v1525 = vmax.f32 %v1509, 0.0
  %v1526 = vrsqrt.pop %v1510
  %v1527 = vmul.f32 %v1510, %v1526
  %vm1528 = vcmp.eq.f32.partialorder %v1510, inf
  %v1529 = vsel %vm1528, %v1510, %v1527
  %vm1530 = vcmp.eq.f32.partialorder %v1510, 0.0
  %v1531 = vand.u32 %v1510, 2147483648
  %v1532 = vsel %vm1530, %v1531, %v1529
  %v1533 = vrsqrt.pop %v1511
  %v1534 = vmul.f32 %v1511, %v1533
  %vm1535 = vcmp.eq.f32.partialorder %v1511, inf
  %v1536 = vsel %vm1535, %v1511, %v1534
  %vm1537 = vcmp.eq.f32.partialorder %v1511, 0.0
  %v1538 = vand.u32 %v1511, 2147483648
  %v1539 = vsel %vm1537, %v1538, %v1536
  %v1540 = vrsqrt.pop %v1512
  %v1541 = vmul.f32 %v1512, %v1540
  %vm1542 = vcmp.eq.f32.partialorder %v1512, inf
  %v1543 = vsel %vm1542, %v1512, %v1541
  %vm1544 = vcmp.eq.f32.partialorder %v1512, 0.0
  %v1545 = vand.u32 %v1512, 2147483648
  %v1546 = vsel %vm1544, %v1545, %v1543
  %v1547 = vrsqrt.pop %v1513
  %v1548 = vmul.f32 %v1513, %v1547
  %vm1549 = vcmp.eq.f32.partialorder %v1513, inf
  %v1550 = vsel %vm1549, %v1513, %v1548
  %vm1551 = vcmp.eq.f32.partialorder %v1513, 0.0
  %v1552 = vand.u32 %v1513, 2147483648
  %v1553 = vsel %vm1551, %v1552, %v1550
  %v1554 = vrsqrt.pop %v1514
  %v1555 = vmul.f32 %v1514, %v1554
  %vm1556 = vcmp.eq.f32.partialorder %v1514, inf
  %v1557 = vsel %vm1556, %v1514, %v1555
  %vm1558 = vcmp.eq.f32.partialorder %v1514, 0.0
  %v1559 = vand.u32 %v1514, 2147483648
  %v1560 = vsel %vm1558, %v1559, %v1557
  %v1561 = vrsqrt.pop %v1515
  %v1562 = vmul.f32 %v1515, %v1561
  %vm1563 = vcmp.eq.f32.partialorder %v1515, inf
  %v1564 = vsel %vm1563, %v1515, %v1562
  %vm1565 = vcmp.eq.f32.partialorder %v1515, 0.0
  %v1566 = vand.u32 %v1515, 2147483648
  %v1567 = vsel %vm1565, %v1566, %v1564
  %v1568 = vrsqrt.pop %v1516
  %v1569 = vmul.f32 %v1516, %v1568
  %vm1570 = vcmp.eq.f32.partialorder %v1516, inf
  %v1571 = vsel %vm1570, %v1516, %v1569
  %vm1572 = vcmp.eq.f32.partialorder %v1516, 0.0
  %v1573 = vand.u32 %v1516, 2147483648
  %v1574 = vsel %vm1572, %v1573, %v1571
  %v1575 = vrsqrt.pop %v1517
  %v1576 = vmul.f32 %v1517, %v1575
  %vm1577 = vcmp.eq.f32.partialorder %v1517, inf
  %v1578 = vsel %vm1577, %v1517, %v1576
  %vm1579 = vcmp.eq.f32.partialorder %v1517, 0.0
  %v1580 = vand.u32 %v1517, 2147483648
  %v1581 = vsel %vm1579, %v1580, %v1578
  %v1582 = vrsqrt.pop %v1518
  %v1583 = vmul.f32 %v1518, %v1582
  %vm1584 = vcmp.eq.f32.partialorder %v1518, inf
  %v1585 = vsel %vm1584, %v1518, %v1583
  %vm1586 = vcmp.eq.f32.partialorder %v1518, 0.0
  %v1587 = vand.u32 %v1518, 2147483648
  %v1588 = vsel %vm1586, %v1587, %v1585
  %v1589 = vrsqrt.pop %v1519
  %v1590 = vmul.f32 %v1519, %v1589
  %vm1591 = vcmp.eq.f32.partialorder %v1519, inf
  %v1592 = vsel %vm1591, %v1519, %v1590
  %vm1593 = vcmp.eq.f32.partialorder %v1519, 0.0
  %v1594 = vand.u32 %v1519, 2147483648
  %v1595 = vsel %vm1593, %v1594, %v1592
  %v1596 = vrsqrt.pop %v1520
  %v1597 = vmul.f32 %v1520, %v1596
  %vm1598 = vcmp.eq.f32.partialorder %v1520, inf
  %v1599 = vsel %vm1598, %v1520, %v1597
  %vm1600 = vcmp.eq.f32.partialorder %v1520, 0.0
  %v1601 = vand.u32 %v1520, 2147483648
  %v1602 = vsel %vm1600, %v1601, %v1599
  %v1603 = vrsqrt.pop %v1521
  %v1604 = vmul.f32 %v1521, %v1603
  %vm1605 = vcmp.eq.f32.partialorder %v1521, inf
  %v1606 = vsel %vm1605, %v1521, %v1604
  %vm1607 = vcmp.eq.f32.partialorder %v1521, 0.0
  %v1608 = vand.u32 %v1521, 2147483648
  %v1609 = vsel %vm1607, %v1608, %v1606
  %v1610 = vrsqrt.pop %v1522
  %v1611 = vmul.f32 %v1522, %v1610
  %vm1612 = vcmp.eq.f32.partialorder %v1522, inf
  %v1613 = vsel %vm1612, %v1522, %v1611
  %vm1614 = vcmp.eq.f32.partialorder %v1522, 0.0
  %v1615 = vand.u32 %v1522, 2147483648
  %v1616 = vsel %vm1614, %v1615, %v1613
  %v1617 = vrsqrt.pop %v1523
  %v1618 = vmul.f32 %v1523, %v1617
  %vm1619 = vcmp.eq.f32.partialorder %v1523, inf
  %v1620 = vsel %vm1619, %v1523, %v1618
  %vm1621 = vcmp.eq.f32.partialorder %v1523, 0.0
  %v1622 = vand.u32 %v1523, 2147483648
  %v1623 = vsel %vm1621, %v1622, %v1620
  %v1624 = vrsqrt.pop %v1524
  %v1625 = vmul.f32 %v1524, %v1624
  %vm1626 = vcmp.eq.f32.partialorder %v1524, inf
  %v1627 = vsel %vm1626, %v1524, %v1625
  %vm1628 = vcmp.eq.f32.partialorder %v1524, 0.0
  %v1629 = vand.u32 %v1524, 2147483648
  %v1630 = vsel %vm1628, %v1629, %v1627
  %v1631 = vrsqrt.pop %v1525
  %v1632 = vmul.f32 %v1525, %v1631
  %vm1633 = vcmp.eq.f32.partialorder %v1525, inf
  %v1634 = vsel %vm1633, %v1525, %v1632
  %vm1635 = vcmp.eq.f32.partialorder %v1525, 0.0
  %v1636 = vand.u32 %v1525, 2147483648
  %v1637 = vsel %vm1635, %v1636, %v1634
  %1639 = vset.pattern.permute.xlu0 0
  %1640 = vperm.xlu0 %1639, %v180
  %v1641 = vpop.permute.xlu0 %1640
  %1644 = vset.pattern.permute.xlu0 0
  %1645 = vperm.xlu0 %1644, %v181
  %v1646 = vpop.permute.xlu0 %1645
  %1649 = vset.pattern.permute.xlu0 0
  %1650 = vperm.xlu0 %1649, %v182
  %v1651 = vpop.permute.xlu0 %1650
  %1654 = vset.pattern.permute.xlu0 0
  %1655 = vperm.xlu0 %1654, %v183
  %v1656 = vpop.permute.xlu0 %1655
  %1659 = vset.pattern.permute.xlu0 0
  %1660 = vperm.xlu0 %1659, %v184
  %v1661 = vpop.permute.xlu0 %1660
  %1664 = vset.pattern.permute.xlu0 0
  %1665 = vperm.xlu0 %1664, %v185
  %v1666 = vpop.permute.xlu0 %1665
  %1669 = vset.pattern.permute.xlu0 0
  %1670 = vperm.xlu0 %1669, %v186
  %v1671 = vpop.permute.xlu0 %1670
  %1674 = vset.pattern.permute.xlu0 0
  %1675 = vperm.xlu0 %1674, %v187
  %v1676 = vpop.permute.xlu0 %1675
  %1679 = vset.pattern.permute.xlu0 0
  %1680 = vperm.xlu0 %1679, %v188
  %v1681 = vpop.permute.xlu0 %1680
  %1684 = vset.pattern.permute.xlu0 0
  %1685 = vperm.xlu0 %1684, %v189
  %v1686 = vpop.permute.xlu0 %1685
  %1689 = vset.pattern.permute.xlu0 0
  %1690 = vperm.xlu0 %1689, %v190
  %v1691 = vpop.permute.xlu0 %1690
  %1694 = vset.pattern.permute.xlu0 0
  %1695 = vperm.xlu0 %1694, %v191
  %v1696 = vpop.permute.xlu0 %1695
  %1699 = vset.pattern.permute.xlu0 0
  %1700 = vperm.xlu0 %1699, %v192
  %v1701 = vpop.permute.xlu0 %1700
  %1704 = vset.pattern.permute.xlu0 0
  %1705 = vperm.xlu0 %1704, %v193
  %v1706 = vpop.permute.xlu0 %1705
  %1709 = vset.pattern.permute.xlu0 0
  %1710 = vperm.xlu0 %1709, %v194
  %v1711 = vpop.permute.xlu0 %1710
  %1714 = vset.pattern.permute.xlu0 0
  %1715 = vperm.xlu0 %1714, %v195
  %v1716 = vpop.permute.xlu0 %1715
  %v1719 = vlaneseq
  %v1720 = vshrl.u32 %v1719, 7
  %v1721 = vsub.s32 0, %v1720
  %v1722 = vrot.slane %v196, %v1721
  %v1724 = vsub.f32 %v1641, %v1722
  %v1725 = vsub.f32 %v1646, %v1722
  %v1726 = vsub.f32 %v1651, %v1722
  %v1727 = vsub.f32 %v1656, %v1722
  %v1728 = vsub.f32 %v1661, %v1722
  %v1729 = vsub.f32 %v1666, %v1722
  %v1730 = vsub.f32 %v1671, %v1722
  %v1731 = vsub.f32 %v1676, %v1722
  %v1732 = vsub.f32 %v1681, %v1722
  %v1733 = vsub.f32 %v1686, %v1722
  %v1734 = vsub.f32 %v1691, %v1722
  %v1735 = vsub.f32 %v1696, %v1722
  %v1736 = vsub.f32 %v1701, %v1722
  %v1737 = vsub.f32 %v1706, %v1722
  %v1738 = vsub.f32 %v1711, %v1722
  %v1739 = vsub.f32 %v1716, %v1722
  %v1740 = vand.u32 2147483647, %v1724
  %v1741 = vand.u32 2147483647, %v1725
  %v1742 = vand.u32 2147483647, %v1726
  %v1743 = vand.u32 2147483647, %v1727
  %v1744 = vand.u32 2147483647, %v1728
  %v1745 = vand.u32 2147483647, %v1729
  %v1746 = vand.u32 2147483647, %v1730
  %v1747 = vand.u32 2147483647, %v1731
  %v1748 = vand.u32 2147483647, %v1732
  %v1749 = vand.u32 2147483647, %v1733
  %v1750 = vand.u32 2147483647, %v1734
  %v1751 = vand.u32 2147483647, %v1735
  %v1752 = vand.u32 2147483647, %v1736
  %v1753 = vand.u32 2147483647, %v1737
  %v1754 = vand.u32 2147483647, %v1738
  %v1755 = vand.u32 2147483647, %v1739
  %v1756 = vmul.f32 %v1740, %v1740
  %v1757 = vmul.f32 %v1741, %v1741
  %v1758 = vmul.f32 %v1742, %v1742
  %v1759 = vmul.f32 %v1743, %v1743
  %v1760 = vmul.f32 %v1744, %v1744
  %v1761 = vmul.f32 %v1745, %v1745
  %v1762 = vmul.f32 %v1746, %v1746
  %v1763 = vmul.f32 %v1747, %v1747
  %v1764 = vmul.f32 %v1748, %v1748
  %v1765 = vmul.f32 %v1749, %v1749
  %v1766 = vmul.f32 %v1750, %v1750
  %v1767 = vmul.f32 %v1751, %v1751
  %v1768 = vmul.f32 %v1752, %v1752
  %v1769 = vmul.f32 %v1753, %v1753
  %v1770 = vmul.f32 %v1754, %v1754
  %v1771 = vmul.f32 %v1755, %v1755
  %v1772 = vmul.f32 %v1756, -0.5
  %v1773 = vmul.f32 %v1757, -0.5
  %v1774 = vmul.f32 %v1758, -0.5
  %v1775 = vmul.f32 %v1759, -0.5
  %v1776 = vmul.f32 %v1760, -0.5
  %v1777 = vmul.f32 %v1761, -0.5
  %v1778 = vmul.f32 %v1762, -0.5
  %v1779 = vmul.f32 %v1763, -0.5
  %v1780 = vmul.f32 %v1764, -0.5
  %v1781 = vmul.f32 %v1765, -0.5
  %v1782 = vmul.f32 %v1766, -0.5
  %v1783 = vmul.f32 %v1767, -0.5
  %v1784 = vmul.f32 %v1768, -0.5
  %v1785 = vmul.f32 %v1769, -0.5
  %v1786 = vmul.f32 %v1770, -0.5
  %v1787 = vmul.f32 %v1771, -0.5
  %v1788 = vmul.f32 %v1772, 1.442695
  %v1789 = vpow.pop %v1788
  %v1790 = vmul.f32 %v1773, 1.442695
  %v1791 = vpow.pop %v1790
  %v1792 = vmul.f32 %v1774, 1.442695
  %v1793 = vpow.pop %v1792
  %v1794 = vmul.f32 %v1775, 1.442695
  %v1795 = vpow.pop %v1794
  %v1796 = vmul.f32 %v1776, 1.442695
  %v1797 = vpow.pop %v1796
  %v1798 = vmul.f32 %v1777, 1.442695
  %v1799 = vpow.pop %v1798
  %v1800 = vmul.f32 %v1778, 1.442695
  %v1801 = vpow.pop %v1800
  %v1802 = vmul.f32 %v1779, 1.442695
  %v1803 = vpow.pop %v1802
  %v1804 = vmul.f32 %v1780, 1.442695
  %v1805 = vpow.pop %v1804
  %v1806 = vmul.f32 %v1781, 1.442695
  %v1807 = vpow.pop %v1806
  %v1808 = vmul.f32 %v1782, 1.442695
  %v1809 = vpow.pop %v1808
  %v1810 = vmul.f32 %v1783, 1.442695
  %v1811 = vpow.pop %v1810
  %v1812 = vmul.f32 %v1784, 1.442695
  %v1813 = vpow.pop %v1812
  %v1814 = vmul.f32 %v1785, 1.442695
  %v1815 = vpow.pop %v1814
  %v1816 = vmul.f32 %v1786, 1.442695
  %v1817 = vpow.pop %v1816
  %v1818 = vmul.f32 %v1787, 1.442695
  %v1819 = vpow.pop %v1818
  %v1820 = vadd.f32 %v1789, 0.2
  %v1821 = vadd.f32 %v1791, 0.2
  %v1822 = vadd.f32 %v1793, 0.2
  %v1823 = vadd.f32 %v1795, 0.2
  %v1824 = vadd.f32 %v1797, 0.2
  %v1825 = vadd.f32 %v1799, 0.2
  %v1826 = vadd.f32 %v1801, 0.2
  %v1827 = vadd.f32 %v1803, 0.2
  %v1828 = vadd.f32 %v1805, 0.2
  %v1829 = vadd.f32 %v1807, 0.2
  %v1830 = vadd.f32 %v1809, 0.2
  %v1831 = vadd.f32 %v1811, 0.2
  %v1832 = vadd.f32 %v1813, 0.2
  %v1833 = vadd.f32 %v1815, 0.2
  %v1834 = vadd.f32 %v1817, 0.2
  %v1835 = vadd.f32 %v1819, 0.2
  %v1836 = vsub.f32 %v1532, %v1740
  %v1837 = vsub.f32 %v1539, %v1741
  %v1838 = vsub.f32 %v1546, %v1742
  %v1839 = vsub.f32 %v1553, %v1743
  %v1840 = vsub.f32 %v1560, %v1744
  %v1841 = vsub.f32 %v1567, %v1745
  %v1842 = vsub.f32 %v1574, %v1746
  %v1843 = vsub.f32 %v1581, %v1747
  %v1844 = vsub.f32 %v1588, %v1748
  %v1845 = vsub.f32 %v1595, %v1749
  %v1846 = vsub.f32 %v1602, %v1750
  %v1847 = vsub.f32 %v1609, %v1751
  %v1848 = vsub.f32 %v1616, %v1752
  %v1849 = vsub.f32 %v1623, %v1753
  %v1850 = vsub.f32 %v1630, %v1754
  %v1851 = vsub.f32 %v1637, %v1755
  %v1852 = vand.u32 2147483647, %v1836
  %v1853 = vand.u32 2147483647, %v1837
  %v1854 = vand.u32 2147483647, %v1838
  %v1855 = vand.u32 2147483647, %v1839
  %v1856 = vand.u32 2147483647, %v1840
  %v1857 = vand.u32 2147483647, %v1841
  %v1858 = vand.u32 2147483647, %v1842
  %v1859 = vand.u32 2147483647, %v1843
  %v1860 = vand.u32 2147483647, %v1844
  %v1861 = vand.u32 2147483647, %v1845
  %v1862 = vand.u32 2147483647, %v1846
  %v1863 = vand.u32 2147483647, %v1847
  %v1864 = vand.u32 2147483647, %v1848
  %v1865 = vand.u32 2147483647, %v1849
  %v1866 = vand.u32 2147483647, %v1850
  %v1867 = vand.u32 2147483647, %v1851
  %v1868 = vmul.f32 %v1820, %v1852
  %v1869 = vmul.f32 %v1821, %v1853
  %v1870 = vmul.f32 %v1822, %v1854
  %v1871 = vmul.f32 %v1823, %v1855
  %v1872 = vmul.f32 %v1824, %v1856
  %v1873 = vmul.f32 %v1825, %v1857
  %v1874 = vmul.f32 %v1826, %v1858
  %v1875 = vmul.f32 %v1827, %v1859
  %v1876 = vmul.f32 %v1828, %v1860
  %v1877 = vmul.f32 %v1829, %v1861
  %v1878 = vmul.f32 %v1830, %v1862
  %v1879 = vmul.f32 %v1831, %v1863
  %v1880 = vmul.f32 %v1832, %v1864
  %v1881 = vmul.f32 %v1833, %v1865
  %v1882 = vmul.f32 %v1834, %v1866
  %v1883 = vmul.f32 %v1835, %v1867
  %v1884 = vstv %s142
  %vm1885 = vcmp.gt.f32.partialorder %v1868, %v1884
  %vm1886 = vcmp.gt.f32.partialorder %v1869, %v1884
  %vm1887 = vcmp.gt.f32.partialorder %v1870, %v1884
  %vm1888 = vcmp.gt.f32.partialorder %v1871, %v1884
  %vm1889 = vcmp.gt.f32.partialorder %v1872, %v1884
  %vm1890 = vcmp.gt.f32.partialorder %v1873, %v1884
  %vm1891 = vcmp.gt.f32.partialorder %v1874, %v1884
  %vm1892 = vcmp.gt.f32.partialorder %v1875, %v1884
  %vm1893 = vcmp.gt.f32.partialorder %v1876, %v1884
  %vm1894 = vcmp.gt.f32.partialorder %v1877, %v1884
  %vm1895 = vcmp.gt.f32.partialorder %v1878, %v1884
  %vm1896 = vcmp.gt.f32.partialorder %v1879, %v1884
  %vm1897 = vcmp.gt.f32.partialorder %v1880, %v1884
  %vm1898 = vcmp.gt.f32.partialorder %v1881, %v1884
  %vm1899 = vcmp.gt.f32.partialorder %v1882, %v1884
  %vm1900 = vcmp.gt.f32.partialorder %v1883, %v1884
  %v1901 = vlaneseq
  %v1902 = vshrl.u32 %v1901, 7
  %v1903 = vadd.s32 %v1902, 8
  %v1904 = vadd.s32 %v1902, 16
  %v1905 = vadd.s32 %v1902, 24
  %v1906 = vadd.s32 %v1902, 32
  %v1907 = vadd.s32 %v1902, 40
  %v1908 = vadd.s32 %v1902, 48
  %v1909 = vadd.s32 %v1902, 56
  %v1910 = vadd.s32 %v1902, 64
  %v1911 = vadd.s32 %v1902, 72
  %v1912 = vadd.s32 %v1902, 80
  %v1913 = vadd.s32 %v1902, 88
  %v1914 = vadd.s32 %v1902, 96
  %v1915 = vadd.s32 %v1902, 104
  %v1916 = vadd.s32 %v1902, 112
  %v1917 = vadd.s32 %v1902, 120
  %s1918 = smul.u32 %s140, 128
  %v1919 = vstv %s1918
  %v1920 = vadd.s32 %v1902, %v1919
  %v1921 = vadd.s32 %v1903, %v1919
  %v1922 = vadd.s32 %v1904, %v1919
  %v1923 = vadd.s32 %v1905, %v1919
  %v1924 = vadd.s32 %v1906, %v1919
  %v1925 = vadd.s32 %v1907, %v1919
  %v1926 = vadd.s32 %v1908, %v1919
  %v1927 = vadd.s32 %v1909, %v1919
  %v1928 = vadd.s32 %v1910, %v1919
  %v1929 = vadd.s32 %v1911, %v1919
  %v1930 = vadd.s32 %v1912, %v1919
  %v1931 = vadd.s32 %v1913, %v1919
  %v1932 = vadd.s32 %v1914, %v1919
  %v1933 = vadd.s32 %v1915, %v1919
  %v1934 = vadd.s32 %v1916, %v1919
  %v1935 = vadd.s32 %v1917, %v1919
  %v1936 = vlaneseq
  %v1937 = vand.u32 %v1936, 127
  %s1938 = smul.u32 %s141, 128
  %v1939 = vstv %s1938
  %v1940 = vadd.s32 %v1937, %v1939
  %vm1941 = vcmp.lt.s32.totalorder %v1920, 8
  %vm1942 = vcmp.lt.s32.totalorder %v1921, 8
  %vm1943 = vcmp.lt.s32.totalorder %v1922, 8
  %vm1944 = vcmp.lt.s32.totalorder %v1923, 8
  %vm1945 = vcmp.lt.s32.totalorder %v1924, 8
  %vm1946 = vcmp.lt.s32.totalorder %v1925, 8
  %vm1947 = vcmp.lt.s32.totalorder %v1926, 8
  %vm1948 = vcmp.lt.s32.totalorder %v1927, 8
  %vm1949 = vcmp.lt.s32.totalorder %v1928, 8
  %vm1950 = vcmp.lt.s32.totalorder %v1929, 8
  %vm1951 = vcmp.lt.s32.totalorder %v1930, 8
  %vm1952 = vcmp.lt.s32.totalorder %v1931, 8
  %vm1953 = vcmp.lt.s32.totalorder %v1932, 8
  %vm1954 = vcmp.lt.s32.totalorder %v1933, 8
  %vm1955 = vcmp.lt.s32.totalorder %v1934, 8
  %vm1956 = vcmp.lt.s32.totalorder %v1935, 8
  %vm1957 = vcmp.lt.s32.totalorder %v1940, 8
  %v1958 = vsel %vm1941, 1, 0
  %v1959 = vsel %vm1942, 1, 0
  %v1960 = vsel %vm1943, 1, 0
  %v1961 = vsel %vm1944, 1, 0
  %v1962 = vsel %vm1945, 1, 0
  %v1963 = vsel %vm1946, 1, 0
  %v1964 = vsel %vm1947, 1, 0
  %v1965 = vsel %vm1948, 1, 0
  %v1966 = vsel %vm1949, 1, 0
  %v1967 = vsel %vm1950, 1, 0
  %v1968 = vsel %vm1951, 1, 0
  %v1969 = vsel %vm1952, 1, 0
  %v1970 = vsel %vm1953, 1, 0
  %v1971 = vsel %vm1954, 1, 0
  %v1972 = vsel %vm1955, 1, 0
  %v1973 = vsel %vm1956, 1, 0
  %vm1974 = vcmp.eq.s32.totalorder %v1958, 1
  %vm1975 = vcmp.eq.s32.totalorder %v1959, 1
  %vm1976 = vcmp.eq.s32.totalorder %v1960, 1
  %vm1977 = vcmp.eq.s32.totalorder %v1961, 1
  %vm1978 = vcmp.eq.s32.totalorder %v1962, 1
  %vm1979 = vcmp.eq.s32.totalorder %v1963, 1
  %vm1980 = vcmp.eq.s32.totalorder %v1964, 1
  %vm1981 = vcmp.eq.s32.totalorder %v1965, 1
  %vm1982 = vcmp.eq.s32.totalorder %v1966, 1
  %vm1983 = vcmp.eq.s32.totalorder %v1967, 1
  %vm1984 = vcmp.eq.s32.totalorder %v1968, 1
  %vm1985 = vcmp.eq.s32.totalorder %v1969, 1
  %vm1986 = vcmp.eq.s32.totalorder %v1970, 1
  %vm1987 = vcmp.eq.s32.totalorder %v1971, 1
  %vm1988 = vcmp.eq.s32.totalorder %v1972, 1
  %vm1989 = vcmp.eq.s32.totalorder %v1973, 1
  %v1990 = vsel %vm1957, 1, 0
  %vm1991 = vcmp.eq.s32.totalorder %v1990, 1
  %vm1992 = vmand %vm1974, %vm1991
  %vm1993 = vmand %vm1975, %vm1991
  %vm1994 = vmand %vm1976, %vm1991
  %vm1995 = vmand %vm1977, %vm1991
  %vm1996 = vmand %vm1978, %vm1991
  %vm1997 = vmand %vm1979, %vm1991
  %vm1998 = vmand %vm1980, %vm1991
  %vm1999 = vmand %vm1981, %vm1991
  %vm2000 = vmand %vm1982, %vm1991
  %vm2001 = vmand %vm1983, %vm1991
  %vm2002 = vmand %vm1984, %vm1991
  %vm2003 = vmand %vm1985, %vm1991
  %vm2004 = vmand %vm1986, %vm1991
  %vm2005 = vmand %vm1987, %vm1991
  %vm2006 = vmand %vm1988, %vm1991
  %vm2007 = vmand %vm1989, %vm1991
  %vm2008 = vmand %vm1885, %vm1992
  %vm2009 = vmand %vm1886, %vm1993
  %vm2010 = vmand %vm1887, %vm1994
  %vm2011 = vmand %vm1888, %vm1995
  %vm2012 = vmand %vm1889, %vm1996
  %vm2013 = vmand %vm1890, %vm1997
  %vm2014 = vmand %vm1891, %vm1998
  %vm2015 = vmand %vm1892, %vm1999
  %vm2016 = vmand %vm1893, %vm2000
  %vm2017 = vmand %vm1894, %vm2001
  %vm2018 = vmand %vm1895, %vm2002
  %vm2019 = vmand %vm1896, %vm2003
  %vm2020 = vmand %vm1897, %vm2004
  %vm2021 = vmand %vm1898, %vm2005
  %vm2022 = vmand %vm1899, %vm2006
  %vm2023 = vmand %vm1900, %vm2007
  %p2024 = scmp.eq.s32.totalorder %s140, %s141
  %s2025 = scalar_select %p2024, 1.0, 2.0
  %v2026 = vsel %vm2008, %v1868, 0.0
  %v2027 = vsel %vm2009, %v1869, 0.0
  %v2028 = vsel %vm2010, %v1870, 0.0
  %v2029 = vsel %vm2011, %v1871, 0.0
  %v2030 = vsel %vm2012, %v1872, 0.0
  %v2031 = vsel %vm2013, %v1873, 0.0
  %v2032 = vsel %vm2014, %v1874, 0.0
  %v2033 = vsel %vm2015, %v1875, 0.0
  %v2034 = vsel %vm2016, %v1876, 0.0
  %v2035 = vsel %vm2017, %v1877, 0.0
  %v2036 = vsel %vm2018, %v1878, 0.0
  %v2037 = vsel %vm2019, %v1879, 0.0
  %v2038 = vsel %vm2020, %v1880, 0.0
  %v2039 = vsel %vm2021, %v1881, 0.0
  %v2040 = vsel %vm2022, %v1882, 0.0
  %v2041 = vsel %vm2023, %v1883, 0.0
  %v2042 = vadd.f32 %v2026, %v2027
  %v2043 = vadd.f32 %v2042, %v2028
  %v2044 = vadd.f32 %v2043, %v2029
  %v2045 = vadd.f32 %v2044, %v2030
  %v2046 = vadd.f32 %v2045, %v2031
  %v2047 = vadd.f32 %v2046, %v2032
  %v2048 = vadd.f32 %v2047, %v2033
  %v2049 = vadd.f32 %v2048, %v2034
  %v2050 = vadd.f32 %v2049, %v2035
  %v2051 = vadd.f32 %v2050, %v2036
  %v2052 = vadd.f32 %v2051, %v2037
  %v2053 = vadd.f32 %v2052, %v2038
  %v2054 = vadd.f32 %v2053, %v2039
  %v2055 = vadd.f32 %v2054, %v2040
  %v2056 = vadd.f32 %v2055, %v2041
  %v2057 = vstv %s2025
  %v2058 = vmul.f32 %v2057, %v2056
  %2059 = vst [vmem:[%s9] sm:$0xff] %v2058
  %v2060 = vsel %vm2008, %v1820, 0.0
  %v2061 = vsel %vm2009, %v1821, 0.0
  %v2062 = vsel %vm2010, %v1822, 0.0
  %v2063 = vsel %vm2011, %v1823, 0.0
  %v2064 = vsel %vm2012, %v1824, 0.0
  %v2065 = vsel %vm2013, %v1825, 0.0
  %v2066 = vsel %vm2014, %v1826, 0.0
  %v2067 = vsel %vm2015, %v1827, 0.0
  %v2068 = vsel %vm2016, %v1828, 0.0
  %v2069 = vsel %vm2017, %v1829, 0.0
  %v2070 = vsel %vm2018, %v1830, 0.0
  %v2071 = vsel %vm2019, %v1831, 0.0
  %v2072 = vsel %vm2020, %v1832, 0.0
  %v2073 = vsel %vm2021, %v1833, 0.0
  %v2074 = vsel %vm2022, %v1834, 0.0
  %v2075 = vsel %vm2023, %v1835, 0.0
  %v2076 = vadd.f32 %v2060, %v2061
  %v2077 = vadd.f32 %v2076, %v2062
  %v2078 = vadd.f32 %v2077, %v2063
  %v2079 = vadd.f32 %v2078, %v2064
  %v2080 = vadd.f32 %v2079, %v2065
  %v2081 = vadd.f32 %v2080, %v2066
  %v2082 = vadd.f32 %v2081, %v2067
  %v2083 = vadd.f32 %v2082, %v2068
  %v2084 = vadd.f32 %v2083, %v2069
  %v2085 = vadd.f32 %v2084, %v2070
  %v2086 = vadd.f32 %v2085, %v2071
  %v2087 = vadd.f32 %v2086, %v2072
  %v2088 = vadd.f32 %v2087, %v2073
  %v2089 = vadd.f32 %v2088, %v2074
  %v2090 = vadd.f32 %v2089, %v2075
  %v2091 = vmul.f32 %v2057, %v2090
  %2092 = vst [vmem:[%s9 + $0x8] sm:$0xff] %v2091
  %v2093 = vsel %vm2008, 1, 0
  %v2094 = vsel %vm2009, 1, 0
  %v2095 = vsel %vm2010, 1, 0
  %v2096 = vsel %vm2011, 1, 0
  %v2097 = vsel %vm2012, 1, 0
  %v2098 = vsel %vm2013, 1, 0
  %v2099 = vsel %vm2014, 1, 0
  %v2100 = vsel %vm2015, 1, 0
  %v2101 = vsel %vm2016, 1, 0
  %v2102 = vsel %vm2017, 1, 0
  %v2103 = vsel %vm2018, 1, 0
  %v2104 = vsel %vm2019, 1, 0
  %v2105 = vsel %vm2020, 1, 0
  %v2106 = vsel %vm2021, 1, 0
  %v2107 = vsel %vm2022, 1, 0
  %v2108 = vsel %vm2023, 1, 0
  %v2109 = vcvt.s32.f32 %v2093
  %v2110 = vcvt.s32.f32 %v2094
  %v2111 = vcvt.s32.f32 %v2095
  %v2112 = vcvt.s32.f32 %v2096
  %v2113 = vcvt.s32.f32 %v2097
  %v2114 = vcvt.s32.f32 %v2098
  %v2115 = vcvt.s32.f32 %v2099
  %v2116 = vcvt.s32.f32 %v2100
  %v2117 = vcvt.s32.f32 %v2101
  %v2118 = vcvt.s32.f32 %v2102
  %v2119 = vcvt.s32.f32 %v2103
  %v2120 = vcvt.s32.f32 %v2104
  %v2121 = vcvt.s32.f32 %v2105
  %v2122 = vcvt.s32.f32 %v2106
  %v2123 = vcvt.s32.f32 %v2107
  %v2124 = vcvt.s32.f32 %v2108
  %v2125 = vadd.f32 %v2109, %v2110
  %v2126 = vadd.f32 %v2125, %v2111
  %v2127 = vadd.f32 %v2126, %v2112
  %v2128 = vadd.f32 %v2127, %v2113
  %v2129 = vadd.f32 %v2128, %v2114
  %v2130 = vadd.f32 %v2129, %v2115
  %v2131 = vadd.f32 %v2130, %v2116
  %v2132 = vadd.f32 %v2131, %v2117
  %v2133 = vadd.f32 %v2132, %v2118
  %v2134 = vadd.f32 %v2133, %v2119
  %v2135 = vadd.f32 %v2134, %v2120
  %v2136 = vadd.f32 %v2135, %v2121
  %v2137 = vadd.f32 %v2136, %v2122
  %v2138 = vadd.f32 %v2137, %v2123
  %v2139 = vadd.f32 %v2138, %v2124
  %v2140 = vmul.f32 %v2057, %v2139
  %2141 = vst [vmem:[%s9 + $0x10] sm:$0xff] %v2140
  // Predicated region
  $region26: #{_reg_metric_forward.3} parent=0 // pred_check
    _
  $region27: #{_reg_metric_forward.3} parent=0 // pred_check_branch
    %2143 = sbr.rel (0) target = $region29
  $region28: #{_reg_metric_forward.3} parent=0 // pred_region
    _
  $region29: #{_reg_metric_forward.3} parent=0 // pred_fallthru
    _
  // Predicated region
  $region30: #{_reg_metric_forward.3} parent=0 // pred_check
    _
  $region31: #{_reg_metric_forward.3} parent=0 // pred_check_branch
    %2145 = sbr.rel (0) target = $region33
  $region32: #{_reg_metric_forward.3} parent=0 // pred_region
    _
  $region33: #{_reg_metric_forward.3} parent=0 // pred_fallthru
    _

</llo_original>
